<compile_context>
chip_gen: v6e
topology: v6e:2x2x1
jax: 0.10.0
libtpu: 0.0.40
codegen_flags: <defaults>
</compile_context>

<pallas_src>
import jax
import jax.numpy as jnp
from jax import lax
from jax.experimental import pallas as pl
from jax.experimental.pallas import tpu as pltpu


# ------------------------------ fused kernel -------------------------------

def _net_kernel(x_ref, w1_ref, b1_ref, w2_ref, b2_ref, w3_ref, b3_ref,
                w4_ref, b4_ref, o_ref):
    tb = x_ref.shape[0]
    x = x_ref[...].astype(jnp.bfloat16)                         # (TB, 28, 28)

    # ---- conv1 (1->20, 5x5, valid): 5 width-Toeplitz MXU matmuls ----------
    acc1 = jnp.zeros((tb * 24, 24 * 20), jnp.float32)
    for kh in range(5):
        rows = x[:, kh:kh + 24, :].reshape(tb * 24, 28)
        acc1 = acc1 + jnp.dot(rows, w1_ref[kh],
                              preferred_element_type=jnp.float32)
    y1 = (acc1 + b1_ref[...]).reshape(tb, 24, 24 * 20)          # lanes: j*20+c

    # ---- 2x2 max-pool (softsign is monotone -> pool pre-activation) -------
    y1r = jnp.concatenate(
        [jnp.maximum(y1[:, 2 * t:2 * t + 1, :], y1[:, 2 * t + 1:2 * t + 2, :])
         for t in range(12)], axis=1)                           # (TB, 12, 480)
    p1 = jnp.concatenate(
        [jnp.maximum(y1r[:, :, 40 * t:40 * t + 20],
                     y1r[:, :, 40 * t + 20:40 * t + 40])
         for t in range(12)], axis=-1)                          # (TB, 12, 240)
    p1 = (p1 / (1.0 + jnp.abs(p1))).astype(jnp.bfloat16)        # softsign

    # ---- conv2 (20->32, 5x5): 5 width-Toeplitz MXU matmuls ----------------
    acc2 = jnp.zeros((tb * 8, 8 * 32), jnp.float32)
    for kh in range(5):
        rows = p1[:, kh:kh + 8, :].reshape(tb * 8, 240)
        acc2 = acc2 + jnp.dot(rows, w2_ref[kh],
                              preferred_element_type=jnp.float32)
    y2 = (acc2 + b2_ref[...]).reshape(tb, 8, 8 * 32)            # lanes: j*32+c

    y2r = jnp.concatenate(
        [jnp.maximum(y2[:, 2 * t:2 * t + 1, :], y2[:, 2 * t + 1:2 * t + 2, :])
         for t in range(4)], axis=1)                            # (TB, 4, 256)
    p2 = jnp.concatenate(
        [jnp.maximum(y2r[:, :, 64 * t:64 * t + 32],
                     y2r[:, :, 64 * t + 32:64 * t + 64])
         for t in range(4)], axis=-1)                           # (TB, 4, 128)
    p2 = (p2 / (1.0 + jnp.abs(p2))).astype(jnp.bfloat16)        # softsign

    # ---- fc1 (PyTorch NCHW flatten folded into weight layout) -------------
    z = jnp.zeros((tb, 32), jnp.float32) + b3_ref[...]
    for h in range(4):
        z = z + jnp.dot(p2[:, h, :], w3_ref[h],
                        preferred_element_type=jnp.float32)
    a3 = z / (1.0 + jnp.abs(z))                                 # softsign

    # ---- fc2 -> log_softmax ------------------------------------------------
    logits = jnp.dot(a3, w4_ref[...],
                     preferred_element_type=jnp.float32) + b4_ref[...]
    m = jnp.max(logits, axis=-1, keepdims=True)
    lse = m + jnp.log(jnp.sum(jnp.exp(logits - m), axis=-1, keepdims=True))
    o_ref[...] = logits - lse


# --------------------- trace-time weight re-layout --------------------------

def _prep_weights(params):
    f32 = jnp.float32

    # conv1 Toeplitz: W1[kh, p, j*20+co] = conv1_w[co, 0, kh, p - j]
    w1 = params["conv1_w"][:, 0, :, :].astype(f32)              # (co, kh, kw)
    sel1 = (jnp.arange(28)[:, None, None]
            == jnp.arange(24)[None, :, None] + jnp.arange(5)[None, None, :]
            ).astype(f32)                                       # (p, j, kw)
    w1t = jnp.einsum("pjw,oiw->ipjo", sel1, w1).reshape(5, 28, 480)

    # conv2 Toeplitz on channel-minor lanes: input lane p = 20*col + ci.
    # W2[kh, p, j*32+co] = conv2_w[co, ci, kh, kw] where p = 20*(j+kw) + ci.
    w2 = params["conv2_w"].astype(f32)                          # (co, ci, kh, kw)
    lane = jnp.arange(240)[:, None, None, None]
    tgt = (20 * (jnp.arange(8)[None, :, None, None]
                 + jnp.arange(5)[None, None, :, None])
           + jnp.arange(20)[None, None, None, :])
    sel2 = (lane == tgt).astype(f32)                            # (p, j, kw, ci)
    w2t = jnp.einsum("pjwc,ociw->ipjo", sel2, w2).reshape(5, 240, 256)

    # fc1: fold the PyTorch NCHW flatten (index c*16 + h*4 + w) into the
    # weight so the kernel consumes the (h, w*32+c) pooled layout directly.
    w3 = jnp.transpose(params["fc1_w"].astype(f32).reshape(32, 32, 4, 4),
                       (2, 3, 1, 0)).reshape(4, 128, 32)        # [h, w*32+c, o]

    return {
        "w1t": w1t.astype(jnp.bfloat16),
        "b1": jnp.tile(params["conv1_b"].astype(f32), 24).reshape(1, 480),
        "w2t": w2t.astype(jnp.bfloat16),
        "b2": jnp.tile(params["conv2_b"].astype(f32), 8).reshape(1, 256),
        "w3": w3.astype(jnp.bfloat16),
        "b3": params["fc1_b"].astype(f32).reshape(1, 32),
        "w4": params["fc2_w"].astype(f32).T,                    # (32, 10)
        "b4": params["fc2_b"].astype(f32).reshape(1, 10),
    }


# --------------------------------- wrapper ----------------------------------

def net_forward(params, x_nchw):
    B = x_nchw.shape[0]
    x = x_nchw.reshape(B, 28, 28).astype(jnp.float32)           # Cin == 1
    w = _prep_weights(params)

    tb = 8 if B % 8 == 0 else B                                 # batch tile
    grid = (B // tb,)

    def full(a):                                                # resident block
        nd = a.ndim
        return pl.BlockSpec(a.shape, lambda i, _nd=nd: (0,) * _nd)

    return pl.pallas_call(
        _net_kernel,
        out_shape=jax.ShapeDtypeStruct((B, 10), jnp.float32),
        grid=grid,
        in_specs=[pl.BlockSpec((tb, 28, 28), lambda i: (i, 0, 0)),
                  full(w["w1t"]), full(w["b1"]),
                  full(w["w2t"]), full(w["b2"]),
                  full(w["w3"]), full(w["b3"]),
                  full(w["w4"]), full(w["b4"])],
        out_specs=pl.BlockSpec((tb, 10), lambda i: (i, 0)),
        compiler_params=pltpu.CompilerParams(
            dimension_semantics=("parallel",),
            vmem_limit_bytes=32 * 1024 * 1024),
    )(x, w["w1t"], w["b1"], w["w2t"], w["b2"],
      w["w3"], w["b3"], w["w4"], w["b4"])


# ------------------------- pure-JAX reference (f32) --------------------------

def net_reference(params, x):
    dn = ("NCHW", "OIHW", "NCHW")
    y = lax.conv_general_dilated(x, params["conv1_w"], (1, 1), "VALID",
                                 dimension_numbers=dn)
    y = y + params["conv1_b"][None, :, None, None]
    y = y / (1.0 + jnp.abs(y))
    y = lax.reduce_window(y, -jnp.inf, lax.max, (1, 1, 2, 2), (1, 1, 2, 2),
                          "VALID")
    y = lax.conv_general_dilated(y, params["conv2_w"], (1, 1), "VALID",
                                 dimension_numbers=dn)
    y = y + params["conv2_b"][None, :, None, None]
    y = y / (1.0 + jnp.abs(y))
    y = lax.reduce_window(y, -jnp.inf, lax.max, (1, 1, 2, 2), (1, 1, 2, 2),
                          "VALID")
    y = y.reshape(y.shape[0], -1)                               # NCHW flatten
    y = y @ params["fc1_w"].T + params["fc1_b"]
    y = y / (1.0 + jnp.abs(y))
    y = y @ params["fc2_w"].T + params["fc2_b"]
    return jax.nn.log_softmax(y, axis=-1)


def init_params(key):
    ks = jax.random.split(key, 8)

    def u(k, shape, fan_in):
        bound = 1.0 / (fan_in ** 0.5)
        return jax.random.uniform(k, shape, jnp.float32, -bound, bound)

    return {
        "conv1_w": u(ks[0], (20, 1, 5, 5), 1 * 5 * 5),    # PyTorch (Cout,Cin,KH,KW)
        "conv1_b": u(ks[1], (20,), 1 * 5 * 5),
        "conv2_w": u(ks[2], (32, 20, 5, 5), 20 * 5 * 5),
        "conv2_b": u(ks[3], (32,), 20 * 5 * 5),
        "fc1_w":  u(ks[4], (32, 4 * 4 * 32), 4 * 4 * 32),  # PyTorch (out, in)
        "fc1_b":  u(ks[5], (32,), 4 * 4 * 32),
        "fc2_w":  u(ks[6], (10, 32), 32),
        "fc2_b":  u(ks[7], (10,), 32),
    }


if __name__ == "__main__":
    key = jax.random.PRNGKey(0)
    pkey, xkey = jax.random.split(key)
    params = init_params(pkey)
    # MNIST-like input (the module's 4*4*32 flatten implies 28x28, 1 channel)
    x = jax.random.normal(xkey, (2, 1, 28, 28), jnp.float32)

    out = jax.jit(net_forward)(params, x)
    jax.block_until_ready(out)
    assert out.shape == (2, 10)
    assert bool(jnp.all(jnp.isfinite(out)))
    # log_softmax rows should sum to 1 in probability space
    assert bool(jnp.allclose(jnp.sum(jnp.exp(out), axis=1), 1.0, atol=1e-4))
    # check against a pure-JAX f32 reference (bf16 MXU feeds -> loose atol)
    ref = jax.jit(net_reference)(params, x)
    assert bool(jnp.allclose(out, ref, atol=5e-2, rtol=0.0)), \
        float(jnp.max(jnp.abs(out - ref)))
    print("KERNEL_OK")
</pallas_src>

<mosaic_0001>
module attributes {stable_mosaic.version = 11 : i64} {
  func.func @_net_kernel(%arg0: i32, %arg1: memref<2x28x28xf32, #tpu.memory_space<vmem>>, %arg2: memref<5x28x480xbf16, #tpu.memory_space<vmem>>, %arg3: memref<1x480xf32, #tpu.memory_space<vmem>>, %arg4: memref<5x240x256xbf16, #tpu.memory_space<vmem>>, %arg5: memref<1x256xf32, #tpu.memory_space<vmem>>, %arg6: memref<4x128x32xbf16, #tpu.memory_space<vmem>>, %arg7: memref<1x32xf32, #tpu.memory_space<vmem>>, %arg8: memref<32x10xf32, #tpu.memory_space<vmem>>, %arg9: memref<1x10xf32, #tpu.memory_space<vmem>>, %arg10: memref<2x10xf32, #tpu.memory_space<vmem>>) attributes {dimension_semantics = [#tpu.dimension_semantics<parallel>], iteration_bounds = array<i64: 1>, scalar_prefetch = 0 : i64, scratch_operands = 0 : i64, tpu.core_type = #tpu.core_type<tc>, window_params = [{transform_indices = @transform_0, window_bounds = array<i64: 2, 28, 28>}, {pipeline_mode = #tpu.pipeline_mode<synchronous>, transform_indices = @transform_1, window_bounds = array<i64: 5, 28, 480>}, {pipeline_mode = #tpu.pipeline_mode<synchronous>, transform_indices = @transform_2, window_bounds = array<i64: 1, 480>}, {pipeline_mode = #tpu.pipeline_mode<synchronous>, transform_indices = @transform_3, window_bounds = array<i64: 5, 240, 256>}, {pipeline_mode = #tpu.pipeline_mode<synchronous>, transform_indices = @transform_4, window_bounds = array<i64: 1, 256>}, {pipeline_mode = #tpu.pipeline_mode<synchronous>, transform_indices = @transform_5, window_bounds = array<i64: 4, 128, 32>}, {pipeline_mode = #tpu.pipeline_mode<synchronous>, transform_indices = @transform_6, window_bounds = array<i64: 1, 32>}, {pipeline_mode = #tpu.pipeline_mode<synchronous>, transform_indices = @transform_7, window_bounds = array<i64: 32, 10>}, {pipeline_mode = #tpu.pipeline_mode<synchronous>, transform_indices = @transform_8, window_bounds = array<i64: 1, 10>}, {transform_indices = @transform_9, window_bounds = array<i64: 2, 10>}]} {
    %c0 = arith.constant 0 : index
    %c0_0 = arith.constant 0 : index
    %c0_1 = arith.constant 0 : index
    %0 = vector.load %arg1[%c0, %c0_0, %c0_1] : memref<2x28x28xf32, #tpu.memory_space<vmem>>, vector<2x28x28xf32>
    %1 = arith.truncf %0 : vector<2x28x28xf32> to vector<2x28x28xbf16>
    %cst = arith.constant 0.000000e+00 : f32
    %2 = vector.broadcast %cst : f32 to vector<48x480xf32>
    %3 = vector.extract_strided_slice %1 {offsets = [0, 0, 0], sizes = [2, 24, 28], strides = [1, 1, 1]} : vector<2x28x28xbf16> to vector<2x24x28xbf16>
    %4 = vector.shape_cast %3 : vector<2x24x28xbf16> to vector<48x28xbf16>
    %c0_2 = arith.constant 0 : index
    %c0_3 = arith.constant 0 : index
    %c0_4 = arith.constant 0 : index
    %5 = vector.load %arg2[%c0_2, %c0_3, %c0_4] : memref<5x28x480xbf16, #tpu.memory_space<vmem>>, vector<1x28x480xbf16>
    %6 = vector.shape_cast %5 : vector<1x28x480xbf16> to vector<28x480xbf16>
    %cst_5 = arith.constant dense<0.000000e+00> : vector<48x480xf32>
    %7 = tpu.matmul %4, %6, %cst_5 {dimension_numbers = #tpu.dot_dimension_numbers<[1], [0], [0], [1], [0, 0, 1, 1], [], []>} : vector<48x28xbf16>, vector<28x480xbf16>, vector<48x480xf32> -> vector<48x480xf32>
    %8 = arith.addf %2, %7 : vector<48x480xf32>
    %9 = vector.extract_strided_slice %1 {offsets = [0, 1, 0], sizes = [2, 24, 28], strides = [1, 1, 1]} : vector<2x28x28xbf16> to vector<2x24x28xbf16>
    %10 = vector.shape_cast %9 : vector<2x24x28xbf16> to vector<48x28xbf16>
    %c1 = arith.constant 1 : index
    %c0_6 = arith.constant 0 : index
    %c0_7 = arith.constant 0 : index
    %11 = vector.load %arg2[%c1, %c0_6, %c0_7] : memref<5x28x480xbf16, #tpu.memory_space<vmem>>, vector<1x28x480xbf16>
    %12 = vector.shape_cast %11 : vector<1x28x480xbf16> to vector<28x480xbf16>
    %cst_8 = arith.constant dense<0.000000e+00> : vector<48x480xf32>
    %13 = tpu.matmul %10, %12, %cst_8 {dimension_numbers = #tpu.dot_dimension_numbers<[1], [0], [0], [1], [0, 0, 1, 1], [], []>} : vector<48x28xbf16>, vector<28x480xbf16>, vector<48x480xf32> -> vector<48x480xf32>
    %14 = arith.addf %8, %13 : vector<48x480xf32>
    %15 = vector.extract_strided_slice %1 {offsets = [0, 2, 0], sizes = [2, 24, 28], strides = [1, 1, 1]} : vector<2x28x28xbf16> to vector<2x24x28xbf16>
    %16 = vector.shape_cast %15 : vector<2x24x28xbf16> to vector<48x28xbf16>
    %c2 = arith.constant 2 : index
    %c0_9 = arith.constant 0 : index
    %c0_10 = arith.constant 0 : index
    %17 = vector.load %arg2[%c2, %c0_9, %c0_10] : memref<5x28x480xbf16, #tpu.memory_space<vmem>>, vector<1x28x480xbf16>
    %18 = vector.shape_cast %17 : vector<1x28x480xbf16> to vector<28x480xbf16>
    %cst_11 = arith.constant dense<0.000000e+00> : vector<48x480xf32>
    %19 = tpu.matmul %16, %18, %cst_11 {dimension_numbers = #tpu.dot_dimension_numbers<[1], [0], [0], [1], [0, 0, 1, 1], [], []>} : vector<48x28xbf16>, vector<28x480xbf16>, vector<48x480xf32> -> vector<48x480xf32>
    %20 = arith.addf %14, %19 : vector<48x480xf32>
    %21 = vector.extract_strided_slice %1 {offsets = [0, 3, 0], sizes = [2, 24, 28], strides = [1, 1, 1]} : vector<2x28x28xbf16> to vector<2x24x28xbf16>
    %22 = vector.shape_cast %21 : vector<2x24x28xbf16> to vector<48x28xbf16>
    %c3 = arith.constant 3 : index
    %c0_12 = arith.constant 0 : index
    %c0_13 = arith.constant 0 : index
    %23 = vector.load %arg2[%c3, %c0_12, %c0_13] : memref<5x28x480xbf16, #tpu.memory_space<vmem>>, vector<1x28x480xbf16>
    %24 = vector.shape_cast %23 : vector<1x28x480xbf16> to vector<28x480xbf16>
    %cst_14 = arith.constant dense<0.000000e+00> : vector<48x480xf32>
    %25 = tpu.matmul %22, %24, %cst_14 {dimension_numbers = #tpu.dot_dimension_numbers<[1], [0], [0], [1], [0, 0, 1, 1], [], []>} : vector<48x28xbf16>, vector<28x480xbf16>, vector<48x480xf32> -> vector<48x480xf32>
    %26 = arith.addf %20, %25 : vector<48x480xf32>
    %27 = vector.extract_strided_slice %1 {offsets = [0, 4, 0], sizes = [2, 24, 28], strides = [1, 1, 1]} : vector<2x28x28xbf16> to vector<2x24x28xbf16>
    %28 = vector.shape_cast %27 : vector<2x24x28xbf16> to vector<48x28xbf16>
    %c4 = arith.constant 4 : index
    %c0_15 = arith.constant 0 : index
    %c0_16 = arith.constant 0 : index
    %29 = vector.load %arg2[%c4, %c0_15, %c0_16] : memref<5x28x480xbf16, #tpu.memory_space<vmem>>, vector<1x28x480xbf16>
    %30 = vector.shape_cast %29 : vector<1x28x480xbf16> to vector<28x480xbf16>
    %cst_17 = arith.constant dense<0.000000e+00> : vector<48x480xf32>
    %31 = tpu.matmul %28, %30, %cst_17 {dimension_numbers = #tpu.dot_dimension_numbers<[1], [0], [0], [1], [0, 0, 1, 1], [], []>} : vector<48x28xbf16>, vector<28x480xbf16>, vector<48x480xf32> -> vector<48x480xf32>
    %32 = arith.addf %26, %31 : vector<48x480xf32>
    %c0_18 = arith.constant 0 : index
    %c0_19 = arith.constant 0 : index
    %33 = vector.load %arg3[%c0_18, %c0_19] : memref<1x480xf32, #tpu.memory_space<vmem>>, vector<1x480xf32>
    %34 = vector.broadcast %33 : vector<1x480xf32> to vector<48x480xf32>
    %35 = arith.addf %32, %34 : vector<48x480xf32>
    %36 = vector.shape_cast %35 : vector<48x480xf32> to vector<2x24x480xf32>
    %37 = vector.extract_strided_slice %36 {offsets = [0, 0, 0], sizes = [2, 1, 480], strides = [1, 1, 1]} : vector<2x24x480xf32> to vector<2x1x480xf32>
    %38 = vector.extract_strided_slice %36 {offsets = [0, 1, 0], sizes = [2, 1, 480], strides = [1, 1, 1]} : vector<2x24x480xf32> to vector<2x1x480xf32>
    %39 = arith.maximumf %37, %38 : vector<2x1x480xf32>
    %40 = vector.extract_strided_slice %36 {offsets = [0, 2, 0], sizes = [2, 1, 480], strides = [1, 1, 1]} : vector<2x24x480xf32> to vector<2x1x480xf32>
    %41 = vector.extract_strided_slice %36 {offsets = [0, 3, 0], sizes = [2, 1, 480], strides = [1, 1, 1]} : vector<2x24x480xf32> to vector<2x1x480xf32>
    %42 = arith.maximumf %40, %41 : vector<2x1x480xf32>
    %43 = vector.extract_strided_slice %36 {offsets = [0, 4, 0], sizes = [2, 1, 480], strides = [1, 1, 1]} : vector<2x24x480xf32> to vector<2x1x480xf32>
    %44 = vector.extract_strided_slice %36 {offsets = [0, 5, 0], sizes = [2, 1, 480], strides = [1, 1, 1]} : vector<2x24x480xf32> to vector<2x1x480xf32>
    %45 = arith.maximumf %43, %44 : vector<2x1x480xf32>
    %46 = vector.extract_strided_slice %36 {offsets = [0, 6, 0], sizes = [2, 1, 480], strides = [1, 1, 1]} : vector<2x24x480xf32> to vector<2x1x480xf32>
    %47 = vector.extract_strided_slice %36 {offsets = [0, 7, 0], sizes = [2, 1, 480], strides = [1, 1, 1]} : vector<2x24x480xf32> to vector<2x1x480xf32>
    %48 = arith.maximumf %46, %47 : vector<2x1x480xf32>
    %49 = vector.extract_strided_slice %36 {offsets = [0, 8, 0], sizes = [2, 1, 480], strides = [1, 1, 1]} : vector<2x24x480xf32> to vector<2x1x480xf32>
    %50 = vector.extract_strided_slice %36 {offsets = [0, 9, 0], sizes = [2, 1, 480], strides = [1, 1, 1]} : vector<2x24x480xf32> to vector<2x1x480xf32>
    %51 = arith.maximumf %49, %50 : vector<2x1x480xf32>
    %52 = vector.extract_strided_slice %36 {offsets = [0, 10, 0], sizes = [2, 1, 480], strides = [1, 1, 1]} : vector<2x24x480xf32> to vector<2x1x480xf32>
    %53 = vector.extract_strided_slice %36 {offsets = [0, 11, 0], sizes = [2, 1, 480], strides = [1, 1, 1]} : vector<2x24x480xf32> to vector<2x1x480xf32>
    %54 = arith.maximumf %52, %53 : vector<2x1x480xf32>
    %55 = vector.extract_strided_slice %36 {offsets = [0, 12, 0], sizes = [2, 1, 480], strides = [1, 1, 1]} : vector<2x24x480xf32> to vector<2x1x480xf32>
    %56 = vector.extract_strided_slice %36 {offsets = [0, 13, 0], sizes = [2, 1, 480], strides = [1, 1, 1]} : vector<2x24x480xf32> to vector<2x1x480xf32>
    %57 = arith.maximumf %55, %56 : vector<2x1x480xf32>
    %58 = vector.extract_strided_slice %36 {offsets = [0, 14, 0], sizes = [2, 1, 480], strides = [1, 1, 1]} : vector<2x24x480xf32> to vector<2x1x480xf32>
    %59 = vector.extract_strided_slice %36 {offsets = [0, 15, 0], sizes = [2, 1, 480], strides = [1, 1, 1]} : vector<2x24x480xf32> to vector<2x1x480xf32>
    %60 = arith.maximumf %58, %59 : vector<2x1x480xf32>
    %61 = vector.extract_strided_slice %36 {offsets = [0, 16, 0], sizes = [2, 1, 480], strides = [1, 1, 1]} : vector<2x24x480xf32> to vector<2x1x480xf32>
    %62 = vector.extract_strided_slice %36 {offsets = [0, 17, 0], sizes = [2, 1, 480], strides = [1, 1, 1]} : vector<2x24x480xf32> to vector<2x1x480xf32>
    %63 = arith.maximumf %61, %62 : vector<2x1x480xf32>
    %64 = vector.extract_strided_slice %36 {offsets = [0, 18, 0], sizes = [2, 1, 480], strides = [1, 1, 1]} : vector<2x24x480xf32> to vector<2x1x480xf32>
    %65 = vector.extract_strided_slice %36 {offsets = [0, 19, 0], sizes = [2, 1, 480], strides = [1, 1, 1]} : vector<2x24x480xf32> to vector<2x1x480xf32>
    %66 = arith.maximumf %64, %65 : vector<2x1x480xf32>
    %67 = vector.extract_strided_slice %36 {offsets = [0, 20, 0], sizes = [2, 1, 480], strides = [1, 1, 1]} : vector<2x24x480xf32> to vector<2x1x480xf32>
    %68 = vector.extract_strided_slice %36 {offsets = [0, 21, 0], sizes = [2, 1, 480], strides = [1, 1, 1]} : vector<2x24x480xf32> to vector<2x1x480xf32>
    %69 = arith.maximumf %67, %68 : vector<2x1x480xf32>
    %70 = vector.extract_strided_slice %36 {offsets = [0, 22, 0], sizes = [2, 1, 480], strides = [1, 1, 1]} : vector<2x24x480xf32> to vector<2x1x480xf32>
    %71 = vector.extract_strided_slice %36 {offsets = [0, 23, 0], sizes = [2, 1, 480], strides = [1, 1, 1]} : vector<2x24x480xf32> to vector<2x1x480xf32>
    %72 = arith.maximumf %70, %71 : vector<2x1x480xf32>
    %73 = tpu.concatenate %39, %42, %45, %48, %51, %54, %57, %60, %63, %66, %69, %72 in 1 : vector<2x1x480xf32>, vector<2x1x480xf32>, vector<2x1x480xf32>, vector<2x1x480xf32>, vector<2x1x480xf32>, vector<2x1x480xf32>, vector<2x1x480xf32>, vector<2x1x480xf32>, vector<2x1x480xf32>, vector<2x1x480xf32>, vector<2x1x480xf32>, vector<2x1x480xf32> -> vector<2x12x480xf32>
    %74 = vector.extract_strided_slice %73 {offsets = [0, 0, 0], sizes = [2, 12, 20], strides = [1, 1, 1]} : vector<2x12x480xf32> to vector<2x12x20xf32>
    %75 = vector.extract_strided_slice %73 {offsets = [0, 0, 20], sizes = [2, 12, 20], strides = [1, 1, 1]} : vector<2x12x480xf32> to vector<2x12x20xf32>
    %76 = arith.maximumf %74, %75 : vector<2x12x20xf32>
    %77 = vector.extract_strided_slice %73 {offsets = [0, 0, 40], sizes = [2, 12, 20], strides = [1, 1, 1]} : vector<2x12x480xf32> to vector<2x12x20xf32>
    %78 = vector.extract_strided_slice %73 {offsets = [0, 0, 60], sizes = [2, 12, 20], strides = [1, 1, 1]} : vector<2x12x480xf32> to vector<2x12x20xf32>
    %79 = arith.maximumf %77, %78 : vector<2x12x20xf32>
    %80 = vector.extract_strided_slice %73 {offsets = [0, 0, 80], sizes = [2, 12, 20], strides = [1, 1, 1]} : vector<2x12x480xf32> to vector<2x12x20xf32>
    %81 = vector.extract_strided_slice %73 {offsets = [0, 0, 100], sizes = [2, 12, 20], strides = [1, 1, 1]} : vector<2x12x480xf32> to vector<2x12x20xf32>
    %82 = arith.maximumf %80, %81 : vector<2x12x20xf32>
    %83 = vector.extract_strided_slice %73 {offsets = [0, 0, 120], sizes = [2, 12, 20], strides = [1, 1, 1]} : vector<2x12x480xf32> to vector<2x12x20xf32>
    %84 = vector.extract_strided_slice %73 {offsets = [0, 0, 140], sizes = [2, 12, 20], strides = [1, 1, 1]} : vector<2x12x480xf32> to vector<2x12x20xf32>
    %85 = arith.maximumf %83, %84 : vector<2x12x20xf32>
    %86 = vector.extract_strided_slice %73 {offsets = [0, 0, 160], sizes = [2, 12, 20], strides = [1, 1, 1]} : vector<2x12x480xf32> to vector<2x12x20xf32>
    %87 = vector.extract_strided_slice %73 {offsets = [0, 0, 180], sizes = [2, 12, 20], strides = [1, 1, 1]} : vector<2x12x480xf32> to vector<2x12x20xf32>
    %88 = arith.maximumf %86, %87 : vector<2x12x20xf32>
    %89 = vector.extract_strided_slice %73 {offsets = [0, 0, 200], sizes = [2, 12, 20], strides = [1, 1, 1]} : vector<2x12x480xf32> to vector<2x12x20xf32>
    %90 = vector.extract_strided_slice %73 {offsets = [0, 0, 220], sizes = [2, 12, 20], strides = [1, 1, 1]} : vector<2x12x480xf32> to vector<2x12x20xf32>
    %91 = arith.maximumf %89, %90 : vector<2x12x20xf32>
    %92 = vector.extract_strided_slice %73 {offsets = [0, 0, 240], sizes = [2, 12, 20], strides = [1, 1, 1]} : vector<2x12x480xf32> to vector<2x12x20xf32>
    %93 = vector.extract_strided_slice %73 {offsets = [0, 0, 260], sizes = [2, 12, 20], strides = [1, 1, 1]} : vector<2x12x480xf32> to vector<2x12x20xf32>
    %94 = arith.maximumf %92, %93 : vector<2x12x20xf32>
    %95 = vector.extract_strided_slice %73 {offsets = [0, 0, 280], sizes = [2, 12, 20], strides = [1, 1, 1]} : vector<2x12x480xf32> to vector<2x12x20xf32>
    %96 = vector.extract_strided_slice %73 {offsets = [0, 0, 300], sizes = [2, 12, 20], strides = [1, 1, 1]} : vector<2x12x480xf32> to vector<2x12x20xf32>
    %97 = arith.maximumf %95, %96 : vector<2x12x20xf32>
    %98 = vector.extract_strided_slice %73 {offsets = [0, 0, 320], sizes = [2, 12, 20], strides = [1, 1, 1]} : vector<2x12x480xf32> to vector<2x12x20xf32>
    %99 = vector.extract_strided_slice %73 {offsets = [0, 0, 340], sizes = [2, 12, 20], strides = [1, 1, 1]} : vector<2x12x480xf32> to vector<2x12x20xf32>
    %100 = arith.maximumf %98, %99 : vector<2x12x20xf32>
    %101 = vector.extract_strided_slice %73 {offsets = [0, 0, 360], sizes = [2, 12, 20], strides = [1, 1, 1]} : vector<2x12x480xf32> to vector<2x12x20xf32>
    %102 = vector.extract_strided_slice %73 {offsets = [0, 0, 380], sizes = [2, 12, 20], strides = [1, 1, 1]} : vector<2x12x480xf32> to vector<2x12x20xf32>
    %103 = arith.maximumf %101, %102 : vector<2x12x20xf32>
    %104 = vector.extract_strided_slice %73 {offsets = [0, 0, 400], sizes = [2, 12, 20], strides = [1, 1, 1]} : vector<2x12x480xf32> to vector<2x12x20xf32>
    %105 = vector.extract_strided_slice %73 {offsets = [0, 0, 420], sizes = [2, 12, 20], strides = [1, 1, 1]} : vector<2x12x480xf32> to vector<2x12x20xf32>
    %106 = arith.maximumf %104, %105 : vector<2x12x20xf32>
    %107 = vector.extract_strided_slice %73 {offsets = [0, 0, 440], sizes = [2, 12, 20], strides = [1, 1, 1]} : vector<2x12x480xf32> to vector<2x12x20xf32>
    %108 = vector.extract_strided_slice %73 {offsets = [0, 0, 460], sizes = [2, 12, 20], strides = [1, 1, 1]} : vector<2x12x480xf32> to vector<2x12x20xf32>
    %109 = arith.maximumf %107, %108 : vector<2x12x20xf32>
    %110 = tpu.concatenate %76, %79, %82, %85, %88, %91, %94, %97, %100, %103, %106, %109 in 2 : vector<2x12x20xf32>, vector<2x12x20xf32>, vector<2x12x20xf32>, vector<2x12x20xf32>, vector<2x12x20xf32>, vector<2x12x20xf32>, vector<2x12x20xf32>, vector<2x12x20xf32>, vector<2x12x20xf32>, vector<2x12x20xf32>, vector<2x12x20xf32>, vector<2x12x20xf32> -> vector<2x12x240xf32>
    %111 = math.absf %110 : vector<2x12x240xf32>
    %cst_20 = arith.constant 1.000000e+00 : f32
    %112 = vector.broadcast %cst_20 : f32 to vector<2x12x240xf32>
    %113 = arith.addf %112, %111 : vector<2x12x240xf32>
    %114 = arith.divf %110, %113 : vector<2x12x240xf32>
    %115 = arith.truncf %114 : vector<2x12x240xf32> to vector<2x12x240xbf16>
    %cst_21 = arith.constant 0.000000e+00 : f32
    %116 = vector.broadcast %cst_21 : f32 to vector<16x256xf32>
    %117 = vector.extract_strided_slice %115 {offsets = [0, 0, 0], sizes = [2, 8, 240], strides = [1, 1, 1]} : vector<2x12x240xbf16> to vector<2x8x240xbf16>
    %118 = vector.shape_cast %117 : vector<2x8x240xbf16> to vector<16x240xbf16>
    %c0_22 = arith.constant 0 : index
    %c0_23 = arith.constant 0 : index
    %c0_24 = arith.constant 0 : index
    %119 = vector.load %arg4[%c0_22, %c0_23, %c0_24] : memref<5x240x256xbf16, #tpu.memory_space<vmem>>, vector<1x240x256xbf16>
    %120 = vector.shape_cast %119 : vector<1x240x256xbf16> to vector<240x256xbf16>
    %cst_25 = arith.constant dense<0.000000e+00> : vector<16x256xf32>
    %121 = tpu.matmul %118, %120, %cst_25 {dimension_numbers = #tpu.dot_dimension_numbers<[1], [0], [0], [1], [0, 0, 1, 1], [], []>} : vector<16x240xbf16>, vector<240x256xbf16>, vector<16x256xf32> -> vector<16x256xf32>
    %122 = arith.addf %116, %121 : vector<16x256xf32>
    %123 = vector.extract_strided_slice %115 {offsets = [0, 1, 0], sizes = [2, 8, 240], strides = [1, 1, 1]} : vector<2x12x240xbf16> to vector<2x8x240xbf16>
    %124 = vector.shape_cast %123 : vector<2x8x240xbf16> to vector<16x240xbf16>
    %c1_26 = arith.constant 1 : index
    %c0_27 = arith.constant 0 : index
    %c0_28 = arith.constant 0 : index
    %125 = vector.load %arg4[%c1_26, %c0_27, %c0_28] : memref<5x240x256xbf16, #tpu.memory_space<vmem>>, vector<1x240x256xbf16>
    %126 = vector.shape_cast %125 : vector<1x240x256xbf16> to vector<240x256xbf16>
    %cst_29 = arith.constant dense<0.000000e+00> : vector<16x256xf32>
    %127 = tpu.matmul %124, %126, %cst_29 {dimension_numbers = #tpu.dot_dimension_numbers<[1], [0], [0], [1], [0, 0, 1, 1], [], []>} : vector<16x240xbf16>, vector<240x256xbf16>, vector<16x256xf32> -> vector<16x256xf32>
    %128 = arith.addf %122, %127 : vector<16x256xf32>
    %129 = vector.extract_strided_slice %115 {offsets = [0, 2, 0], sizes = [2, 8, 240], strides = [1, 1, 1]} : vector<2x12x240xbf16> to vector<2x8x240xbf16>
    %130 = vector.shape_cast %129 : vector<2x8x240xbf16> to vector<16x240xbf16>
    %c2_30 = arith.constant 2 : index
    %c0_31 = arith.constant 0 : index
    %c0_32 = arith.constant 0 : index
    %131 = vector.load %arg4[%c2_30, %c0_31, %c0_32] : memref<5x240x256xbf16, #tpu.memory_space<vmem>>, vector<1x240x256xbf16>
    %132 = vector.shape_cast %131 : vector<1x240x256xbf16> to vector<240x256xbf16>
    %cst_33 = arith.constant dense<0.000000e+00> : vector<16x256xf32>
    %133 = tpu.matmul %130, %132, %cst_33 {dimension_numbers = #tpu.dot_dimension_numbers<[1], [0], [0], [1], [0, 0, 1, 1], [], []>} : vector<16x240xbf16>, vector<240x256xbf16>, vector<16x256xf32> -> vector<16x256xf32>
    %134 = arith.addf %128, %133 : vector<16x256xf32>
    %135 = vector.extract_strided_slice %115 {offsets = [0, 3, 0], sizes = [2, 8, 240], strides = [1, 1, 1]} : vector<2x12x240xbf16> to vector<2x8x240xbf16>
    %136 = vector.shape_cast %135 : vector<2x8x240xbf16> to vector<16x240xbf16>
    %c3_34 = arith.constant 3 : index
    %c0_35 = arith.constant 0 : index
    %c0_36 = arith.constant 0 : index
    %137 = vector.load %arg4[%c3_34, %c0_35, %c0_36] : memref<5x240x256xbf16, #tpu.memory_space<vmem>>, vector<1x240x256xbf16>
    %138 = vector.shape_cast %137 : vector<1x240x256xbf16> to vector<240x256xbf16>
    %cst_37 = arith.constant dense<0.000000e+00> : vector<16x256xf32>
    %139 = tpu.matmul %136, %138, %cst_37 {dimension_numbers = #tpu.dot_dimension_numbers<[1], [0], [0], [1], [0, 0, 1, 1], [], []>} : vector<16x240xbf16>, vector<240x256xbf16>, vector<16x256xf32> -> vector<16x256xf32>
    %140 = arith.addf %134, %139 : vector<16x256xf32>
    %141 = vector.extract_strided_slice %115 {offsets = [0, 4, 0], sizes = [2, 8, 240], strides = [1, 1, 1]} : vector<2x12x240xbf16> to vector<2x8x240xbf16>
    %142 = vector.shape_cast %141 : vector<2x8x240xbf16> to vector<16x240xbf16>
    %c4_38 = arith.constant 4 : index
    %c0_39 = arith.constant 0 : index
    %c0_40 = arith.constant 0 : index
    %143 = vector.load %arg4[%c4_38, %c0_39, %c0_40] : memref<5x240x256xbf16, #tpu.memory_space<vmem>>, vector<1x240x256xbf16>
    %144 = vector.shape_cast %143 : vector<1x240x256xbf16> to vector<240x256xbf16>
    %cst_41 = arith.constant dense<0.000000e+00> : vector<16x256xf32>
    %145 = tpu.matmul %142, %144, %cst_41 {dimension_numbers = #tpu.dot_dimension_numbers<[1], [0], [0], [1], [0, 0, 1, 1], [], []>} : vector<16x240xbf16>, vector<240x256xbf16>, vector<16x256xf32> -> vector<16x256xf32>
    %146 = arith.addf %140, %145 : vector<16x256xf32>
    %c0_42 = arith.constant 0 : index
    %c0_43 = arith.constant 0 : index
    %147 = vector.load %arg5[%c0_42, %c0_43] : memref<1x256xf32, #tpu.memory_space<vmem>>, vector<1x256xf32>
    %148 = vector.broadcast %147 : vector<1x256xf32> to vector<16x256xf32>
    %149 = arith.addf %146, %148 : vector<16x256xf32>
    %150 = vector.shape_cast %149 : vector<16x256xf32> to vector<2x8x256xf32>
    %151 = vector.extract_strided_slice %150 {offsets = [0, 0, 0], sizes = [2, 1, 256], strides = [1, 1, 1]} : vector<2x8x256xf32> to vector<2x1x256xf32>
    %152 = vector.extract_strided_slice %150 {offsets = [0, 1, 0], sizes = [2, 1, 256], strides = [1, 1, 1]} : vector<2x8x256xf32> to vector<2x1x256xf32>
    %153 = arith.maximumf %151, %152 : vector<2x1x256xf32>
    %154 = vector.extract_strided_slice %150 {offsets = [0, 2, 0], sizes = [2, 1, 256], strides = [1, 1, 1]} : vector<2x8x256xf32> to vector<2x1x256xf32>
    %155 = vector.extract_strided_slice %150 {offsets = [0, 3, 0], sizes = [2, 1, 256], strides = [1, 1, 1]} : vector<2x8x256xf32> to vector<2x1x256xf32>
    %156 = arith.maximumf %154, %155 : vector<2x1x256xf32>
    %157 = vector.extract_strided_slice %150 {offsets = [0, 4, 0], sizes = [2, 1, 256], strides = [1, 1, 1]} : vector<2x8x256xf32> to vector<2x1x256xf32>
    %158 = vector.extract_strided_slice %150 {offsets = [0, 5, 0], sizes = [2, 1, 256], strides = [1, 1, 1]} : vector<2x8x256xf32> to vector<2x1x256xf32>
    %159 = arith.maximumf %157, %158 : vector<2x1x256xf32>
    %160 = vector.extract_strided_slice %150 {offsets = [0, 6, 0], sizes = [2, 1, 256], strides = [1, 1, 1]} : vector<2x8x256xf32> to vector<2x1x256xf32>
    %161 = vector.extract_strided_slice %150 {offsets = [0, 7, 0], sizes = [2, 1, 256], strides = [1, 1, 1]} : vector<2x8x256xf32> to vector<2x1x256xf32>
    %162 = arith.maximumf %160, %161 : vector<2x1x256xf32>
    %163 = tpu.concatenate %153, %156, %159, %162 in 1 : vector<2x1x256xf32>, vector<2x1x256xf32>, vector<2x1x256xf32>, vector<2x1x256xf32> -> vector<2x4x256xf32>
    %164 = vector.extract_strided_slice %163 {offsets = [0, 0, 0], sizes = [2, 4, 32], strides = [1, 1, 1]} : vector<2x4x256xf32> to vector<2x4x32xf32>
    %165 = vector.extract_strided_slice %163 {offsets = [0, 0, 32], sizes = [2, 4, 32], strides = [1, 1, 1]} : vector<2x4x256xf32> to vector<2x4x32xf32>
    %166 = arith.maximumf %164, %165 : vector<2x4x32xf32>
    %167 = vector.extract_strided_slice %163 {offsets = [0, 0, 64], sizes = [2, 4, 32], strides = [1, 1, 1]} : vector<2x4x256xf32> to vector<2x4x32xf32>
    %168 = vector.extract_strided_slice %163 {offsets = [0, 0, 96], sizes = [2, 4, 32], strides = [1, 1, 1]} : vector<2x4x256xf32> to vector<2x4x32xf32>
    %169 = arith.maximumf %167, %168 : vector<2x4x32xf32>
    %170 = vector.extract_strided_slice %163 {offsets = [0, 0, 128], sizes = [2, 4, 32], strides = [1, 1, 1]} : vector<2x4x256xf32> to vector<2x4x32xf32>
    %171 = vector.extract_strided_slice %163 {offsets = [0, 0, 160], sizes = [2, 4, 32], strides = [1, 1, 1]} : vector<2x4x256xf32> to vector<2x4x32xf32>
    %172 = arith.maximumf %170, %171 : vector<2x4x32xf32>
    %173 = vector.extract_strided_slice %163 {offsets = [0, 0, 192], sizes = [2, 4, 32], strides = [1, 1, 1]} : vector<2x4x256xf32> to vector<2x4x32xf32>
    %174 = vector.extract_strided_slice %163 {offsets = [0, 0, 224], sizes = [2, 4, 32], strides = [1, 1, 1]} : vector<2x4x256xf32> to vector<2x4x32xf32>
    %175 = arith.maximumf %173, %174 : vector<2x4x32xf32>
    %176 = tpu.concatenate %166, %169, %172, %175 in 2 : vector<2x4x32xf32>, vector<2x4x32xf32>, vector<2x4x32xf32>, vector<2x4x32xf32> -> vector<2x4x128xf32>
    %177 = math.absf %176 : vector<2x4x128xf32>
    %cst_44 = arith.constant 1.000000e+00 : f32
    %178 = vector.broadcast %cst_44 : f32 to vector<2x4x128xf32>
    %179 = arith.addf %178, %177 : vector<2x4x128xf32>
    %180 = arith.divf %176, %179 : vector<2x4x128xf32>
    %181 = arith.truncf %180 : vector<2x4x128xf32> to vector<2x4x128xbf16>
    %cst_45 = arith.constant 0.000000e+00 : f32
    %182 = vector.broadcast %cst_45 : f32 to vector<2x32xf32>
    %c0_46 = arith.constant 0 : index
    %c0_47 = arith.constant 0 : index
    %183 = vector.load %arg7[%c0_46, %c0_47] : memref<1x32xf32, #tpu.memory_space<vmem>>, vector<1x32xf32>
    %184 = vector.broadcast %183 : vector<1x32xf32> to vector<2x32xf32>
    %185 = arith.addf %182, %184 : vector<2x32xf32>
    %186 = vector.extract_strided_slice %181 {offsets = [0, 0, 0], sizes = [2, 1, 128], strides = [1, 1, 1]} : vector<2x4x128xbf16> to vector<2x1x128xbf16>
    %187 = vector.shape_cast %186 : vector<2x1x128xbf16> to vector<2x128xbf16>
    %c0_48 = arith.constant 0 : index
    %c0_49 = arith.constant 0 : index
    %c0_50 = arith.constant 0 : index
    %188 = vector.load %arg6[%c0_48, %c0_49, %c0_50] : memref<4x128x32xbf16, #tpu.memory_space<vmem>>, vector<1x128x32xbf16>
    %189 = vector.shape_cast %188 : vector<1x128x32xbf16> to vector<128x32xbf16>
    %cst_51 = arith.constant dense<0.000000e+00> : vector<2x32xf32>
    %190 = tpu.matmul %187, %189, %cst_51 {dimension_numbers = #tpu.dot_dimension_numbers<[1], [0], [0], [1], [0, 0, 1, 1], [], []>} : vector<2x128xbf16>, vector<128x32xbf16>, vector<2x32xf32> -> vector<2x32xf32>
    %191 = arith.addf %185, %190 : vector<2x32xf32>
    %192 = vector.extract_strided_slice %181 {offsets = [0, 1, 0], sizes = [2, 1, 128], strides = [1, 1, 1]} : vector<2x4x128xbf16> to vector<2x1x128xbf16>
    %193 = vector.shape_cast %192 : vector<2x1x128xbf16> to vector<2x128xbf16>
    %c1_52 = arith.constant 1 : index
    %c0_53 = arith.constant 0 : index
    %c0_54 = arith.constant 0 : index
    %194 = vector.load %arg6[%c1_52, %c0_53, %c0_54] : memref<4x128x32xbf16, #tpu.memory_space<vmem>>, vector<1x128x32xbf16>
    %195 = vector.shape_cast %194 : vector<1x128x32xbf16> to vector<128x32xbf16>
    %cst_55 = arith.constant dense<0.000000e+00> : vector<2x32xf32>
    %196 = tpu.matmul %193, %195, %cst_55 {dimension_numbers = #tpu.dot_dimension_numbers<[1], [0], [0], [1], [0, 0, 1, 1], [], []>} : vector<2x128xbf16>, vector<128x32xbf16>, vector<2x32xf32> -> vector<2x32xf32>
    %197 = arith.addf %191, %196 : vector<2x32xf32>
    %198 = vector.extract_strided_slice %181 {offsets = [0, 2, 0], sizes = [2, 1, 128], strides = [1, 1, 1]} : vector<2x4x128xbf16> to vector<2x1x128xbf16>
    %199 = vector.shape_cast %198 : vector<2x1x128xbf16> to vector<2x128xbf16>
    %c2_56 = arith.constant 2 : index
    %c0_57 = arith.constant 0 : index
    %c0_58 = arith.constant 0 : index
    %200 = vector.load %arg6[%c2_56, %c0_57, %c0_58] : memref<4x128x32xbf16, #tpu.memory_space<vmem>>, vector<1x128x32xbf16>
    %201 = vector.shape_cast %200 : vector<1x128x32xbf16> to vector<128x32xbf16>
    %cst_59 = arith.constant dense<0.000000e+00> : vector<2x32xf32>
    %202 = tpu.matmul %199, %201, %cst_59 {dimension_numbers = #tpu.dot_dimension_numbers<[1], [0], [0], [1], [0, 0, 1, 1], [], []>} : vector<2x128xbf16>, vector<128x32xbf16>, vector<2x32xf32> -> vector<2x32xf32>
    %203 = arith.addf %197, %202 : vector<2x32xf32>
    %204 = vector.extract_strided_slice %181 {offsets = [0, 3, 0], sizes = [2, 1, 128], strides = [1, 1, 1]} : vector<2x4x128xbf16> to vector<2x1x128xbf16>
    %205 = vector.shape_cast %204 : vector<2x1x128xbf16> to vector<2x128xbf16>
    %c3_60 = arith.constant 3 : index
    %c0_61 = arith.constant 0 : index
    %c0_62 = arith.constant 0 : index
    %206 = vector.load %arg6[%c3_60, %c0_61, %c0_62] : memref<4x128x32xbf16, #tpu.memory_space<vmem>>, vector<1x128x32xbf16>
    %207 = vector.shape_cast %206 : vector<1x128x32xbf16> to vector<128x32xbf16>
    %cst_63 = arith.constant dense<0.000000e+00> : vector<2x32xf32>
    %208 = tpu.matmul %205, %207, %cst_63 {dimension_numbers = #tpu.dot_dimension_numbers<[1], [0], [0], [1], [0, 0, 1, 1], [], []>} : vector<2x128xbf16>, vector<128x32xbf16>, vector<2x32xf32> -> vector<2x32xf32>
    %209 = arith.addf %203, %208 : vector<2x32xf32>
    %210 = math.absf %209 : vector<2x32xf32>
    %cst_64 = arith.constant 1.000000e+00 : f32
    %211 = vector.broadcast %cst_64 : f32 to vector<2x32xf32>
    %212 = arith.addf %211, %210 : vector<2x32xf32>
    %213 = arith.divf %209, %212 : vector<2x32xf32>
    %c0_65 = arith.constant 0 : index
    %c0_66 = arith.constant 0 : index
    %214 = vector.load %arg8[%c0_65, %c0_66] : memref<32x10xf32, #tpu.memory_space<vmem>>, vector<32x10xf32>
    %cst_67 = arith.constant dense<0.000000e+00> : vector<2x10xf32>
    %215 = tpu.matmul %213, %214, %cst_67 {dimension_numbers = #tpu.dot_dimension_numbers<[1], [0], [0], [1], [0, 0, 1, 1], [], []>} : vector<2x32xf32>, vector<32x10xf32>, vector<2x10xf32> -> vector<2x10xf32>
    %c0_68 = arith.constant 0 : index
    %c0_69 = arith.constant 0 : index
    %216 = vector.load %arg9[%c0_68, %c0_69] : memref<1x10xf32, #tpu.memory_space<vmem>>, vector<1x10xf32>
    %217 = vector.broadcast %216 : vector<1x10xf32> to vector<2x10xf32>
    %218 = arith.addf %215, %217 : vector<2x10xf32>
    %cst_70 = arith.constant dense<0xFF800000> : vector<2xf32>
    %219 = vector.multi_reduction <maximumf>, %218, %cst_70 [1] : vector<2x10xf32> to vector<2xf32>
    %220 = vector.shape_cast %219 : vector<2xf32> to vector<2x1xf32>
    %221 = vector.broadcast %220 : vector<2x1xf32> to vector<2x10xf32>
    %222 = arith.subf %218, %221 : vector<2x10xf32>
    %223 = math.exp %222 : vector<2x10xf32>
    %cst_71 = arith.constant dense<0.000000e+00> : vector<2xf32>
    %224 = vector.multi_reduction <add>, %223, %cst_71 [1] : vector<2x10xf32> to vector<2xf32>
    %225 = vector.shape_cast %224 : vector<2xf32> to vector<2x1xf32>
    %226 = math.log %225 : vector<2x1xf32>
    %227 = arith.addf %220, %226 : vector<2x1xf32>
    %228 = vector.broadcast %227 : vector<2x1xf32> to vector<2x10xf32>
    %229 = arith.subf %218, %228 : vector<2x10xf32>
    %c0_72 = arith.constant 0 : index
    %c0_73 = arith.constant 0 : index
    %230 = vector.load %arg10[%c0_72, %c0_73] : memref<2x10xf32, #tpu.memory_space<vmem>>, vector<2x10xf32>
    tpu.vector_store %arg10[%c0_72, %c0_73], %229 {strides = array<i32>} : memref<2x10xf32, #tpu.memory_space<vmem>>, vector<2x10xf32>,
    return
  }
  func.func @transform_0(%arg0: i32) -> (i32, i32, i32) {
    %c0_i32 = arith.constant 0 : i32
    %c0_i32_0 = arith.constant 0 : i32
    %c0_i32_1 = arith.constant 0 : i32
    return %arg0, %c0_i32, %c0_i32_0 : i32, i32, i32
  }
  func.func @transform_1(%arg0: i32) -> (i32, i32, i32) {
    %c0_i32 = arith.constant 0 : i32
    %c0_i32_0 = arith.constant 0 : i32
    %c0_i32_1 = arith.constant 0 : i32
    %c0_i32_2 = arith.constant 0 : i32
    return %c0_i32, %c0_i32_0, %c0_i32_1 : i32, i32, i32
  }
  func.func @transform_2(%arg0: i32) -> (i32, i32) {
    %c0_i32 = arith.constant 0 : i32
    %c0_i32_0 = arith.constant 0 : i32
    %c0_i32_1 = arith.constant 0 : i32
    return %c0_i32, %c0_i32_0 : i32, i32
  }
  func.func @transform_3(%arg0: i32) -> (i32, i32, i32) {
    %c0_i32 = arith.constant 0 : i32
    %c0_i32_0 = arith.constant 0 : i32
    %c0_i32_1 = arith.constant 0 : i32
    %c0_i32_2 = arith.constant 0 : i32
    return %c0_i32, %c0_i32_0, %c0_i32_1 : i32, i32, i32
  }
  func.func @transform_4(%arg0: i32) -> (i32, i32) {
    %c0_i32 = arith.constant 0 : i32
    %c0_i32_0 = arith.constant 0 : i32
    %c0_i32_1 = arith.constant 0 : i32
    return %c0_i32, %c0_i32_0 : i32, i32
  }
  func.func @transform_5(%arg0: i32) -> (i32, i32, i32) {
    %c0_i32 = arith.constant 0 : i32
    %c0_i32_0 = arith.constant 0 : i32
    %c0_i32_1 = arith.constant 0 : i32
    %c0_i32_2 = arith.constant 0 : i32
    return %c0_i32, %c0_i32_0, %c0_i32_1 : i32, i32, i32
  }
  func.func @transform_6(%arg0: i32) -> (i32, i32) {
    %c0_i32 = arith.constant 0 : i32
    %c0_i32_0 = arith.constant 0 : i32
    %c0_i32_1 = arith.constant 0 : i32
    return %c0_i32, %c0_i32_0 : i32, i32
  }
  func.func @transform_7(%arg0: i32) -> (i32, i32) {
    %c0_i32 = arith.constant 0 : i32
    %c0_i32_0 = arith.constant 0 : i32
    %c0_i32_1 = arith.constant 0 : i32
    return %c0_i32, %c0_i32_0 : i32, i32
  }
  func.func @transform_8(%arg0: i32) -> (i32, i32) {
    %c0_i32 = arith.constant 0 : i32
    %c0_i32_0 = arith.constant 0 : i32
    %c0_i32_1 = arith.constant 0 : i32
    return %c0_i32, %c0_i32_0 : i32, i32
  }
  func.func @transform_9(%arg0: i32) -> (i32, i32) {
    %c0_i32 = arith.constant 0 : i32
    %c0_i32_0 = arith.constant 0 : i32
    return %arg0, %c0_i32 : i32, i32
  }
}

</mosaic_0001>

<llo_original>
// kernel: tile.13
$region0: #{tile.13}
  #allocation0 [shape = 's32[1]{0}', space=sflag, size = 0x4, scoped, tag = 'scoped memory for tile.13']
  %s0 = inlined_call_operand.vmem [shape: f32[20], index: 0, kind: input, shape index: {}]
  %s1 = inlined_call_operand.vmem [shape: f32[24,20], index: 1, kind: output, shape index: {}]
  // Predicated region
  $region2: #{tile.13} parent=0 // pred_check
    _
  $region3: #{tile.13} parent=0 // pred_check_branch
    %3 = sbr.rel (0) target = $region5
  $region4: #{tile.13} parent=0 // pred_region
    _
  $region5: #{tile.13} parent=0 // pred_fallthru
    _
  %v4 = vld [vmem:[%s0] ss:$0 sm:$0xff]
  %5 = vst [vmem:[%s1] sm:$0xff] %v4
  %s6 = scalar_lea.vmem %s1, 8
  %7 = vst [vmem:[%s6] sm:$0xff] %v4
  %s8 = scalar_lea.vmem %s1, 16
  %9 = vst [vmem:[%s8] sm:$0xff] %v4

// kernel: tile.14
$region0: #{tile.14}
  %s0 = inlined_call_operand.vmem [shape: f32[24,20], index: 0, kind: input, shape index: {}]
  %s1 = inlined_call_operand.vmem [shape: f32[1,480], index: 1, kind: output, shape index: {}]
  $region1: #{tile.14} parent=0
    #allocation0 [shape = 'u8[16384]{0}', space=vmem, size = 0x4000, scoped, tag = 'scoped mem for output reshape']
    %v2 = vld [vmem:[%s0] sm:$0x1]
    %vm3 = vcmask 162816
    %4 = vst.msk [vmem:[#allocation0] sm:$0x1] %vm3, %v2
    %s5 = scalar_lea.vmem %s0, 19
    %v6 = vld [vmem:[%s5] sm:$0x1]
    %s7 = scalar_lea.vmem %s0, 19
    %v8 = vld [vmem:[%s7] sm:$0x1]
    %vm9 = vcmask 31744
    %v10 = vsel %vm9, %v8, %v6
    %11 = vrot.lane.b32.xlu0 %v10, 124
    %v12 = vpop.permute.xlu0 %11
    %vm13 = vcmask 130048
    %s14 = scalar_lea.vmem [#allocation0], 24
    %15 = vst.msk [vmem:[%s14] sm:$0x1] %vm13, %v12
    %vm16 = vcmask 1048544
    %s17 = scalar_lea.vmem [#allocation0], 16
    %18 = vst.msk [vmem:[%s17] sm:$0x1] %vm16, %v12
    %s19 = scalar_lea.vmem %s0, 6
    %v20 = vld [vmem:[%s19] sm:$0x1]
    %s21 = scalar_lea.vmem %s0, 6
    %v22 = vld [vmem:[%s21] sm:$0x1]
    %vm23 = vcmask 64512
    %v24 = vsel %vm23, %v22, %v20
    %25 = vrot.lane.b32.xlu0 %v24, 120
    %v26 = vpop.permute.xlu0 %25
    %vm27 = vcmask 97280
    %s28 = scalar_lea.vmem [#allocation0], 8
    %29 = vst.msk [vmem:[%s28] sm:$0x1] %vm27, %v26
    %vm30 = vcmask 1048512
    %31 = vst.msk [vmem:[#allocation0] sm:$0x1] %vm30, %v26
    %s32 = scalar_lea.vmem %s0, 12
    %v33 = vld [vmem:[%s32] sm:$0x1]
    %s34 = scalar_lea.vmem %s0, 12
    %v35 = vld [vmem:[%s34] sm:$0x1]
    %vm36 = vcmask 130048
    %v37 = vsel %vm36, %v35, %v33
    %38 = vrot.lane.b32.xlu0 %v37, 112
    %v39 = vpop.permute.xlu0 %38
    %vm40 = vcmask 31744
    %s41 = scalar_lea.vmem [#allocation0], 16
    %42 = vst.msk [vmem:[%s41] sm:$0x1] %vm40, %v39
    %vm43 = vcmask 1048448
    %s44 = scalar_lea.vmem [#allocation0], 8
    %45 = vst.msk [vmem:[%s44] sm:$0x1] %vm43, %v39
    %s46 = scalar_lea.vmem %s0, 18
    %v47 = vld [vmem:[%s46] sm:$0x1]
    %48 = vrot.lane.b32.xlu0 %v47, 104
    %v49 = vpop.permute.xlu0 %48
    %vm50 = vcmask 1015616
    %s51 = scalar_lea.vmem [#allocation0], 16
    %52 = vst.msk [vmem:[%s51] sm:$0x1] %vm50, %v49
    %s53 = scalar_lea.vmem %s0, 5
    %v54 = vld [vmem:[%s53] sm:$0x1]
    %55 = vrot.lane.b32.xlu0 %v54, 100
    %v56 = vpop.permute.xlu0 %55
    %vm57 = vcmask 982816
    %58 = vst.msk [vmem:[#allocation0] sm:$0x1] %vm57, %v56
    %s59 = scalar_lea.vmem %s0, 11
    %v60 = vld [vmem:[%s59] sm:$0x1]
    %61 = vrot.lane.b32.xlu0 %v60, 92
    %v62 = vpop.permute.xlu0 %61
    %vm63 = vcmask 917216
    %s64 = scalar_lea.vmem [#allocation0], 8
    %65 = vst.msk [vmem:[%s64] sm:$0x1] %vm63, %v62
    %s66 = scalar_lea.vmem %s0, 17
    %v67 = vld [vmem:[%s66] sm:$0x1]
    %68 = vrot.lane.b32.xlu0 %v67, 84
    %v69 = vpop.permute.xlu0 %68
    %vm70 = vcmask 851616
    %s71 = scalar_lea.vmem [#allocation0], 16
    %72 = vst.msk [vmem:[%s71] sm:$0x1] %vm70, %v69
    %s73 = scalar_lea.vmem %s0, 4
    %v74 = vld [vmem:[%s73] sm:$0x1]
    %75 = vrot.lane.b32.xlu0 %v74, 80
    %v76 = vpop.permute.xlu0 %75
    %vm77 = vcmask 818816
    %78 = vst.msk [vmem:[#allocation0] sm:$0x1] %vm77, %v76
    %s79 = scalar_lea.vmem %s0, 23
    %v80 = vld [vmem:[%s79] sm:$0x1]
    %81 = vrot.lane.b32.xlu0 %v80, 76
    %v82 = vpop.permute.xlu0 %81
    %vm83 = vcmask 786016
    %s84 = scalar_lea.vmem [#allocation0], 24
    %85 = vst.msk [vmem:[%s84] sm:$0x1] %vm83, %v82
    %s86 = scalar_lea.vmem %s0, 10
    %v87 = vld [vmem:[%s86] sm:$0x1]
    %88 = vrot.lane.b32.xlu0 %v87, 72
    %v89 = vpop.permute.xlu0 %88
    %vm90 = vcmask 753216
    %s91 = scalar_lea.vmem [#allocation0], 8
    %92 = vst.msk [vmem:[%s91] sm:$0x1] %vm90, %v89
    %s93 = scalar_lea.vmem %s0, 16
    %v94 = vld [vmem:[%s93] sm:$0x1]
    %95 = vrot.lane.b32.xlu0 %v94, 64
    %v96 = vpop.permute.xlu0 %95
    %vm97 = vcmask 687616
    %s98 = scalar_lea.vmem [#allocation0], 16
    %99 = vst.msk [vmem:[%s98] sm:$0x1] %vm97, %v96
    %s100 = scalar_lea.vmem %s0, 3
    %v101 = vld [vmem:[%s100] sm:$0x1]
    %102 = vrot.lane.b32.xlu0 %v101, 60
    %v103 = vpop.permute.xlu0 %102
    %vm104 = vcmask 654816
    %105 = vst.msk [vmem:[#allocation0] sm:$0x1] %vm104, %v103
    %s106 = scalar_lea.vmem %s0, 22
    %v107 = vld [vmem:[%s106] sm:$0x1]
    %108 = vrot.lane.b32.xlu0 %v107, 56
    %v109 = vpop.permute.xlu0 %108
    %vm110 = vcmask 622016
    %s111 = scalar_lea.vmem [#allocation0], 24
    %112 = vst.msk [vmem:[%s111] sm:$0x1] %vm110, %v109
    %s113 = scalar_lea.vmem %s0, 9
    %v114 = vld [vmem:[%s113] sm:$0x1]
    %115 = vrot.lane.b32.xlu0 %v114, 52
    %v116 = vpop.permute.xlu0 %115
    %vm117 = vcmask 589216
    %s118 = scalar_lea.vmem [#allocation0], 8
    %119 = vst.msk [vmem:[%s118] sm:$0x1] %vm117, %v116
    %s120 = scalar_lea.vmem %s0, 15
    %v121 = vld [vmem:[%s120] sm:$0x1]
    %122 = vrot.lane.b32.xlu0 %v121, 44
    %v123 = vpop.permute.xlu0 %122
    %vm124 = vcmask 523616
    %s125 = scalar_lea.vmem [#allocation0], 16
    %126 = vst.msk [vmem:[%s125] sm:$0x1] %vm124, %v123
    %s127 = scalar_lea.vmem %s0, 2
    %v128 = vld [vmem:[%s127] sm:$0x1]
    %129 = vrot.lane.b32.xlu0 %v128, 40
    %v130 = vpop.permute.xlu0 %129
    %vm131 = vcmask 490816
    %132 = vst.msk [vmem:[#allocation0] sm:$0x1] %vm131, %v130
    %s133 = scalar_lea.vmem %s0, 21
    %v134 = vld [vmem:[%s133] sm:$0x1]
    %135 = vrot.lane.b32.xlu0 %v134, 36
    %v136 = vpop.permute.xlu0 %135
    %vm137 = vcmask 458016
    %s138 = scalar_lea.vmem [#allocation0], 24
    %139 = vst.msk [vmem:[%s138] sm:$0x1] %vm137, %v136
    %s140 = scalar_lea.vmem %s0, 8
    %v141 = vld [vmem:[%s140] sm:$0x1]
    %142 = vrot.lane.b32.xlu0 %v141, 32
    %v143 = vpop.permute.xlu0 %142
    %vm144 = vcmask 425216
    %s145 = scalar_lea.vmem [#allocation0], 8
    %146 = vst.msk [vmem:[%s145] sm:$0x1] %vm144, %v143
    %s147 = scalar_lea.vmem %s0, 14
    %v148 = vld [vmem:[%s147] sm:$0x1]
    %149 = vrot.lane.b32.xlu0 %v148, 24
    %v150 = vpop.permute.xlu0 %149
    %vm151 = vcmask 359616
    %s152 = scalar_lea.vmem [#allocation0], 16
    %153 = vst.msk [vmem:[%s152] sm:$0x1] %vm151, %v150
    %s154 = scalar_lea.vmem %s0, 1
    %v155 = vld [vmem:[%s154] sm:$0x1]
    %156 = vrot.lane.b32.xlu0 %v155, 20
    %v157 = vpop.permute.xlu0 %156
    %vm158 = vcmask 326816
    %159 = vst.msk [vmem:[#allocation0] sm:$0x1] %vm158, %v157
    %s160 = scalar_lea.vmem %s0, 20
    %v161 = vld [vmem:[%s160] sm:$0x1]
    %162 = vrot.lane.b32.xlu0 %v161, 16
    %v163 = vpop.permute.xlu0 %162
    %vm164 = vcmask 294016
    %s165 = scalar_lea.vmem [#allocation0], 24
    %166 = vst.msk [vmem:[%s165] sm:$0x1] %vm164, %v163
    %s167 = scalar_lea.vmem %s0, 7
    %v168 = vld [vmem:[%s167] sm:$0x1]
    %169 = vrot.lane.b32.xlu0 %v168, 12
    %v170 = vpop.permute.xlu0 %169
    %vm171 = vcmask 261216
    %s172 = scalar_lea.vmem [#allocation0], 8
    %173 = vst.msk [vmem:[%s172] sm:$0x1] %vm171, %v170
    %s174 = scalar_lea.vmem %s0, 13
    %v175 = vld [vmem:[%s174] sm:$0x1]
    %176 = vrot.lane.b32.xlu0 %v175, 4
    %v177 = vpop.permute.xlu0 %176
    %vm178 = vcmask 195616
    %s179 = scalar_lea.vmem [#allocation0], 16
    %180 = vst.msk [vmem:[%s179] sm:$0x1] %vm178, %v177
    %s182 = sshll.u32 1, 1
    %s183 = ssub.s32 %s182, 1
    %v185 = vld [vmem:[#allocation0] sm:%s183]
    %s186 = sshll.u32 1, 1
    %s187 = ssub.s32 %s186, 1
    %188 = vst [vmem:[%s1] sm:%s187] %v185
    %s189 = scalar_lea.vmem [#allocation0], 8
    %v190 = vld [vmem:[%s189] sm:%s183]
    %s191 = sshll.u32 1, 1
    %s192 = ssub.s32 %s191, 1
    %s193 = scalar_lea.vmem %s1, 1
    %194 = vst [vmem:[%s193] sm:%s192] %v190
    %s195 = scalar_lea.vmem [#allocation0], 16
    %v196 = vld [vmem:[%s195] sm:%s183]
    %s197 = sshll.u32 1, 1
    %s198 = ssub.s32 %s197, 1
    %s199 = smul.addr 1, 2
    %s200 = scalar_lea.vmem %s1, %s199
    %201 = vst [vmem:[%s200] sm:%s198] %v196
    %s202 = scalar_lea.vmem [#allocation0], 24
    %v203 = vld [vmem:[%s202] sm:%s183]
    %s204 = sshll.u32 1, 1
    %s205 = ssub.s32 %s204, 1
    %s206 = smul.addr 1, 3
    %s207 = scalar_lea.vmem %s1, %s206
    %208 = vst [vmem:[%s207] sm:%s205] %v203

// kernel: tile.18
$region0: #{tile.18}
  #allocation0 [shape = 's32[1]{0}', space=sflag, size = 0x4, scoped, tag = 'scoped memory for tile.18']
  %s0 = inlined_call_operand.vmem [shape: f32[32], index: 0, kind: input, shape index: {}]
  %s1 = inlined_call_operand.vmem [shape: f32[8,32], index: 1, kind: output, shape index: {}]
  // Predicated region
  $region2: #{tile.18} parent=0 // pred_check
    _
  $region3: #{tile.18} parent=0 // pred_check_branch
    %3 = sbr.rel (0) target = $region5
  $region4: #{tile.18} parent=0 // pred_region
    _
  $region5: #{tile.18} parent=0 // pred_fallthru
    _
  %v4 = vld [vmem:[%s0] ss:$0 sm:$0xff]
  %5 = vst [vmem:[%s1] sm:$0xff] %v4

// kernel: tile.19
$region0: #{tile.19}
  %s0 = inlined_call_operand.vmem [shape: f32[8,32], index: 0, kind: input, shape index: {}]
  %s1 = inlined_call_operand.vmem [shape: f32[1,256], index: 1, kind: output, shape index: {}]
  $region1: #{tile.19} parent=0
    #allocation0 [shape = 'u8[8192]{0}', space=vmem, size = 0x2000, scoped, tag = 'scoped mem for output reshape']
    %s2 = smov 3
    %v3 = vld [vmem:[%s0] ss:$4 sm:%s2]
    %vm4 = vcmask 261120
    %5 = vst.msk [vmem:[#allocation0] ss:$8 sm:$0x3] %vm4, %v3
    %s6 = scalar_lea.vmem %s0, 3
    %s7 = smov 3
    %v8 = vld [vmem:[%s6] ss:$4 sm:%s7]
    %9 = vrot.lane.b32.xlu0 %v8, 96
    %v10 = vpop.permute.xlu0 %9
    %vm11 = vcmask 1048320
    %12 = vst.msk [vmem:[#allocation0] ss:$8 sm:$0x3] %vm11, %v10
    %s13 = scalar_lea.vmem %s0, 2
    %s14 = smov 3
    %v15 = vld [vmem:[%s13] ss:$4 sm:%s14]
    %16 = vrot.lane.b32.xlu0 %v15, 64
    %v17 = vpop.permute.xlu0 %16
    %vm18 = vcmask 785920
    %19 = vst.msk [vmem:[#allocation0] ss:$8 sm:$0x3] %vm18, %v17
    %s20 = scalar_lea.vmem %s0, 1
    %s21 = smov 3
    %v22 = vld [vmem:[%s20] ss:$4 sm:%s21]
    %23 = vrot.lane.b32.xlu0 %v22, 32
    %v24 = vpop.permute.xlu0 %23
    %vm25 = vcmask 523520
    %26 = vst.msk [vmem:[#allocation0] ss:$8 sm:$0x3] %vm25, %v24
    %s28 = sshll.u32 1, 1
    %s29 = ssub.s32 %s28, 1
    %v31 = vld [vmem:[#allocation0] sm:%s29]
    %s32 = sshll.u32 1, 1
    %s33 = ssub.s32 %s32, 1
    %34 = vst [vmem:[%s1] sm:%s33] %v31
    %s35 = scalar_lea.vmem [#allocation0], 8
    %v36 = vld [vmem:[%s35] sm:%s29]
    %s37 = sshll.u32 1, 1
    %s38 = ssub.s32 %s37, 1
    %s39 = scalar_lea.vmem %s1, 1
    %40 = vst [vmem:[%s39] sm:%s38] %v36

// kernel: net_forward.1
$region0: #{net_forward.1}
  #allocation0 [shape = 'u32[]', space=smem, size = 0x4, offset = 0x4, fixed_abs, tag = 'smem constant byte address 0x4 - core index']
  #allocation1 [shape = 'u32[144,128]{1,0:T(1,128)}', space=vmem, size = 0x12000, scoped, tag = 'internal scratch']
  %s0 = inlined_call_operand.vmem [shape: f32[2,28,28], index: 0, kind: input, shape index: {}]
  %s1 = inlined_call_operand.vmem [shape: bf16[5,28,480], index: 1, kind: input, shape index: {}]
  %s2 = inlined_call_operand.vmem [shape: f32[1,480], index: 2, kind: input, shape index: {}]
  %s3 = inlined_call_operand.vmem [shape: bf16[5,240,256], index: 3, kind: input, shape index: {}]
  %s4 = inlined_call_operand.vmem [shape: f32[1,256], index: 4, kind: input, shape index: {}]
  %s5 = inlined_call_operand.vmem [shape: bf16[4,128,32], index: 5, kind: input, shape index: {}]
  %s6 = inlined_call_operand.vmem [shape: f32[1,32], index: 6, kind: input, shape index: {}]
  %s7 = inlined_call_operand.vmem [shape: f32[32,10], index: 7, kind: input, shape index: {}]
  %s8 = inlined_call_operand.vmem [shape: f32[1,10], index: 8, kind: input, shape index: {}]
  %s9 = inlined_call_operand.hbm [shape: f32[2,10], index: 9, kind: output, shape index: {}]
  %s10 = sld [smem:[#allocation0]]
  $region46: #{net_forward.1} parent=0
    _
  %s12 = ssub.s32 1, %s10
  %s13 = scalar_select 0, %s12, %s10
  $region1: #{net_forward.1} parent=0
    #allocation2 [shape = 'u8[1024]{0}', space=vmem, size = 0x400, scoped, tag = 'output window, operand 0, single buffered']
    #allocation3 [shape = 's32[1]{0}', space=sflag, size = 0x4, scoped, tag = 'scoped memory for net_forward.1']
    %14 = vsyncpa [#allocation3], 0
    // Predicated region
    $region2: #{net_forward.1} parent=1 // pred_check
      _
    $region3: #{net_forward.1} parent=1 // pred_check_branch
      %16 = sbr.rel (0) target = $region5
    $region4: #{net_forward.1} parent=1 // pred_region
      _
    $region5: #{net_forward.1} parent=1 // pred_fallthru
      _
    // Predicated region
    $region6: #{net_forward.1} parent=1 // pred_check
      _
    $region7: #{net_forward.1} parent=1 // pred_check_branch
      %18 = sbr.rel (0) target = $region9
    $region8: #{net_forward.1} parent=1 // pred_region
      _
    $region9: #{net_forward.1} parent=1 // pred_fallthru
      _
    // Predicated region
    $region10: #{net_forward.1} parent=1 // pred_check
      _
    $region11: #{net_forward.1} parent=1 // pred_check_branch
      %20 = sbr.rel (0) target = $region13
    $region12: #{net_forward.1} parent=1 // pred_region
      _
    $region13: #{net_forward.1} parent=1 // pred_fallthru
      _
    // Predicated region
    $region14: #{net_forward.1} parent=1 // pred_check
      _
    $region15: #{net_forward.1} parent=1 // pred_check_branch
      %22 = sbr.rel (0) target = $region17
    $region16: #{net_forward.1} parent=1 // pred_region
      _
    $region17: #{net_forward.1} parent=1 // pred_fallthru
      _
    // Predicated region
    $region18: #{net_forward.1} parent=1 // pred_check
      _
    $region19: #{net_forward.1} parent=1 // pred_check_branch
      %24 = sbr.rel (0) target = $region21
    $region20: #{net_forward.1} parent=1 // pred_region
      _
    $region21: #{net_forward.1} parent=1 // pred_fallthru
      _
    // Predicated region
    $region22: #{net_forward.1} parent=1 // pred_check
      _
    $region23: #{net_forward.1} parent=1 // pred_check_branch
      %26 = sbr.rel (0) target = $region25
    $region24: #{net_forward.1} parent=1 // pred_region
      _
    $region25: #{net_forward.1} parent=1 // pred_fallthru
      _
    // Predicated region
    $region26: #{net_forward.1} parent=1 // pred_check
      _
    $region27: #{net_forward.1} parent=1 // pred_check_branch
      %28 = sbr.rel (0) target = $region29
    $region28: #{net_forward.1} parent=1 // pred_region
      _
    $region29: #{net_forward.1} parent=1 // pred_fallthru
      _
    // Predicated region
    $region30: #{net_forward.1} parent=1 // pred_check
      _
    $region31: #{net_forward.1} parent=1 // pred_check_branch
      %30 = sbr.rel (0) target = $region33
    $region32: #{net_forward.1} parent=1 // pred_region
      _
    $region33: #{net_forward.1} parent=1 // pred_fallthru
      _
    // Predicated region
    $region34: #{net_forward.1} parent=1 // pred_check
      _
    $region35: #{net_forward.1} parent=1 // pred_check_branch
      %32 = sbr.rel (0) target = $region37
    $region36: #{net_forward.1} parent=1 // pred_region
      _
    $region37: #{net_forward.1} parent=1 // pred_fallthru
      _
    %v34 = vld [vmem:[%s0] sm:$0xff]
    %v35 = vld [vmem:[%s0 + $0x8] sm:$0xff]
    %v36 = vld [vmem:[%s0 + $0x10] sm:$0xff]
    %v37 = vld [vmem:[%s0 + $0x18] sm:$0xf]
    %v38 = vld [vmem:[%s0 + $0x20] sm:$0xff]
    %v39 = vld [vmem:[%s0 + $0x28] sm:$0xff]
    %v40 = vld [vmem:[%s0 + $0x30] sm:$0xff]
    %v41 = vld [vmem:[%s0 + $0x38] sm:$0xf]
    %v42 = vpack.c.bf16 %v35, %v34
    %v43 = vpack.c.bf16 %v37, %v36
    %v44 = vpack.c.bf16 %v39, %v38
    %v45 = vpack.c.bf16 %v41, %v40
    %v50 = vunpack.c.l.b16 %v42
    %v51 = vunpack.c.h.b16 %v42
    %v52 = vunpack.c.l.b16 %v43
    %v53 = vunpack.c.l.b16 %v44
    %v54 = vunpack.c.h.b16 %v44
    %v55 = vunpack.c.l.b16 %v45
    %v56 = vld [vmem:[%s1] sm:$0xff]
    %v57 = vld [vmem:[%s1 + $0x8] sm:$0xff]
    %v58 = vld [vmem:[%s1 + $0x10] sm:$0xff]
    %v59 = vld [vmem:[%s1 + $0x18] sm:$0xff]
    %v60 = vld [vmem:[%s1 + $0x20] sm:$0xff]
    %v61 = vld [vmem:[%s1 + $0x28] sm:$0xff]
    %v62 = vld [vmem:[%s1 + $0x30] sm:$0x33]
    %v63 = vld [vmem:[%s1 + $0x38] sm:$0x33]
    %v64 = vunpack.c.h.b16 %v43
    %v65 = vunpack.c.h.b16 %v45
    %v66 = vpack.c.b16 %v50, %v50
    %v67 = vpack.c.b16 %v51, %v51
    %v68 = vpack.c.b16 %v52, %v52
    %v69 = vpack.c.b16 %v64, %v64
    %v70 = vpack.c.b16 %v53, %v53
    %v71 = vpack.c.b16 %v54, %v54
    %v72 = vpack.c.b16 %v55, %v55
    %v73 = vpack.c.b16 %v65, %v65
    %vm74 = vsmask.f32 3328
    %vm75 = vsmask.f32 7440
    %vm76 = vmor %vm74, %vm75
    %v78 = vshrl.u32 %v66, 16
    %v80 = vrot.slane %v78, 4
    %v81 = vshll.u32 %v66, 16
    %v83 = vrot.slane %v81, 5
    %v84 = vor.u32 %v80, %v83
    %v85 = vrot.slane %v84, 4
    %v87 = vshll.u32 %v67, 16
    %v89 = vrot.slane %v87, 5
    %v90 = vsel %vm76, %v85, %v89
    %v91 = vshrl.u32 %v67, 16
    %v93 = vrot.slane %v91, 4
    %v94 = vor.u32 %v93, %v89
    %v95 = vrot.slane %v94, 4
    %v97 = vshll.u32 %v68, 16
    %v99 = vrot.slane %v97, 5
    %v100 = vsel %vm76, %v95, %v99
    %v101 = vshrl.u32 %v68, 16
    %v103 = vrot.slane %v101, 4
    %v104 = vor.u32 %v103, %v99
    %v105 = vrot.slane %v104, 4
    %v107 = vshll.u32 %v69, 16
    %v109 = vrot.slane %v107, 5
    %v110 = vsel %vm76, %v105, %v109
    %v112 = vshrl.u32 %v70, 16
    %v114 = vrot.slane %v112, 4
    %v115 = vshll.u32 %v70, 16
    %v117 = vrot.slane %v115, 5
    %v118 = vor.u32 %v114, %v117
    %v119 = vrot.slane %v118, 4
    %v121 = vshll.u32 %v71, 16
    %v123 = vrot.slane %v121, 5
    %v124 = vsel %vm76, %v119, %v123
    %v125 = vshrl.u32 %v71, 16
    %v127 = vrot.slane %v125, 4
    %v128 = vor.u32 %v127, %v123
    %v129 = vrot.slane %v128, 4
    %v131 = vshll.u32 %v72, 16
    %v133 = vrot.slane %v131, 5
    %v134 = vsel %vm76, %v129, %v133
    %v135 = vshrl.u32 %v72, 16
    %v137 = vrot.slane %v135, 4
    %v138 = vor.u32 %v137, %v133
    %v139 = vrot.slane %v138, 4
    %v141 = vshll.u32 %v73, 16
    %v143 = vrot.slane %v141, 5
    %v144 = vsel %vm76, %v139, %v143
    %s145 = scalar_lea.vmem %s1, 64
    %v146 = vld [vmem:[%s145] sm:$0xff]
    %v147 = vld [vmem:[%s145 + $0x8] sm:$0xff]
    %v148 = vld [vmem:[%s145 + $0x10] sm:$0xff]
    %v149 = vld [vmem:[%s145 + $0x18] sm:$0xff]
    %v150 = vld [vmem:[%s145 + $0x20] sm:$0xff]
    %v151 = vld [vmem:[%s145 + $0x28] sm:$0xff]
    %v152 = vld [vmem:[%s145 + $0x30] sm:$0x33]
    %v153 = vld [vmem:[%s145 + $0x38] sm:$0x33]
    %v154 = vunpack.c.l.b16 %v90
    %v155 = vunpack.c.l.b16 %v100
    %v156 = vunpack.c.l.b16 %v110
    %v157 = vunpack.c.l.b16 %v124
    %v158 = vunpack.c.l.b16 %v134
    %v159 = vunpack.c.l.b16 %v144
    %v160 = vpack.c.b16 %v155, %v154
    %v161 = vpack.c.b16 %v157, %v156
    %v162 = vpack.c.b16 %v159, %v158
    %v171 = vunpack.c.l.b16 %v146
    %v172 = vunpack.c.h.b16 %v146
    %v173 = vunpack.c.l.b16 %v147
    %v174 = vunpack.c.h.b16 %v147
    %v175 = vunpack.c.l.b16 %v148
    %v176 = vunpack.c.h.b16 %v148
    %v177 = vunpack.c.l.b16 %v149
    %v178 = vunpack.c.h.b16 %v149
    %v179 = vunpack.c.l.b16 %v150
    %v180 = vunpack.c.h.b16 %v150
    %v181 = vunpack.c.l.b16 %v151
    %v182 = vunpack.c.h.b16 %v151
    %v183 = vunpack.c.l.b16 %v152
    %v184 = vunpack.c.h.b16 %v152
    %v185 = vunpack.c.l.b16 %v153
    %v186 = vunpack.c.h.b16 %v153
    %v187 = vpack.c.b16 %v175, %v171
    %v188 = vpack.c.b16 %v176, %v172
    %v189 = vpack.c.b16 %v177, %v173
    %v190 = vpack.c.b16 %v178, %v174
    %v191 = vpack.c.b16 %v183, %v179
    %v192 = vpack.c.b16 %v184, %v180
    %v193 = vpack.c.b16 %v185, %v181
    %v194 = vpack.c.b16 %v186, %v182
    %vm199 = vcmask 228352
    %v201 = vsel %vm199, %v160, 0
    %v204 = vsel %vm199, %v161, 0
    %v207 = vsel %vm199, %v162, 0
    %vm209 = vcmask 1045504
    %v211 = vsel %vm209, %v191, 0
    %v214 = vsel %vm209, %v192, 0
    %v217 = vsel %vm209, %v193, 0
    %v220 = vsel %vm209, %v194, 0
    %222 = vmatprep.subr.bf16.mxu0 0
    %223 = vmatpush1.bf16.msra.mxu0 0
    %224 = vmatprep.subr.bf16.mxu0 0
    %225 = vmatpush1.bf16.msra.mxu0 0
    %226 = vmatprep.subr.bf16.mxu0 0
    %227 = vmatpush1.bf16.msra.mxu0 0
    %228 = vmatprep.subr.bf16.mxu0 0
    %229 = vmatpush1.bf16.msra.mxu0 0
    %230 = vmatprep.subr.bf16.mxu0 0
    %231 = vmatpush1.bf16.msra.mxu0 0
    %232 = vmatprep.subr.bf16.mxu0 0
    %233 = vmatpush1.bf16.msra.mxu0 0
    %234 = vmatprep.subr.bf16.mxu0 %v214
    %235 = vmatpush1.bf16.msra.mxu0 %v211
    %236 = vmatprep.subr.bf16.mxu0 %v188
    %237 = vmatpush1.bf16.msra.mxu0 %v187
    %238 = vmatprep.subr.bf16.mxu0 0
    %239 = vmatpush2.bf16.msra.mxu0 0
    %240 = vmatprep.subr.bf16.mxu0 0
    %241 = vmatpush2.bf16.msra.mxu0 0
    %242 = vmatprep.subr.bf16.mxu0 0
    %243 = vmatpush2.bf16.msra.mxu0 0
    %244 = vmatprep.subr.bf16.mxu0 0
    %245 = vmatpush2.bf16.msra.mxu0 0
    %246 = vmatprep.subr.bf16.mxu0 0
    %247 = vmatpush2.bf16.msra.mxu0 0
    %248 = vmatprep.subr.bf16.mxu0 0
    %249 = vmatpush2.bf16.msra.mxu0 0
    %250 = vmatprep.subr.bf16.mxu0 0
    %251 = vmatpush2.bf16.msra.mxu0 0
    %252 = vmatprep.subr.bf16.mxu0 0
    %253 = vmatpush2.bf16.msra.mxu0 0
    %254 = vmatprep.mubr.bf16.mxu0 0
    %255 = vmatmul.mubr.bf16.gmra.mxu0 %v201
    %v256 = vpop.f32.mrf.mxu0
    %v257 = vadd.f32 0.0, %v256
    %v258 = vpop.f32.mrf.mxu0
    %v259 = vadd.f32 0.0, %v258
    %v260 = vpop.f32.mrf.mxu0
    %v261 = vadd.f32 0.0, %v260
    %v262 = vpop.f32.mrf.mxu0
    %v263 = vadd.f32 0.0, %v262
    %264 = vmatprep.mubr.bf16.mxu0 0
    %265 = vmatmul.mubr.bf16.gmra.mxu0 %v204
    %v266 = vpop.f32.mrf.mxu0
    %v267 = vadd.f32 0.0, %v266
    %v268 = vpop.f32.mrf.mxu0
    %v269 = vadd.f32 0.0, %v268
    %v270 = vpop.f32.mrf.mxu0
    %v271 = vadd.f32 0.0, %v270
    %v272 = vpop.f32.mrf.mxu0
    %v273 = vadd.f32 0.0, %v272
    %274 = vmatprep.mubr.bf16.mxu0 0
    %275 = vmatmul.mubr.bf16.gmra.mxu0 %v207
    %v276 = vpop.f32.mrf.mxu0
    %v277 = vadd.f32 0.0, %v276
    %v278 = vpop.f32.mrf.mxu0
    %v279 = vadd.f32 0.0, %v278
    %v280 = vpop.f32.mrf.mxu0
    %v281 = vadd.f32 0.0, %v280
    %v282 = vpop.f32.mrf.mxu0
    %v283 = vadd.f32 0.0, %v282
    %284 = vdwg.mxu0
    %285 = vmatprep.subr.bf16.mxu0 0
    %286 = vmatpush1.bf16.msra.mxu0 0
    %287 = vmatprep.subr.bf16.mxu0 0
    %288 = vmatpush1.bf16.msra.mxu0 0
    %289 = vmatprep.subr.bf16.mxu0 0
    %290 = vmatpush1.bf16.msra.mxu0 0
    %291 = vmatprep.subr.bf16.mxu0 0
    %292 = vmatpush1.bf16.msra.mxu0 0
    %293 = vmatprep.subr.bf16.mxu0 0
    %294 = vmatpush1.bf16.msra.mxu0 0
    %295 = vmatprep.subr.bf16.mxu0 0
    %296 = vmatpush1.bf16.msra.mxu0 0
    %297 = vmatprep.subr.bf16.mxu0 %v220
    %298 = vmatpush1.bf16.msra.mxu0 %v217
    %299 = vmatprep.subr.bf16.mxu0 %v190
    %300 = vmatpush1.bf16.msra.mxu0 %v189
    %301 = vmatprep.subr.bf16.mxu0 0
    %302 = vmatpush2.bf16.msra.mxu0 0
    %303 = vmatprep.subr.bf16.mxu0 0
    %304 = vmatpush2.bf16.msra.mxu0 0
    %305 = vmatprep.subr.bf16.mxu0 0
    %306 = vmatpush2.bf16.msra.mxu0 0
    %307 = vmatprep.subr.bf16.mxu0 0
    %308 = vmatpush2.bf16.msra.mxu0 0
    %309 = vmatprep.subr.bf16.mxu0 0
    %310 = vmatpush2.bf16.msra.mxu0 0
    %311 = vmatprep.subr.bf16.mxu0 0
    %312 = vmatpush2.bf16.msra.mxu0 0
    %313 = vmatprep.subr.bf16.mxu0 0
    %314 = vmatpush2.bf16.msra.mxu0 0
    %315 = vmatprep.subr.bf16.mxu0 0
    %316 = vmatpush2.bf16.msra.mxu0 0
    %317 = vmatprep.mubr.bf16.mxu0 0
    %318 = vmatmul.mubr.bf16.gmra.mxu0 %v201
    %v319 = vpop.f32.mrf.mxu0
    %v320 = vadd.f32 0.0, %v319
    %v321 = vpop.f32.mrf.mxu0
    %v322 = vadd.f32 0.0, %v321
    %v323 = vpop.f32.mrf.mxu0
    %v324 = vadd.f32 0.0, %v323
    %v325 = vpop.f32.mrf.mxu0
    %v326 = vadd.f32 0.0, %v325
    %327 = vmatprep.mubr.bf16.mxu0 0
    %328 = vmatmul.mubr.bf16.gmra.mxu0 %v204
    %v329 = vpop.f32.mrf.mxu0
    %v330 = vadd.f32 0.0, %v329
    %v331 = vpop.f32.mrf.mxu0
    %v332 = vadd.f32 0.0, %v331
    %v333 = vpop.f32.mrf.mxu0
    %v334 = vadd.f32 0.0, %v333
    %v335 = vpop.f32.mrf.mxu0
    %v336 = vadd.f32 0.0, %v335
    %337 = vmatprep.mubr.bf16.mxu0 0
    %338 = vmatmul.mubr.bf16.gmra.mxu0 %v207
    %v339 = vpop.f32.mrf.mxu0
    %v340 = vadd.f32 0.0, %v339
    %v341 = vpop.f32.mrf.mxu0
    %v342 = vadd.f32 0.0, %v341
    %v343 = vpop.f32.mrf.mxu0
    %v344 = vadd.f32 0.0, %v343
    %v345 = vpop.f32.mrf.mxu0
    %v346 = vadd.f32 0.0, %v345
    %347 = vdwg.mxu0
    %v348 = vpack.c.b16 %v51, %v50
    %v349 = vpack.c.b16 %v53, %v52
    %v350 = vpack.c.b16 %v55, %v54
    %v359 = vunpack.c.l.b16 %v56
    %v360 = vunpack.c.h.b16 %v56
    %v361 = vunpack.c.l.b16 %v57
    %v362 = vunpack.c.h.b16 %v57
    %v363 = vunpack.c.l.b16 %v58
    %v364 = vunpack.c.h.b16 %v58
    %v365 = vunpack.c.l.b16 %v59
    %v366 = vunpack.c.h.b16 %v59
    %v367 = vunpack.c.l.b16 %v60
    %v368 = vunpack.c.h.b16 %v60
    %v369 = vunpack.c.l.b16 %v61
    %v370 = vunpack.c.h.b16 %v61
    %v371 = vunpack.c.l.b16 %v62
    %v372 = vunpack.c.h.b16 %v62
    %v373 = vunpack.c.l.b16 %v63
    %v374 = vunpack.c.h.b16 %v63
    %v375 = vpack.c.b16 %v363, %v359
    %v376 = vpack.c.b16 %v364, %v360
    %v377 = vpack.c.b16 %v365, %v361
    %v378 = vpack.c.b16 %v366, %v362
    %v379 = vpack.c.b16 %v371, %v367
    %v380 = vpack.c.b16 %v372, %v368
    %v381 = vpack.c.b16 %v373, %v369
    %v382 = vpack.c.b16 %v374, %v370
    %v388 = vsel %vm199, %v348, 0
    %v391 = vsel %vm199, %v349, 0
    %v394 = vsel %vm199, %v350, 0
    %v397 = vsel %vm209, %v379, 0
    %v400 = vsel %vm209, %v380, 0
    %v403 = vsel %vm209, %v381, 0
    %v406 = vsel %vm209, %v382, 0
    %408 = vmatprep.subr.bf16.mxu0 0
    %409 = vmatpush1.bf16.msra.mxu0 0
    %410 = vmatprep.subr.bf16.mxu0 0
    %411 = vmatpush1.bf16.msra.mxu0 0
    %412 = vmatprep.subr.bf16.mxu0 0
    %413 = vmatpush1.bf16.msra.mxu0 0
    %414 = vmatprep.subr.bf16.mxu0 0
    %415 = vmatpush1.bf16.msra.mxu0 0
    %416 = vmatprep.subr.bf16.mxu0 0
    %417 = vmatpush1.bf16.msra.mxu0 0
    %418 = vmatprep.subr.bf16.mxu0 0
    %419 = vmatpush1.bf16.msra.mxu0 0
    %420 = vmatprep.subr.bf16.mxu0 %v400
    %421 = vmatpush1.bf16.msra.mxu0 %v397
    %422 = vmatprep.subr.bf16.mxu0 %v376
    %423 = vmatpush1.bf16.msra.mxu0 %v375
    %424 = vmatprep.subr.bf16.mxu0 0
    %425 = vmatpush2.bf16.msra.mxu0 0
    %426 = vmatprep.subr.bf16.mxu0 0
    %427 = vmatpush2.bf16.msra.mxu0 0
    %428 = vmatprep.subr.bf16.mxu0 0
    %429 = vmatpush2.bf16.msra.mxu0 0
    %430 = vmatprep.subr.bf16.mxu0 0
    %431 = vmatpush2.bf16.msra.mxu0 0
    %432 = vmatprep.subr.bf16.mxu0 0
    %433 = vmatpush2.bf16.msra.mxu0 0
    %434 = vmatprep.subr.bf16.mxu0 0
    %435 = vmatpush2.bf16.msra.mxu0 0
    %436 = vmatprep.subr.bf16.mxu0 0
    %437 = vmatpush2.bf16.msra.mxu0 0
    %438 = vmatprep.subr.bf16.mxu0 0
    %439 = vmatpush2.bf16.msra.mxu0 0
    %440 = vmatprep.mubr.bf16.mxu0 0
    %441 = vmatmul.mubr.bf16.gmra.mxu0 %v388
    %v442 = vpop.f32.mrf.mxu0
    %v443 = vadd.f32 %v257, %v442
    %v444 = vpop.f32.mrf.mxu0
    %v445 = vadd.f32 %v259, %v444
    %v446 = vpop.f32.mrf.mxu0
    %v447 = vadd.f32 %v261, %v446
    %v448 = vpop.f32.mrf.mxu0
    %v449 = vadd.f32 %v263, %v448
    %450 = vmatprep.mubr.bf16.mxu0 0
    %451 = vmatmul.mubr.bf16.gmra.mxu0 %v391
    %v452 = vpop.f32.mrf.mxu0
    %v453 = vadd.f32 %v267, %v452
    %v454 = vpop.f32.mrf.mxu0
    %v455 = vadd.f32 %v269, %v454
    %v456 = vpop.f32.mrf.mxu0
    %v457 = vadd.f32 %v271, %v456
    %v458 = vpop.f32.mrf.mxu0
    %v459 = vadd.f32 %v273, %v458
    %460 = vmatprep.mubr.bf16.mxu0 0
    %461 = vmatmul.mubr.bf16.gmra.mxu0 %v394
    %v462 = vpop.f32.mrf.mxu0
    %v463 = vadd.f32 %v277, %v462
    %v464 = vpop.f32.mrf.mxu0
    %v465 = vadd.f32 %v279, %v464
    %v466 = vpop.f32.mrf.mxu0
    %v467 = vadd.f32 %v281, %v466
    %v468 = vpop.f32.mrf.mxu0
    %v469 = vadd.f32 %v283, %v468
    %470 = vdwg.mxu0
    %471 = vmatprep.subr.bf16.mxu0 0
    %472 = vmatpush1.bf16.msra.mxu0 0
    %473 = vmatprep.subr.bf16.mxu0 0
    %474 = vmatpush1.bf16.msra.mxu0 0
    %475 = vmatprep.subr.bf16.mxu0 0
    %476 = vmatpush1.bf16.msra.mxu0 0
    %477 = vmatprep.subr.bf16.mxu0 0
    %478 = vmatpush1.bf16.msra.mxu0 0
    %479 = vmatprep.subr.bf16.mxu0 0
    %480 = vmatpush1.bf16.msra.mxu0 0
    %481 = vmatprep.subr.bf16.mxu0 0
    %482 = vmatpush1.bf16.msra.mxu0 0
    %483 = vmatprep.subr.bf16.mxu0 %v406
    %484 = vmatpush1.bf16.msra.mxu0 %v403
    %485 = vmatprep.subr.bf16.mxu0 %v378
    %486 = vmatpush1.bf16.msra.mxu0 %v377
    %487 = vmatprep.subr.bf16.mxu0 0
    %488 = vmatpush2.bf16.msra.mxu0 0
    %489 = vmatprep.subr.bf16.mxu0 0
    %490 = vmatpush2.bf16.msra.mxu0 0
    %491 = vmatprep.subr.bf16.mxu0 0
    %492 = vmatpush2.bf16.msra.mxu0 0
    %493 = vmatprep.subr.bf16.mxu0 0
    %494 = vmatpush2.bf16.msra.mxu0 0
    %495 = vmatprep.subr.bf16.mxu0 0
    %496 = vmatpush2.bf16.msra.mxu0 0
    %497 = vmatprep.subr.bf16.mxu0 0
    %498 = vmatpush2.bf16.msra.mxu0 0
    %499 = vmatprep.subr.bf16.mxu0 0
    %500 = vmatpush2.bf16.msra.mxu0 0
    %501 = vmatprep.subr.bf16.mxu0 0
    %502 = vmatpush2.bf16.msra.mxu0 0
    %503 = vmatprep.mubr.bf16.mxu0 0
    %504 = vmatmul.mubr.bf16.gmra.mxu0 %v388
    %v505 = vpop.f32.mrf.mxu0
    %v506 = vadd.f32 %v320, %v505
    %v507 = vpop.f32.mrf.mxu0
    %v508 = vadd.f32 %v322, %v507
    %v509 = vpop.f32.mrf.mxu0
    %v510 = vadd.f32 %v324, %v509
    %v511 = vpop.f32.mrf.mxu0
    %v512 = vadd.f32 %v326, %v511
    %513 = vmatprep.mubr.bf16.mxu0 0
    %514 = vmatmul.mubr.bf16.gmra.mxu0 %v391
    %v515 = vpop.f32.mrf.mxu0
    %v516 = vadd.f32 %v330, %v515
    %v517 = vpop.f32.mrf.mxu0
    %v518 = vadd.f32 %v332, %v517
    %v519 = vpop.f32.mrf.mxu0
    %v520 = vadd.f32 %v334, %v519
    %v521 = vpop.f32.mrf.mxu0
    %v522 = vadd.f32 %v336, %v521
    %523 = vmatprep.mubr.bf16.mxu0 0
    %524 = vmatmul.mubr.bf16.gmra.mxu0 %v394
    %v525 = vpop.f32.mrf.mxu0
    %v526 = vadd.f32 %v340, %v525
    %v527 = vpop.f32.mrf.mxu0
    %v528 = vadd.f32 %v342, %v527
    %v529 = vpop.f32.mrf.mxu0
    %v530 = vadd.f32 %v344, %v529
    %v531 = vpop.f32.mrf.mxu0
    %v532 = vadd.f32 %v346, %v531
    %533 = vdwg.mxu0
    %vm534 = vcmask 1042432
    %vm535 = vcmask 1046532
    %vm536 = vmor %vm534, %vm535
    %v537 = vrot.slane %v66, 5
    %v538 = vrot.slane %v537, 4
    %v539 = vrot.slane %v67, 5
    %v540 = vsel %vm536, %v538, %v539
    %v541 = vrot.slane %v539, 4
    %v542 = vrot.slane %v68, 5
    %v543 = vsel %vm536, %v541, %v542
    %v544 = vrot.slane %v542, 4
    %v545 = vrot.slane %v69, 5
    %v546 = vsel %vm536, %v544, %v545
    %v547 = vrot.slane %v70, 5
    %v548 = vrot.slane %v547, 4
    %v549 = vrot.slane %v71, 5
    %v550 = vsel %vm536, %v548, %v549
    %v551 = vrot.slane %v549, 4
    %v552 = vrot.slane %v72, 5
    %v553 = vsel %vm536, %v551, %v552
    %v554 = vrot.slane %v552, 4
    %v555 = vrot.slane %v73, 5
    %v556 = vsel %vm536, %v554, %v555
    %s557 = scalar_lea.vmem %s1, 128
    %v558 = vld [vmem:[%s557] sm:$0xff]
    %v559 = vld [vmem:[%s557 + $0x8] sm:$0xff]
    %v560 = vld [vmem:[%s557 + $0x10] sm:$0xff]
    %v561 = vld [vmem:[%s557 + $0x18] sm:$0xff]
    %v562 = vld [vmem:[%s557 + $0x20] sm:$0xff]
    %v563 = vld [vmem:[%s557 + $0x28] sm:$0xff]
    %v564 = vld [vmem:[%s557 + $0x30] sm:$0x33]
    %v565 = vld [vmem:[%s557 + $0x38] sm:$0x33]
    %v566 = vunpack.c.l.b16 %v540
    %v567 = vunpack.c.l.b16 %v543
    %v568 = vunpack.c.l.b16 %v546
    %v569 = vunpack.c.l.b16 %v550
    %v570 = vunpack.c.l.b16 %v553
    %v571 = vunpack.c.l.b16 %v556
    %v572 = vpack.c.b16 %v567, %v566
    %v573 = vpack.c.b16 %v569, %v568
    %v574 = vpack.c.b16 %v571, %v570
    %v583 = vunpack.c.l.b16 %v558
    %v584 = vunpack.c.h.b16 %v558
    %v585 = vunpack.c.l.b16 %v559
    %v586 = vunpack.c.h.b16 %v559
    %v587 = vunpack.c.l.b16 %v560
    %v588 = vunpack.c.h.b16 %v560
    %v589 = vunpack.c.l.b16 %v561
    %v590 = vunpack.c.h.b16 %v561
    %v591 = vunpack.c.l.b16 %v562
    %v592 = vunpack.c.h.b16 %v562
    %v593 = vunpack.c.l.b16 %v563
    %v594 = vunpack.c.h.b16 %v563
    %v595 = vunpack.c.l.b16 %v564
    %v596 = vunpack.c.h.b16 %v564
    %v597 = vunpack.c.l.b16 %v565
    %v598 = vunpack.c.h.b16 %v565
    %v599 = vpack.c.b16 %v587, %v583
    %v600 = vpack.c.b16 %v588, %v584
    %v601 = vpack.c.b16 %v589, %v585
    %v602 = vpack.c.b16 %v590, %v586
    %v603 = vpack.c.b16 %v595, %v591
    %v604 = vpack.c.b16 %v596, %v592
    %v605 = vpack.c.b16 %v597, %v593
    %v606 = vpack.c.b16 %v598, %v594
    %v612 = vsel %vm199, %v572, 0
    %v615 = vsel %vm199, %v573, 0
    %v618 = vsel %vm199, %v574, 0
    %v621 = vsel %vm209, %v603, 0
    %v624 = vsel %vm209, %v604, 0
    %v627 = vsel %vm209, %v605, 0
    %v630 = vsel %vm209, %v606, 0
    %632 = vmatprep.subr.bf16.mxu0 0
    %633 = vmatpush1.bf16.msra.mxu0 0
    %634 = vmatprep.subr.bf16.mxu0 0
    %635 = vmatpush1.bf16.msra.mxu0 0
    %636 = vmatprep.subr.bf16.mxu0 0
    %637 = vmatpush1.bf16.msra.mxu0 0
    %638 = vmatprep.subr.bf16.mxu0 0
    %639 = vmatpush1.bf16.msra.mxu0 0
    %640 = vmatprep.subr.bf16.mxu0 0
    %641 = vmatpush1.bf16.msra.mxu0 0
    %642 = vmatprep.subr.bf16.mxu0 0
    %643 = vmatpush1.bf16.msra.mxu0 0
    %644 = vmatprep.subr.bf16.mxu0 %v624
    %645 = vmatpush1.bf16.msra.mxu0 %v621
    %646 = vmatprep.subr.bf16.mxu0 %v600
    %647 = vmatpush1.bf16.msra.mxu0 %v599
    %648 = vmatprep.subr.bf16.mxu0 0
    %649 = vmatpush2.bf16.msra.mxu0 0
    %650 = vmatprep.subr.bf16.mxu0 0
    %651 = vmatpush2.bf16.msra.mxu0 0
    %652 = vmatprep.subr.bf16.mxu0 0
    %653 = vmatpush2.bf16.msra.mxu0 0
    %654 = vmatprep.subr.bf16.mxu0 0
    %655 = vmatpush2.bf16.msra.mxu0 0
    %656 = vmatprep.subr.bf16.mxu0 0
    %657 = vmatpush2.bf16.msra.mxu0 0
    %658 = vmatprep.subr.bf16.mxu0 0
    %659 = vmatpush2.bf16.msra.mxu0 0
    %660 = vmatprep.subr.bf16.mxu0 0
    %661 = vmatpush2.bf16.msra.mxu0 0
    %662 = vmatprep.subr.bf16.mxu0 0
    %663 = vmatpush2.bf16.msra.mxu0 0
    %664 = vmatprep.mubr.bf16.mxu0 0
    %665 = vmatmul.mubr.bf16.gmra.mxu0 %v612
    %v666 = vpop.f32.mrf.mxu0
    %v667 = vadd.f32 0.0, %v666
    %v668 = vpop.f32.mrf.mxu0
    %v669 = vadd.f32 0.0, %v668
    %v670 = vpop.f32.mrf.mxu0
    %v671 = vadd.f32 0.0, %v670
    %v672 = vpop.f32.mrf.mxu0
    %v673 = vadd.f32 0.0, %v672
    %674 = vmatprep.mubr.bf16.mxu0 0
    %675 = vmatmul.mubr.bf16.gmra.mxu0 %v615
    %v676 = vpop.f32.mrf.mxu0
    %v677 = vadd.f32 0.0, %v676
    %v678 = vpop.f32.mrf.mxu0
    %v679 = vadd.f32 0.0, %v678
    %v680 = vpop.f32.mrf.mxu0
    %v681 = vadd.f32 0.0, %v680
    %v682 = vpop.f32.mrf.mxu0
    %v683 = vadd.f32 0.0, %v682
    %684 = vmatprep.mubr.bf16.mxu0 0
    %685 = vmatmul.mubr.bf16.gmra.mxu0 %v618
    %v686 = vpop.f32.mrf.mxu0
    %v687 = vadd.f32 0.0, %v686
    %v688 = vpop.f32.mrf.mxu0
    %v689 = vadd.f32 0.0, %v688
    %v690 = vpop.f32.mrf.mxu0
    %v691 = vadd.f32 0.0, %v690
    %v692 = vpop.f32.mrf.mxu0
    %v693 = vadd.f32 0.0, %v692
    %694 = vdwg.mxu0
    %695 = vmatprep.subr.bf16.mxu0 0
    %696 = vmatpush1.bf16.msra.mxu0 0
    %697 = vmatprep.subr.bf16.mxu0 0
    %698 = vmatpush1.bf16.msra.mxu0 0
    %699 = vmatprep.subr.bf16.mxu0 0
    %700 = vmatpush1.bf16.msra.mxu0 0
    %701 = vmatprep.subr.bf16.mxu0 0
    %702 = vmatpush1.bf16.msra.mxu0 0
    %703 = vmatprep.subr.bf16.mxu0 0
    %704 = vmatpush1.bf16.msra.mxu0 0
    %705 = vmatprep.subr.bf16.mxu0 0
    %706 = vmatpush1.bf16.msra.mxu0 0
    %707 = vmatprep.subr.bf16.mxu0 %v630
    %708 = vmatpush1.bf16.msra.mxu0 %v627
    %709 = vmatprep.subr.bf16.mxu0 %v602
    %710 = vmatpush1.bf16.msra.mxu0 %v601
    %711 = vmatprep.subr.bf16.mxu0 0
    %712 = vmatpush2.bf16.msra.mxu0 0
    %713 = vmatprep.subr.bf16.mxu0 0
    %714 = vmatpush2.bf16.msra.mxu0 0
    %715 = vmatprep.subr.bf16.mxu0 0
    %716 = vmatpush2.bf16.msra.mxu0 0
    %717 = vmatprep.subr.bf16.mxu0 0
    %718 = vmatpush2.bf16.msra.mxu0 0
    %719 = vmatprep.subr.bf16.mxu0 0
    %720 = vmatpush2.bf16.msra.mxu0 0
    %721 = vmatprep.subr.bf16.mxu0 0
    %722 = vmatpush2.bf16.msra.mxu0 0
    %723 = vmatprep.subr.bf16.mxu0 0
    %724 = vmatpush2.bf16.msra.mxu0 0
    %725 = vmatprep.subr.bf16.mxu0 0
    %726 = vmatpush2.bf16.msra.mxu0 0
    %727 = vmatprep.mubr.bf16.mxu0 0
    %728 = vmatmul.mubr.bf16.gmra.mxu0 %v612
    %v729 = vpop.f32.mrf.mxu0
    %v730 = vadd.f32 0.0, %v729
    %v731 = vpop.f32.mrf.mxu0
    %v732 = vadd.f32 0.0, %v731
    %v733 = vpop.f32.mrf.mxu0
    %v734 = vadd.f32 0.0, %v733
    %v735 = vpop.f32.mrf.mxu0
    %v736 = vadd.f32 0.0, %v735
    %737 = vmatprep.mubr.bf16.mxu0 0
    %738 = vmatmul.mubr.bf16.gmra.mxu0 %v615
    %v739 = vpop.f32.mrf.mxu0
    %v740 = vadd.f32 0.0, %v739
    %v741 = vpop.f32.mrf.mxu0
    %v742 = vadd.f32 0.0, %v741
    %v743 = vpop.f32.mrf.mxu0
    %v744 = vadd.f32 0.0, %v743
    %v745 = vpop.f32.mrf.mxu0
    %v746 = vadd.f32 0.0, %v745
    %747 = vmatprep.mubr.bf16.mxu0 0
    %748 = vmatmul.mubr.bf16.gmra.mxu0 %v618
    %v749 = vpop.f32.mrf.mxu0
    %v750 = vadd.f32 0.0, %v749
    %v751 = vpop.f32.mrf.mxu0
    %v752 = vadd.f32 0.0, %v751
    %v753 = vpop.f32.mrf.mxu0
    %v754 = vadd.f32 0.0, %v753
    %v755 = vpop.f32.mrf.mxu0
    %v756 = vadd.f32 0.0, %v755
    %757 = vdwg.mxu0
    %v758 = vadd.f32 %v443, %v667
    %v759 = vadd.f32 %v445, %v669
    %v760 = vadd.f32 %v506, %v730
    %v761 = vadd.f32 %v508, %v732
    %v762 = vadd.f32 %v447, %v671
    %v763 = vadd.f32 %v449, %v673
    %v764 = vadd.f32 %v510, %v734
    %v765 = vadd.f32 %v512, %v736
    %v766 = vadd.f32 %v453, %v677
    %v767 = vadd.f32 %v455, %v679
    %v768 = vadd.f32 %v516, %v740
    %v769 = vadd.f32 %v518, %v742
    %v770 = vadd.f32 %v457, %v681
    %v771 = vadd.f32 %v459, %v683
    %v772 = vadd.f32 %v520, %v744
    %v773 = vadd.f32 %v522, %v746
    %v774 = vadd.f32 %v463, %v687
    %v775 = vadd.f32 %v465, %v689
    %v776 = vadd.f32 %v526, %v750
    %v777 = vadd.f32 %v528, %v752
    %v778 = vadd.f32 %v467, %v691
    %v779 = vadd.f32 %v469, %v693
    %v780 = vadd.f32 %v530, %v754
    %v781 = vadd.f32 %v532, %v756
    %vm782 = vsmask.f32 2304
    %vm783 = vsmask.f32 6416
    %vm784 = vmor %vm782, %vm783
    %v785 = vrot.slane %v78, 5
    %v786 = vrot.slane %v81, 6
    %v787 = vor.u32 %v785, %v786
    %v788 = vrot.slane %v787, 4
    %v789 = vrot.slane %v91, 5
    %v790 = vrot.slane %v87, 6
    %v791 = vor.u32 %v789, %v790
    %v792 = vsel %vm784, %v788, %v791
    %v793 = vrot.slane %v791, 4
    %v794 = vrot.slane %v101, 5
    %v795 = vrot.slane %v97, 6
    %v796 = vor.u32 %v794, %v795
    %v797 = vsel %vm784, %v793, %v796
    %v798 = vrot.slane %v796, 4
    %v799 = vshrl.u32 %v69, 16
    %v801 = vrot.slane %v799, 5
    %v802 = vrot.slane %v107, 6
    %v803 = vor.u32 %v801, %v802
    %v804 = vsel %vm784, %v798, %v803
    %v805 = vrot.slane %v112, 5
    %v806 = vrot.slane %v115, 6
    %v807 = vor.u32 %v805, %v806
    %v808 = vrot.slane %v807, 4
    %v809 = vrot.slane %v125, 5
    %v810 = vrot.slane %v121, 6
    %v811 = vor.u32 %v809, %v810
    %v812 = vsel %vm784, %v808, %v811
    %v813 = vrot.slane %v811, 4
    %v814 = vrot.slane %v135, 5
    %v815 = vrot.slane %v131, 6
    %v816 = vor.u32 %v814, %v815
    %v817 = vsel %vm784, %v813, %v816
    %v818 = vrot.slane %v816, 4
    %v819 = vshrl.u32 %v73, 16
    %v821 = vrot.slane %v819, 5
    %v822 = vrot.slane %v141, 6
    %v823 = vor.u32 %v821, %v822
    %v824 = vsel %vm784, %v818, %v823
    %s825 = scalar_lea.vmem %s1, 192
    %v826 = vld [vmem:[%s825] sm:$0xff]
    %v827 = vld [vmem:[%s825 + $0x8] sm:$0xff]
    %v828 = vld [vmem:[%s825 + $0x10] sm:$0xff]
    %v829 = vld [vmem:[%s825 + $0x18] sm:$0xff]
    %v830 = vld [vmem:[%s825 + $0x20] sm:$0xff]
    %v831 = vld [vmem:[%s825 + $0x28] sm:$0xff]
    %v832 = vld [vmem:[%s825 + $0x30] sm:$0x33]
    %v833 = vld [vmem:[%s825 + $0x38] sm:$0x33]
    %v834 = vunpack.c.l.b16 %v792
    %v835 = vunpack.c.l.b16 %v797
    %v836 = vunpack.c.l.b16 %v804
    %v837 = vunpack.c.l.b16 %v812
    %v838 = vunpack.c.l.b16 %v817
    %v839 = vunpack.c.l.b16 %v824
    %v840 = vpack.c.b16 %v835, %v834
    %v841 = vpack.c.b16 %v837, %v836
    %v842 = vpack.c.b16 %v839, %v838
    %v851 = vunpack.c.l.b16 %v826
    %v852 = vunpack.c.h.b16 %v826
    %v853 = vunpack.c.l.b16 %v827
    %v854 = vunpack.c.h.b16 %v827
    %v855 = vunpack.c.l.b16 %v828
    %v856 = vunpack.c.h.b16 %v828
    %v857 = vunpack.c.l.b16 %v829
    %v858 = vunpack.c.h.b16 %v829
    %v859 = vunpack.c.l.b16 %v830
    %v860 = vunpack.c.h.b16 %v830
    %v861 = vunpack.c.l.b16 %v831
    %v862 = vunpack.c.h.b16 %v831
    %v863 = vunpack.c.l.b16 %v832
    %v864 = vunpack.c.h.b16 %v832
    %v865 = vunpack.c.l.b16 %v833
    %v866 = vunpack.c.h.b16 %v833
    %v867 = vpack.c.b16 %v855, %v851
    %v868 = vpack.c.b16 %v856, %v852
    %v869 = vpack.c.b16 %v857, %v853
    %v870 = vpack.c.b16 %v858, %v854
    %v871 = vpack.c.b16 %v863, %v859
    %v872 = vpack.c.b16 %v864, %v860
    %v873 = vpack.c.b16 %v865, %v861
    %v874 = vpack.c.b16 %v866, %v862
    %v880 = vsel %vm199, %v840, 0
    %v883 = vsel %vm199, %v841, 0
    %v886 = vsel %vm199, %v842, 0
    %v889 = vsel %vm209, %v871, 0
    %v892 = vsel %vm209, %v872, 0
    %v895 = vsel %vm209, %v873, 0
    %v898 = vsel %vm209, %v874, 0
    %900 = vmatprep.subr.bf16.mxu0 0
    %901 = vmatpush1.bf16.msra.mxu0 0
    %902 = vmatprep.subr.bf16.mxu0 0
    %903 = vmatpush1.bf16.msra.mxu0 0
    %904 = vmatprep.subr.bf16.mxu0 0
    %905 = vmatpush1.bf16.msra.mxu0 0
    %906 = vmatprep.subr.bf16.mxu0 0
    %907 = vmatpush1.bf16.msra.mxu0 0
    %908 = vmatprep.subr.bf16.mxu0 0
    %909 = vmatpush1.bf16.msra.mxu0 0
    %910 = vmatprep.subr.bf16.mxu0 0
    %911 = vmatpush1.bf16.msra.mxu0 0
    %912 = vmatprep.subr.bf16.mxu0 %v892
    %913 = vmatpush1.bf16.msra.mxu0 %v889
    %914 = vmatprep.subr.bf16.mxu0 %v868
    %915 = vmatpush1.bf16.msra.mxu0 %v867
    %916 = vmatprep.subr.bf16.mxu0 0
    %917 = vmatpush2.bf16.msra.mxu0 0
    %918 = vmatprep.subr.bf16.mxu0 0
    %919 = vmatpush2.bf16.msra.mxu0 0
    %920 = vmatprep.subr.bf16.mxu0 0
    %921 = vmatpush2.bf16.msra.mxu0 0
    %922 = vmatprep.subr.bf16.mxu0 0
    %923 = vmatpush2.bf16.msra.mxu0 0
    %924 = vmatprep.subr.bf16.mxu0 0
    %925 = vmatpush2.bf16.msra.mxu0 0
    %926 = vmatprep.subr.bf16.mxu0 0
    %927 = vmatpush2.bf16.msra.mxu0 0
    %928 = vmatprep.subr.bf16.mxu0 0
    %929 = vmatpush2.bf16.msra.mxu0 0
    %930 = vmatprep.subr.bf16.mxu0 0
    %931 = vmatpush2.bf16.msra.mxu0 0
    %932 = vmatprep.mubr.bf16.mxu0 0
    %933 = vmatmul.mubr.bf16.gmra.mxu0 %v880
    %v934 = vpop.f32.mrf.mxu0
    %v935 = vadd.f32 0.0, %v934
    %v936 = vpop.f32.mrf.mxu0
    %v937 = vadd.f32 0.0, %v936
    %v938 = vpop.f32.mrf.mxu0
    %v939 = vadd.f32 0.0, %v938
    %v940 = vpop.f32.mrf.mxu0
    %v941 = vadd.f32 0.0, %v940
    %942 = vmatprep.mubr.bf16.mxu0 0
    %943 = vmatmul.mubr.bf16.gmra.mxu0 %v883
    %v944 = vpop.f32.mrf.mxu0
    %v945 = vadd.f32 0.0, %v944
    %v946 = vpop.f32.mrf.mxu0
    %v947 = vadd.f32 0.0, %v946
    %v948 = vpop.f32.mrf.mxu0
    %v949 = vadd.f32 0.0, %v948
    %v950 = vpop.f32.mrf.mxu0
    %v951 = vadd.f32 0.0, %v950
    %952 = vmatprep.mubr.bf16.mxu0 0
    %953 = vmatmul.mubr.bf16.gmra.mxu0 %v886
    %v954 = vpop.f32.mrf.mxu0
    %v955 = vadd.f32 0.0, %v954
    %v956 = vpop.f32.mrf.mxu0
    %v957 = vadd.f32 0.0, %v956
    %v958 = vpop.f32.mrf.mxu0
    %v959 = vadd.f32 0.0, %v958
    %v960 = vpop.f32.mrf.mxu0
    %v961 = vadd.f32 0.0, %v960
    %962 = vdwg.mxu0
    %963 = vmatprep.subr.bf16.mxu0 0
    %964 = vmatpush1.bf16.msra.mxu0 0
    %965 = vmatprep.subr.bf16.mxu0 0
    %966 = vmatpush1.bf16.msra.mxu0 0
    %967 = vmatprep.subr.bf16.mxu0 0
    %968 = vmatpush1.bf16.msra.mxu0 0
    %969 = vmatprep.subr.bf16.mxu0 0
    %970 = vmatpush1.bf16.msra.mxu0 0
    %971 = vmatprep.subr.bf16.mxu0 0
    %972 = vmatpush1.bf16.msra.mxu0 0
    %973 = vmatprep.subr.bf16.mxu0 0
    %974 = vmatpush1.bf16.msra.mxu0 0
    %975 = vmatprep.subr.bf16.mxu0 %v898
    %976 = vmatpush1.bf16.msra.mxu0 %v895
    %977 = vmatprep.subr.bf16.mxu0 %v870
    %978 = vmatpush1.bf16.msra.mxu0 %v869
    %979 = vmatprep.subr.bf16.mxu0 0
    %980 = vmatpush2.bf16.msra.mxu0 0
    %981 = vmatprep.subr.bf16.mxu0 0
    %982 = vmatpush2.bf16.msra.mxu0 0
    %983 = vmatprep.subr.bf16.mxu0 0
    %984 = vmatpush2.bf16.msra.mxu0 0
    %985 = vmatprep.subr.bf16.mxu0 0
    %986 = vmatpush2.bf16.msra.mxu0 0
    %987 = vmatprep.subr.bf16.mxu0 0
    %988 = vmatpush2.bf16.msra.mxu0 0
    %989 = vmatprep.subr.bf16.mxu0 0
    %990 = vmatpush2.bf16.msra.mxu0 0
    %991 = vmatprep.subr.bf16.mxu0 0
    %992 = vmatpush2.bf16.msra.mxu0 0
    %993 = vmatprep.subr.bf16.mxu0 0
    %994 = vmatpush2.bf16.msra.mxu0 0
    %995 = vmatprep.mubr.bf16.mxu0 0
    %996 = vmatmul.mubr.bf16.gmra.mxu0 %v880
    %v997 = vpop.f32.mrf.mxu0
    %v998 = vadd.f32 0.0, %v997
    %v999 = vpop.f32.mrf.mxu0
    %v1000 = vadd.f32 0.0, %v999
    %v1001 = vpop.f32.mrf.mxu0
    %v1002 = vadd.f32 0.0, %v1001
    %v1003 = vpop.f32.mrf.mxu0
    %v1004 = vadd.f32 0.0, %v1003
    %1005 = vmatprep.mubr.bf16.mxu0 0
    %1006 = vmatmul.mubr.bf16.gmra.mxu0 %v883
    %v1007 = vpop.f32.mrf.mxu0
    %v1008 = vadd.f32 0.0, %v1007
    %v1009 = vpop.f32.mrf.mxu0
    %v1010 = vadd.f32 0.0, %v1009
    %v1011 = vpop.f32.mrf.mxu0
    %v1012 = vadd.f32 0.0, %v1011
    %v1013 = vpop.f32.mrf.mxu0
    %v1014 = vadd.f32 0.0, %v1013
    %1015 = vmatprep.mubr.bf16.mxu0 0
    %1016 = vmatmul.mubr.bf16.gmra.mxu0 %v886
    %v1017 = vpop.f32.mrf.mxu0
    %v1018 = vadd.f32 0.0, %v1017
    %v1019 = vpop.f32.mrf.mxu0
    %v1020 = vadd.f32 0.0, %v1019
    %v1021 = vpop.f32.mrf.mxu0
    %v1022 = vadd.f32 0.0, %v1021
    %v1023 = vpop.f32.mrf.mxu0
    %v1024 = vadd.f32 0.0, %v1023
    %1025 = vdwg.mxu0
    %v1026 = vadd.f32 %v758, %v935
    %v1027 = vadd.f32 %v759, %v937
    %v1028 = vadd.f32 %v760, %v998
    %v1029 = vadd.f32 %v761, %v1000
    %v1030 = vadd.f32 %v762, %v939
    %v1031 = vadd.f32 %v763, %v941
    %v1032 = vadd.f32 %v764, %v1002
    %v1033 = vadd.f32 %v765, %v1004
    %v1034 = vadd.f32 %v766, %v945
    %v1035 = vadd.f32 %v767, %v947
    %v1036 = vadd.f32 %v768, %v1008
    %v1037 = vadd.f32 %v769, %v1010
    %v1038 = vadd.f32 %v770, %v949
    %v1039 = vadd.f32 %v771, %v951
    %v1040 = vadd.f32 %v772, %v1012
    %v1041 = vadd.f32 %v773, %v1014
    %v1042 = vadd.f32 %v774, %v955
    %v1043 = vadd.f32 %v775, %v957
    %v1044 = vadd.f32 %v776, %v1018
    %v1045 = vadd.f32 %v777, %v1020
    %v1046 = vadd.f32 %v778, %v959
    %v1047 = vadd.f32 %v779, %v961
    %v1048 = vadd.f32 %v780, %v1022
    %v1049 = vadd.f32 %v781, %v1024
    %vm1050 = vcmask 1041408
    %vm1051 = vcmask 1045508
    %vm1052 = vmor %vm1050, %vm1051
    %v1053 = vrot.slane %v66, 6
    %v1054 = vrot.slane %v1053, 4
    %v1055 = vrot.slane %v67, 6
    %v1056 = vsel %vm1052, %v1054, %v1055
    %v1057 = vrot.slane %v1055, 4
    %v1058 = vrot.slane %v68, 6
    %v1059 = vsel %vm1052, %v1057, %v1058
    %v1060 = vrot.slane %v1058, 4
    %v1061 = vrot.slane %v69, 6
    %v1062 = vsel %vm1052, %v1060, %v1061
    %v1063 = vrot.slane %v70, 6
    %v1064 = vrot.slane %v1063, 4
    %v1065 = vrot.slane %v71, 6
    %v1066 = vsel %vm1052, %v1064, %v1065
    %v1067 = vrot.slane %v1065, 4
    %v1068 = vrot.slane %v72, 6
    %v1069 = vsel %vm1052, %v1067, %v1068
    %v1070 = vrot.slane %v1068, 4
    %v1071 = vrot.slane %v73, 6
    %v1072 = vsel %vm1052, %v1070, %v1071
    %s1073 = scalar_lea.vmem %s1, 256
    %v1074 = vld [vmem:[%s1073] sm:$0xff]
    %v1075 = vld [vmem:[%s1073 + $0x8] sm:$0xff]
    %v1076 = vld [vmem:[%s1073 + $0x10] sm:$0xff]
    %v1077 = vld [vmem:[%s1073 + $0x18] sm:$0xff]
    %v1078 = vld [vmem:[%s1073 + $0x20] sm:$0xff]
    %v1079 = vld [vmem:[%s1073 + $0x28] sm:$0xff]
    %v1080 = vld [vmem:[%s1073 + $0x30] sm:$0x33]
    %v1081 = vld [vmem:[%s1073 + $0x38] sm:$0x33]
    %v1082 = vunpack.c.l.b16 %v1056
    %v1083 = vunpack.c.l.b16 %v1059
    %v1084 = vunpack.c.l.b16 %v1062
    %v1085 = vunpack.c.l.b16 %v1066
    %v1086 = vunpack.c.l.b16 %v1069
    %v1087 = vunpack.c.l.b16 %v1072
    %v1088 = vpack.c.b16 %v1083, %v1082
    %v1089 = vpack.c.b16 %v1085, %v1084
    %v1090 = vpack.c.b16 %v1087, %v1086
    %v1099 = vunpack.c.l.b16 %v1074
    %v1100 = vunpack.c.h.b16 %v1074
    %v1101 = vunpack.c.l.b16 %v1075
    %v1102 = vunpack.c.h.b16 %v1075
    %v1103 = vunpack.c.l.b16 %v1076
    %v1104 = vunpack.c.h.b16 %v1076
    %v1105 = vunpack.c.l.b16 %v1077
    %v1106 = vunpack.c.h.b16 %v1077
    %v1107 = vunpack.c.l.b16 %v1078
    %v1108 = vunpack.c.h.b16 %v1078
    %v1109 = vunpack.c.l.b16 %v1079
    %v1110 = vunpack.c.h.b16 %v1079
    %v1111 = vunpack.c.l.b16 %v1080
    %v1112 = vunpack.c.h.b16 %v1080
    %v1113 = vunpack.c.l.b16 %v1081
    %v1114 = vunpack.c.h.b16 %v1081
    %v1115 = vpack.c.b16 %v1103, %v1099
    %v1116 = vpack.c.b16 %v1104, %v1100
    %v1117 = vpack.c.b16 %v1105, %v1101
    %v1118 = vpack.c.b16 %v1106, %v1102
    %v1119 = vpack.c.b16 %v1111, %v1107
    %v1120 = vpack.c.b16 %v1112, %v1108
    %v1121 = vpack.c.b16 %v1113, %v1109
    %v1122 = vpack.c.b16 %v1114, %v1110
    %v1128 = vsel %vm199, %v1088, 0
    %v1131 = vsel %vm199, %v1089, 0
    %v1134 = vsel %vm199, %v1090, 0
    %v1137 = vsel %vm209, %v1119, 0
    %v1140 = vsel %vm209, %v1120, 0
    %v1143 = vsel %vm209, %v1121, 0
    %v1146 = vsel %vm209, %v1122, 0
    %1148 = vmatprep.subr.bf16.mxu0 0
    %1149 = vmatpush1.bf16.msra.mxu0 0
    %1150 = vmatprep.subr.bf16.mxu0 0
    %1151 = vmatpush1.bf16.msra.mxu0 0
    %1152 = vmatprep.subr.bf16.mxu0 0
    %1153 = vmatpush1.bf16.msra.mxu0 0
    %1154 = vmatprep.subr.bf16.mxu0 0
    %1155 = vmatpush1.bf16.msra.mxu0 0
    %1156 = vmatprep.subr.bf16.mxu0 0
    %1157 = vmatpush1.bf16.msra.mxu0 0
    %1158 = vmatprep.subr.bf16.mxu0 0
    %1159 = vmatpush1.bf16.msra.mxu0 0
    %1160 = vmatprep.subr.bf16.mxu0 %v1140
    %1161 = vmatpush1.bf16.msra.mxu0 %v1137
    %1162 = vmatprep.subr.bf16.mxu0 %v1116
    %1163 = vmatpush1.bf16.msra.mxu0 %v1115
    %1164 = vmatprep.subr.bf16.mxu0 0
    %1165 = vmatpush2.bf16.msra.mxu0 0
    %1166 = vmatprep.subr.bf16.mxu0 0
    %1167 = vmatpush2.bf16.msra.mxu0 0
    %1168 = vmatprep.subr.bf16.mxu0 0
    %1169 = vmatpush2.bf16.msra.mxu0 0
    %1170 = vmatprep.subr.bf16.mxu0 0
    %1171 = vmatpush2.bf16.msra.mxu0 0
    %1172 = vmatprep.subr.bf16.mxu0 0
    %1173 = vmatpush2.bf16.msra.mxu0 0
    %1174 = vmatprep.subr.bf16.mxu0 0
    %1175 = vmatpush2.bf16.msra.mxu0 0
    %1176 = vmatprep.subr.bf16.mxu0 0
    %1177 = vmatpush2.bf16.msra.mxu0 0
    %1178 = vmatprep.subr.bf16.mxu0 0
    %1179 = vmatpush2.bf16.msra.mxu0 0
    %1180 = vmatprep.mubr.bf16.mxu0 0
    %1181 = vmatmul.mubr.bf16.gmra.mxu0 %v1128
    %v1182 = vpop.f32.mrf.mxu0
    %v1183 = vadd.f32 0.0, %v1182
    %v1184 = vpop.f32.mrf.mxu0
    %v1185 = vadd.f32 0.0, %v1184
    %v1186 = vpop.f32.mrf.mxu0
    %v1187 = vadd.f32 0.0, %v1186
    %v1188 = vpop.f32.mrf.mxu0
    %v1189 = vadd.f32 0.0, %v1188
    %1190 = vmatprep.mubr.bf16.mxu0 0
    %1191 = vmatmul.mubr.bf16.gmra.mxu0 %v1131
    %v1192 = vpop.f32.mrf.mxu0
    %v1193 = vadd.f32 0.0, %v1192
    %v1194 = vpop.f32.mrf.mxu0
    %v1195 = vadd.f32 0.0, %v1194
    %v1196 = vpop.f32.mrf.mxu0
    %v1197 = vadd.f32 0.0, %v1196
    %v1198 = vpop.f32.mrf.mxu0
    %v1199 = vadd.f32 0.0, %v1198
    %1200 = vmatprep.mubr.bf16.mxu0 0
    %1201 = vmatmul.mubr.bf16.gmra.mxu0 %v1134
    %v1202 = vpop.f32.mrf.mxu0
    %v1203 = vadd.f32 0.0, %v1202
    %v1204 = vpop.f32.mrf.mxu0
    %v1205 = vadd.f32 0.0, %v1204
    %v1206 = vpop.f32.mrf.mxu0
    %v1207 = vadd.f32 0.0, %v1206
    %v1208 = vpop.f32.mrf.mxu0
    %v1209 = vadd.f32 0.0, %v1208
    %1210 = vdwg.mxu0
    %1211 = vmatprep.subr.bf16.mxu0 0
    %1212 = vmatpush1.bf16.msra.mxu0 0
    %1213 = vmatprep.subr.bf16.mxu0 0
    %1214 = vmatpush1.bf16.msra.mxu0 0
    %1215 = vmatprep.subr.bf16.mxu0 0
    %1216 = vmatpush1.bf16.msra.mxu0 0
    %1217 = vmatprep.subr.bf16.mxu0 0
    %1218 = vmatpush1.bf16.msra.mxu0 0
    %1219 = vmatprep.subr.bf16.mxu0 0
    %1220 = vmatpush1.bf16.msra.mxu0 0
    %1221 = vmatprep.subr.bf16.mxu0 0
    %1222 = vmatpush1.bf16.msra.mxu0 0
    %1223 = vmatprep.subr.bf16.mxu0 %v1146
    %1224 = vmatpush1.bf16.msra.mxu0 %v1143
    %1225 = vmatprep.subr.bf16.mxu0 %v1118
    %1226 = vmatpush1.bf16.msra.mxu0 %v1117
    %1227 = vmatprep.subr.bf16.mxu0 0
    %1228 = vmatpush2.bf16.msra.mxu0 0
    %1229 = vmatprep.subr.bf16.mxu0 0
    %1230 = vmatpush2.bf16.msra.mxu0 0
    %1231 = vmatprep.subr.bf16.mxu0 0
    %1232 = vmatpush2.bf16.msra.mxu0 0
    %1233 = vmatprep.subr.bf16.mxu0 0
    %1234 = vmatpush2.bf16.msra.mxu0 0
    %1235 = vmatprep.subr.bf16.mxu0 0
    %1236 = vmatpush2.bf16.msra.mxu0 0
    %1237 = vmatprep.subr.bf16.mxu0 0
    %1238 = vmatpush2.bf16.msra.mxu0 0
    %1239 = vmatprep.subr.bf16.mxu0 0
    %1240 = vmatpush2.bf16.msra.mxu0 0
    %1241 = vmatprep.subr.bf16.mxu0 0
    %1242 = vmatpush2.bf16.msra.mxu0 0
    %1243 = vmatprep.mubr.bf16.mxu0 0
    %1244 = vmatmul.mubr.bf16.gmra.mxu0 %v1128
    %v1245 = vpop.f32.mrf.mxu0
    %v1246 = vadd.f32 0.0, %v1245
    %v1247 = vpop.f32.mrf.mxu0
    %v1248 = vadd.f32 0.0, %v1247
    %v1249 = vpop.f32.mrf.mxu0
    %v1250 = vadd.f32 0.0, %v1249
    %v1251 = vpop.f32.mrf.mxu0
    %v1252 = vadd.f32 0.0, %v1251
    %1253 = vmatprep.mubr.bf16.mxu0 0
    %1254 = vmatmul.mubr.bf16.gmra.mxu0 %v1131
    %v1255 = vpop.f32.mrf.mxu0
    %v1256 = vadd.f32 0.0, %v1255
    %v1257 = vpop.f32.mrf.mxu0
    %v1258 = vadd.f32 0.0, %v1257
    %v1259 = vpop.f32.mrf.mxu0
    %v1260 = vadd.f32 0.0, %v1259
    %v1261 = vpop.f32.mrf.mxu0
    %v1262 = vadd.f32 0.0, %v1261
    %1263 = vmatprep.mubr.bf16.mxu0 0
    %1264 = vmatmul.mubr.bf16.gmra.mxu0 %v1134
    %v1265 = vpop.f32.mrf.mxu0
    %v1266 = vadd.f32 0.0, %v1265
    %v1267 = vpop.f32.mrf.mxu0
    %v1268 = vadd.f32 0.0, %v1267
    %v1269 = vpop.f32.mrf.mxu0
    %v1270 = vadd.f32 0.0, %v1269
    %v1271 = vpop.f32.mrf.mxu0
    %v1272 = vadd.f32 0.0, %v1271
    %1273 = vdwg.mxu0
    %v1274 = vadd.f32 %v1026, %v1183
    %v1275 = vadd.f32 %v1027, %v1185
    %v1276 = vadd.f32 %v1028, %v1246
    %v1277 = vadd.f32 %v1029, %v1248
    %v1278 = vadd.f32 %v1030, %v1187
    %v1279 = vadd.f32 %v1031, %v1189
    %v1280 = vadd.f32 %v1032, %v1250
    %v1281 = vadd.f32 %v1033, %v1252
    %v1282 = vadd.f32 %v1034, %v1193
    %v1283 = vadd.f32 %v1035, %v1195
    %v1284 = vadd.f32 %v1036, %v1256
    %v1285 = vadd.f32 %v1037, %v1258
    %v1286 = vadd.f32 %v1038, %v1197
    %v1287 = vadd.f32 %v1039, %v1199
    %v1288 = vadd.f32 %v1040, %v1260
    %v1289 = vadd.f32 %v1041, %v1262
    %v1290 = vadd.f32 %v1042, %v1203
    %v1291 = vadd.f32 %v1043, %v1205
    %v1292 = vadd.f32 %v1044, %v1266
    %v1293 = vadd.f32 %v1045, %v1268
    %v1294 = vadd.f32 %v1046, %v1207
    %v1295 = vadd.f32 %v1047, %v1209
    %v1296 = vadd.f32 %v1048, %v1270
    %v1297 = vadd.f32 %v1049, %v1272
    %v1298 = vld [vmem:[%s2] sm:$0xf]
    %v1300 = vlaneseq
    %v1301 = vshrl.u32 %v1300, 7
    %v1302 = vsub.s32 0, %v1301
    %v1303 = vrot.slane %v1298, %v1302
    %v1304 = vlaneseq
    %v1305 = vshrl.u32 %v1304, 7
    %v1306 = vsub.s32 1, %v1305
    %v1307 = vrot.slane %v1298, %v1306
    %v1308 = vlaneseq
    %v1309 = vshrl.u32 %v1308, 7
    %v1310 = vsub.s32 2, %v1309
    %v1311 = vrot.slane %v1298, %v1310
    %v1312 = vlaneseq
    %v1313 = vshrl.u32 %v1312, 7
    %v1314 = vsub.s32 3, %v1313
    %v1315 = vrot.slane %v1298, %v1314
    %v1320 = vadd.f32 %v1274, %v1303
    %v1321 = vadd.f32 %v1275, %v1307
    %v1322 = vadd.f32 %v1276, %v1311
    %v1323 = vadd.f32 %v1277, %v1315
    %v1324 = vadd.f32 %v1278, %v1303
    %v1325 = vadd.f32 %v1279, %v1307
    %v1326 = vadd.f32 %v1280, %v1311
    %v1327 = vadd.f32 %v1281, %v1315
    %v1328 = vadd.f32 %v1282, %v1303
    %v1329 = vadd.f32 %v1283, %v1307
    %v1330 = vadd.f32 %v1284, %v1311
    %v1331 = vadd.f32 %v1285, %v1315
    %v1332 = vadd.f32 %v1286, %v1303
    %v1333 = vadd.f32 %v1287, %v1307
    %v1334 = vadd.f32 %v1288, %v1311
    %v1335 = vadd.f32 %v1289, %v1315
    %v1336 = vadd.f32 %v1290, %v1303
    %v1337 = vadd.f32 %v1291, %v1307
    %v1338 = vadd.f32 %v1292, %v1311
    %v1339 = vadd.f32 %v1293, %v1315
    %v1340 = vadd.f32 %v1294, %v1303
    %v1341 = vadd.f32 %v1295, %v1307
    %v1342 = vadd.f32 %v1296, %v1311
    %v1343 = vadd.f32 %v1297, %v1315
    %v1352 = vrot.slane %v1320, 1
    %v1353 = vrot.slane %v1321, 1
    %v1354 = vrot.slane %v1322, 1
    %v1355 = vrot.slane %v1323, 1
    %v1356 = vrot.slane %v1332, 1
    %v1357 = vrot.slane %v1333, 1
    %v1358 = vrot.slane %v1334, 1
    %v1359 = vrot.slane %v1335, 1
    %v1368 = vmax.f32 %v1320, %v1352
    %v1369 = vmax.f32 %v1321, %v1353
    %v1370 = vmax.f32 %v1322, %v1354
    %v1371 = vmax.f32 %v1323, %v1355
    %v1372 = vmax.f32 %v1332, %v1356
    %v1373 = vmax.f32 %v1333, %v1357
    %v1374 = vmax.f32 %v1334, %v1358
    %v1375 = vmax.f32 %v1335, %v1359
    %v1384 = vrot.slane %v1324, 1
    %v1385 = vrot.slane %v1325, 1
    %v1386 = vrot.slane %v1326, 1
    %v1387 = vrot.slane %v1327, 1
    %v1388 = vrot.slane %v1336, 1
    %v1389 = vrot.slane %v1337, 1
    %v1390 = vrot.slane %v1338, 1
    %v1391 = vrot.slane %v1339, 1
    %v1400 = vmax.f32 %v1324, %v1384
    %v1401 = vmax.f32 %v1325, %v1385
    %v1402 = vmax.f32 %v1326, %v1386
    %v1403 = vmax.f32 %v1327, %v1387
    %v1404 = vmax.f32 %v1336, %v1388
    %v1405 = vmax.f32 %v1337, %v1389
    %v1406 = vmax.f32 %v1338, %v1390
    %v1407 = vmax.f32 %v1339, %v1391
    %v1416 = vrot.slane %v1328, 1
    %v1417 = vrot.slane %v1329, 1
    %v1418 = vrot.slane %v1330, 1
    %v1419 = vrot.slane %v1331, 1
    %v1420 = vrot.slane %v1340, 1
    %v1421 = vrot.slane %v1341, 1
    %v1422 = vrot.slane %v1342, 1
    %v1423 = vrot.slane %v1343, 1
    %v1432 = vmax.f32 %v1328, %v1416
    %v1433 = vmax.f32 %v1329, %v1417
    %v1434 = vmax.f32 %v1330, %v1418
    %v1435 = vmax.f32 %v1331, %v1419
    %v1436 = vmax.f32 %v1340, %v1420
    %v1437 = vmax.f32 %v1341, %v1421
    %v1438 = vmax.f32 %v1342, %v1422
    %v1439 = vmax.f32 %v1343, %v1423
    %v1448 = vrot.slane %v1368, 1
    %v1449 = vrot.slane %v1369, 1
    %v1450 = vrot.slane %v1370, 1
    %v1451 = vrot.slane %v1371, 1
    %v1452 = vrot.slane %v1372, 1
    %v1453 = vrot.slane %v1373, 1
    %v1454 = vrot.slane %v1374, 1
    %v1455 = vrot.slane %v1375, 1
    %v1464 = vrot.slane %v1368, 2
    %v1465 = vrot.slane %v1369, 2
    %v1466 = vrot.slane %v1370, 2
    %v1467 = vrot.slane %v1371, 2
    %v1468 = vrot.slane %v1372, 2
    %v1469 = vrot.slane %v1373, 2
    %v1470 = vrot.slane %v1374, 2
    %v1471 = vrot.slane %v1375, 2
    %v1480 = vrot.slane %v1368, 3
    %v1481 = vrot.slane %v1369, 3
    %v1482 = vrot.slane %v1370, 3
    %v1483 = vrot.slane %v1371, 3
    %v1484 = vrot.slane %v1372, 3
    %v1485 = vrot.slane %v1373, 3
    %v1486 = vrot.slane %v1374, 3
    %v1487 = vrot.slane %v1375, 3
    %v1504 = vrot.slane %v1400, 4
    %v1505 = vrot.slane %v1401, 4
    %v1506 = vrot.slane %v1402, 4
    %v1507 = vrot.slane %v1403, 4
    %v1508 = vrot.slane %v1404, 4
    %v1509 = vrot.slane %v1405, 4
    %v1510 = vrot.slane %v1406, 4
    %v1511 = vrot.slane %v1407, 4
    %v1520 = vrot.slane %v1400, 5
    %v1521 = vrot.slane %v1401, 5
    %v1522 = vrot.slane %v1402, 5
    %v1523 = vrot.slane %v1403, 5
    %v1524 = vrot.slane %v1404, 5
    %v1525 = vrot.slane %v1405, 5
    %v1526 = vrot.slane %v1406, 5
    %v1527 = vrot.slane %v1407, 5
    %v1536 = vrot.slane %v1400, 6
    %v1537 = vrot.slane %v1401, 6
    %v1538 = vrot.slane %v1402, 6
    %v1539 = vrot.slane %v1403, 6
    %v1540 = vrot.slane %v1404, 6
    %v1541 = vrot.slane %v1405, 6
    %v1542 = vrot.slane %v1406, 6
    %v1543 = vrot.slane %v1407, 6
    %v1552 = vrot.slane %v1400, 7
    %v1553 = vrot.slane %v1401, 7
    %v1554 = vrot.slane %v1402, 7
    %v1555 = vrot.slane %v1403, 7
    %v1556 = vrot.slane %v1404, 7
    %v1557 = vrot.slane %v1405, 7
    %v1558 = vrot.slane %v1406, 7
    %v1559 = vrot.slane %v1407, 7
    %v1576 = vrot.slane %v1432, 1
    %v1577 = vrot.slane %v1433, 1
    %v1578 = vrot.slane %v1434, 1
    %v1579 = vrot.slane %v1435, 1
    %v1580 = vrot.slane %v1436, 1
    %v1581 = vrot.slane %v1437, 1
    %v1582 = vrot.slane %v1438, 1
    %v1583 = vrot.slane %v1439, 1
    %v1592 = vrot.slane %v1432, 2
    %v1593 = vrot.slane %v1433, 2
    %v1594 = vrot.slane %v1434, 2
    %v1595 = vrot.slane %v1435, 2
    %v1596 = vrot.slane %v1436, 2
    %v1597 = vrot.slane %v1437, 2
    %v1598 = vrot.slane %v1438, 2
    %v1599 = vrot.slane %v1439, 2
    %v1608 = vrot.slane %v1432, 3
    %v1609 = vrot.slane %v1433, 3
    %v1610 = vrot.slane %v1434, 3
    %v1611 = vrot.slane %v1435, 3
    %v1612 = vrot.slane %v1436, 3
    %v1613 = vrot.slane %v1437, 3
    %v1614 = vrot.slane %v1438, 3
    %v1615 = vrot.slane %v1439, 3
    %vm1624 = vcmask 1040384
    %v1625 = vsel %vm1624, %v1368, %v1448
    %v1626 = vsel %vm1624, %v1369, %v1449
    %v1627 = vsel %vm1624, %v1370, %v1450
    %v1628 = vsel %vm1624, %v1371, %v1451
    %v1629 = vsel %vm1624, %v1372, %v1452
    %v1630 = vsel %vm1624, %v1373, %v1453
    %v1631 = vsel %vm1624, %v1374, %v1454
    %v1632 = vsel %vm1624, %v1375, %v1455
    %vm1633 = vcmask 1041408
    %v1634 = vsel %vm1633, %v1625, %v1464
    %v1635 = vsel %vm1633, %v1626, %v1465
    %v1636 = vsel %vm1633, %v1627, %v1466
    %v1637 = vsel %vm1633, %v1628, %v1467
    %v1638 = vsel %vm1633, %v1629, %v1468
    %v1639 = vsel %vm1633, %v1630, %v1469
    %v1640 = vsel %vm1633, %v1631, %v1470
    %v1641 = vsel %vm1633, %v1632, %v1471
    %vm1642 = vcmask 1042432
    %v1643 = vsel %vm1642, %v1634, %v1480
    %v1644 = vsel %vm1642, %v1635, %v1481
    %v1645 = vsel %vm1642, %v1636, %v1482
    %v1646 = vsel %vm1642, %v1637, %v1483
    %v1647 = vsel %vm1642, %v1638, %v1484
    %v1648 = vsel %vm1642, %v1639, %v1485
    %v1649 = vsel %vm1642, %v1640, %v1486
    %v1650 = vsel %vm1642, %v1641, %v1487
    %vm1651 = vcmask 1043456
    %v1652 = vsel %vm1651, %v1643, %v1504
    %v1653 = vsel %vm1651, %v1644, %v1505
    %v1654 = vsel %vm1651, %v1645, %v1506
    %v1655 = vsel %vm1651, %v1646, %v1507
    %v1656 = vsel %vm1651, %v1647, %v1508
    %v1657 = vsel %vm1651, %v1648, %v1509
    %v1658 = vsel %vm1651, %v1649, %v1510
    %v1659 = vsel %vm1651, %v1650, %v1511
    %vm1660 = vcmask 1044480
    %v1661 = vsel %vm1660, %v1652, %v1520
    %v1662 = vsel %vm1660, %v1653, %v1521
    %v1663 = vsel %vm1660, %v1654, %v1522
    %v1664 = vsel %vm1660, %v1655, %v1523
    %v1665 = vsel %vm1660, %v1656, %v1524
    %v1666 = vsel %vm1660, %v1657, %v1525
    %v1667 = vsel %vm1660, %v1658, %v1526
    %v1668 = vsel %vm1660, %v1659, %v1527
    %v1669 = vsel %vm209, %v1661, %v1536
    %v1670 = vsel %vm209, %v1662, %v1537
    %v1671 = vsel %vm209, %v1663, %v1538
    %v1672 = vsel %vm209, %v1664, %v1539
    %v1673 = vsel %vm209, %v1665, %v1540
    %v1674 = vsel %vm209, %v1666, %v1541
    %v1675 = vsel %vm209, %v1667, %v1542
    %v1676 = vsel %vm209, %v1668, %v1543
    %vm1677 = vcmask 1046528
    %v1678 = vsel %vm1677, %v1669, %v1552
    %v1679 = vsel %vm1677, %v1670, %v1553
    %v1680 = vsel %vm1677, %v1671, %v1554
    %v1681 = vsel %vm1677, %v1672, %v1555
    %v1682 = vsel %vm1677, %v1673, %v1556
    %v1683 = vsel %vm1677, %v1674, %v1557
    %v1684 = vsel %vm1677, %v1675, %v1558
    %v1685 = vsel %vm1677, %v1676, %v1559
    %v1686 = vsel %vm1624, %v1432, %v1576
    %v1687 = vsel %vm1624, %v1433, %v1577
    %v1688 = vsel %vm1624, %v1434, %v1578
    %v1689 = vsel %vm1624, %v1435, %v1579
    %v1690 = vsel %vm1624, %v1436, %v1580
    %v1691 = vsel %vm1624, %v1437, %v1581
    %v1692 = vsel %vm1624, %v1438, %v1582
    %v1693 = vsel %vm1624, %v1439, %v1583
    %v1694 = vsel %vm1633, %v1686, %v1592
    %v1695 = vsel %vm1633, %v1687, %v1593
    %v1696 = vsel %vm1633, %v1688, %v1594
    %v1697 = vsel %vm1633, %v1689, %v1595
    %v1698 = vsel %vm1633, %v1690, %v1596
    %v1699 = vsel %vm1633, %v1691, %v1597
    %v1700 = vsel %vm1633, %v1692, %v1598
    %v1701 = vsel %vm1633, %v1693, %v1599
    %v1702 = vsel %vm1642, %v1694, %v1608
    %v1703 = vsel %vm1642, %v1695, %v1609
    %v1704 = vsel %vm1642, %v1696, %v1610
    %v1705 = vsel %vm1642, %v1697, %v1611
    %v1706 = vsel %vm1642, %v1698, %v1612
    %v1707 = vsel %vm1642, %v1699, %v1613
    %v1708 = vsel %vm1642, %v1700, %v1614
    %v1709 = vsel %vm1642, %v1701, %v1615
    %1714 = vrot.lane.b32.xlu0 %v1678, 108
    %v1715 = vpop.permute.xlu0 %1714
    %1716 = vrot.lane.b32.xlu0 %v1702, 108
    %v1717 = vpop.permute.xlu0 %1716
    %1718 = vrot.lane.b32.xlu0 %v1682, 108
    %v1719 = vpop.permute.xlu0 %1718
    %1720 = vrot.lane.b32.xlu0 %v1706, 108
    %v1721 = vpop.permute.xlu0 %1720
    %v1726 = vmax.f32 %v1678, %v1715
    %v1727 = vmax.f32 %v1702, %v1717
    %v1728 = vmax.f32 %v1682, %v1719
    %v1729 = vmax.f32 %v1706, %v1721
    %1734 = vrot.lane.b32.xlu0 %v1679, 108
    %v1735 = vpop.permute.xlu0 %1734
    %1736 = vrot.lane.b32.xlu0 %v1703, 108
    %v1737 = vpop.permute.xlu0 %1736
    %1738 = vrot.lane.b32.xlu0 %v1683, 108
    %v1739 = vpop.permute.xlu0 %1738
    %1740 = vrot.lane.b32.xlu0 %v1707, 108
    %v1741 = vpop.permute.xlu0 %1740
    %v1746 = vmax.f32 %v1678, %v1735
    %v1747 = vmax.f32 %v1679, %v1735
    %v1748 = vmax.f32 %v1702, %v1737
    %v1749 = vmax.f32 %v1703, %v1737
    %v1750 = vmax.f32 %v1682, %v1739
    %v1751 = vmax.f32 %v1683, %v1739
    %v1752 = vmax.f32 %v1706, %v1741
    %v1753 = vmax.f32 %v1707, %v1741
    %1758 = vrot.lane.b32.xlu0 %v1680, 108
    %v1759 = vpop.permute.xlu0 %1758
    %1760 = vrot.lane.b32.xlu0 %v1704, 108
    %v1761 = vpop.permute.xlu0 %1760
    %1762 = vrot.lane.b32.xlu0 %v1684, 108
    %v1763 = vpop.permute.xlu0 %1762
    %1764 = vrot.lane.b32.xlu0 %v1708, 108
    %v1765 = vpop.permute.xlu0 %1764
    %v1770 = vmax.f32 %v1679, %v1759
    %v1771 = vmax.f32 %v1680, %v1759
    %v1772 = vmax.f32 %v1703, %v1761
    %v1773 = vmax.f32 %v1704, %v1761
    %v1774 = vmax.f32 %v1683, %v1763
    %v1775 = vmax.f32 %v1684, %v1763
    %v1776 = vmax.f32 %v1707, %v1765
    %v1777 = vmax.f32 %v1708, %v1765
    %1782 = vrot.lane.b32.xlu0 %v1681, 108
    %v1783 = vpop.permute.xlu0 %1782
    %1784 = vrot.lane.b32.xlu0 %v1705, 108
    %v1785 = vpop.permute.xlu0 %1784
    %1786 = vrot.lane.b32.xlu0 %v1685, 108
    %v1787 = vpop.permute.xlu0 %1786
    %1788 = vrot.lane.b32.xlu0 %v1709, 108
    %v1789 = vpop.permute.xlu0 %1788
    %vm1790 = vcmask 883712
    %v1791 = vsel %vm1790, %v1759, %v1783
    %v1792 = vsel %vm1790, %v1761, %v1785
    %v1793 = vsel %vm1790, %v1763, %v1787
    %v1794 = vsel %vm1790, %v1765, %v1789
    %v1799 = vmax.f32 %v1680, %v1791
    %v1800 = vmax.f32 %v1704, %v1792
    %v1801 = vmax.f32 %v1684, %v1793
    %v1802 = vmax.f32 %v1708, %v1794
    %v1807 = vmax.f32 %v1681, %v1783
    %v1808 = vmax.f32 %v1705, %v1785
    %v1809 = vmax.f32 %v1685, %v1787
    %v1810 = vmax.f32 %v1709, %v1789
    %1815 = vrot.lane.b32.xlu0 %v1726, 108
    %v1816 = vpop.permute.xlu0 %1815
    %1817 = vrot.lane.b32.xlu0 %v1727, 108
    %v1818 = vpop.permute.xlu0 %1817
    %1819 = vrot.lane.b32.xlu0 %v1728, 108
    %v1820 = vpop.permute.xlu0 %1819
    %1821 = vrot.lane.b32.xlu0 %v1729, 108
    %v1822 = vpop.permute.xlu0 %1821
    %1827 = vrot.lane.b32.xlu0 %v1726, 88
    %v1828 = vpop.permute.xlu0 %1827
    %1829 = vrot.lane.b32.xlu0 %v1727, 88
    %v1830 = vpop.permute.xlu0 %1829
    %1831 = vrot.lane.b32.xlu0 %v1728, 88
    %v1832 = vpop.permute.xlu0 %1831
    %1833 = vrot.lane.b32.xlu0 %v1729, 88
    %v1834 = vpop.permute.xlu0 %1833
    %1847 = vrot.lane.b32.xlu0 %v1746, 68
    %v1848 = vpop.permute.xlu0 %1847
    %1849 = vrot.lane.b32.xlu0 %v1747, 68
    %v1850 = vpop.permute.xlu0 %1849
    %1851 = vrot.lane.b32.xlu0 %v1748, 68
    %v1852 = vpop.permute.xlu0 %1851
    %1853 = vrot.lane.b32.xlu0 %v1749, 68
    %v1854 = vpop.permute.xlu0 %1853
    %1855 = vrot.lane.b32.xlu0 %v1750, 68
    %v1856 = vpop.permute.xlu0 %1855
    %1857 = vrot.lane.b32.xlu0 %v1751, 68
    %v1858 = vpop.permute.xlu0 %1857
    %1859 = vrot.lane.b32.xlu0 %v1752, 68
    %v1860 = vpop.permute.xlu0 %1859
    %1861 = vrot.lane.b32.xlu0 %v1753, 68
    %v1862 = vpop.permute.xlu0 %1861
    %vm1863 = vcmask 556032
    %v1864 = vsel %vm1863, %v1848, %v1850
    %v1865 = vsel %vm1863, %v1852, %v1854
    %v1866 = vsel %vm1863, %v1856, %v1858
    %v1867 = vsel %vm1863, %v1860, %v1862
    %1872 = vrot.lane.b32.xlu0 %v1747, 48
    %v1873 = vpop.permute.xlu0 %1872
    %1874 = vrot.lane.b32.xlu0 %v1749, 48
    %v1875 = vpop.permute.xlu0 %1874
    %1876 = vrot.lane.b32.xlu0 %v1751, 48
    %v1877 = vpop.permute.xlu0 %1876
    %1878 = vrot.lane.b32.xlu0 %v1753, 48
    %v1879 = vpop.permute.xlu0 %1878
    %1884 = vrot.lane.b32.xlu0 %v1747, 28
    %v1885 = vpop.permute.xlu0 %1884
    %1886 = vrot.lane.b32.xlu0 %v1749, 28
    %v1887 = vpop.permute.xlu0 %1886
    %1888 = vrot.lane.b32.xlu0 %v1751, 28
    %v1889 = vpop.permute.xlu0 %1888
    %1890 = vrot.lane.b32.xlu0 %v1753, 28
    %v1891 = vpop.permute.xlu0 %1890
    %1904 = vrot.lane.b32.xlu0 %v1770, 8
    %v1905 = vpop.permute.xlu0 %1904
    %1906 = vrot.lane.b32.xlu0 %v1771, 8
    %v1907 = vpop.permute.xlu0 %1906
    %1908 = vrot.lane.b32.xlu0 %v1772, 8
    %v1909 = vpop.permute.xlu0 %1908
    %1910 = vrot.lane.b32.xlu0 %v1773, 8
    %v1911 = vpop.permute.xlu0 %1910
    %1912 = vrot.lane.b32.xlu0 %v1774, 8
    %v1913 = vpop.permute.xlu0 %1912
    %1914 = vrot.lane.b32.xlu0 %v1775, 8
    %v1915 = vpop.permute.xlu0 %1914
    %1916 = vrot.lane.b32.xlu0 %v1776, 8
    %v1917 = vpop.permute.xlu0 %1916
    %1918 = vrot.lane.b32.xlu0 %v1777, 8
    %v1919 = vpop.permute.xlu0 %1918
    %vm1920 = vcmask 64512
    %v1921 = vsel %vm1920, %v1905, %v1907
    %v1922 = vsel %vm1920, %v1909, %v1911
    %v1923 = vsel %vm1920, %v1913, %v1915
    %v1924 = vsel %vm1920, %v1917, %v1919
    %1933 = vrot.lane.b32.xlu0 %v1771, 116
    %v1934 = vpop.permute.xlu0 %1933
    %1935 = vrot.lane.b32.xlu0 %v1773, 116
    %v1936 = vpop.permute.xlu0 %1935
    %1937 = vrot.lane.b32.xlu0 %v1775, 116
    %v1938 = vpop.permute.xlu0 %1937
    %1939 = vrot.lane.b32.xlu0 %v1777, 116
    %v1940 = vpop.permute.xlu0 %1939
    %1945 = vrot.lane.b32.xlu0 %v1771, 96
    %v1946 = vpop.permute.xlu0 %1945
    %1947 = vrot.lane.b32.xlu0 %v1773, 96
    %v1948 = vpop.permute.xlu0 %1947
    %1949 = vrot.lane.b32.xlu0 %v1775, 96
    %v1950 = vpop.permute.xlu0 %1949
    %1951 = vrot.lane.b32.xlu0 %v1777, 96
    %v1952 = vpop.permute.xlu0 %1951
    %1961 = vrot.lane.b32.xlu0 %v1799, 76
    %v1962 = vpop.permute.xlu0 %1961
    %1963 = vrot.lane.b32.xlu0 %v1800, 76
    %v1964 = vpop.permute.xlu0 %1963
    %1965 = vrot.lane.b32.xlu0 %v1801, 76
    %v1966 = vpop.permute.xlu0 %1965
    %1967 = vrot.lane.b32.xlu0 %v1802, 76
    %v1968 = vpop.permute.xlu0 %1967
    %1977 = vrot.lane.b32.xlu0 %v1807, 56
    %v1978 = vpop.permute.xlu0 %1977
    %1979 = vrot.lane.b32.xlu0 %v1808, 56
    %v1980 = vpop.permute.xlu0 %1979
    %1981 = vrot.lane.b32.xlu0 %v1809, 56
    %v1982 = vpop.permute.xlu0 %1981
    %1983 = vrot.lane.b32.xlu0 %v1810, 56
    %v1984 = vpop.permute.xlu0 %1983
    %1989 = vrot.lane.b32.xlu0 %v1807, 36
    %v1990 = vpop.permute.xlu0 %1989
    %1991 = vrot.lane.b32.xlu0 %v1808, 36
    %v1992 = vpop.permute.xlu0 %1991
    %1993 = vrot.lane.b32.xlu0 %v1809, 36
    %v1994 = vpop.permute.xlu0 %1993
    %1995 = vrot.lane.b32.xlu0 %v1810, 36
    %v1996 = vpop.permute.xlu0 %1995
    %vm2001 = vcmask 162816
    %v2002 = vsel %vm2001, %v1726, %v1816
    %v2003 = vsel %vm2001, %v1727, %v1818
    %v2004 = vsel %vm2001, %v1728, %v1820
    %v2005 = vsel %vm2001, %v1729, %v1822
    %vm2006 = vcmask 326656
    %v2007 = vsel %vm2006, %v2002, %v1828
    %v2008 = vsel %vm2006, %v2003, %v1830
    %v2009 = vsel %vm2006, %v2004, %v1832
    %v2010 = vsel %vm2006, %v2005, %v1834
    %vm2011 = vcmask 490496
    %v2012 = vsel %vm2011, %v2007, %v1864
    %v2013 = vsel %vm2011, %v2008, %v1865
    %v2014 = vsel %vm2011, %v2009, %v1866
    %v2015 = vsel %vm2011, %v2010, %v1867
    %vm2016 = vcmask 654336
    %v2017 = vsel %vm2016, %v2012, %v1873
    %v2018 = vsel %vm2016, %v2013, %v1875
    %v2019 = vsel %vm2016, %v2014, %v1877
    %v2020 = vsel %vm2016, %v2015, %v1879
    %vm2021 = vcmask 818176
    %v2022 = vsel %vm2021, %v2017, %v1885
    %v2023 = vsel %vm2021, %v2018, %v1887
    %v2024 = vsel %vm2021, %v2019, %v1889
    %v2025 = vsel %vm2021, %v2020, %v1891
    %vm2026 = vcmask 982016
    %v2027 = vsel %vm2026, %v2022, %v1905
    %v2028 = vsel %vm2026, %v2023, %v1909
    %v2029 = vsel %vm2026, %v2024, %v1913
    %v2030 = vsel %vm2026, %v2025, %v1917
    %vm2031 = vcmask 97280
    %v2032 = vsel %vm2031, %v1921, %v1934
    %v2033 = vsel %vm2031, %v1922, %v1936
    %v2034 = vsel %vm2031, %v1923, %v1938
    %v2035 = vsel %vm2031, %v1924, %v1940
    %vm2036 = vcmask 261120
    %v2037 = vsel %vm2036, %v2032, %v1946
    %v2038 = vsel %vm2036, %v2033, %v1948
    %v2039 = vsel %vm2036, %v2034, %v1950
    %v2040 = vsel %vm2036, %v2035, %v1952
    %vm2041 = vcmask 424960
    %v2042 = vsel %vm2041, %v2037, %v1962
    %v2043 = vsel %vm2041, %v2038, %v1964
    %v2044 = vsel %vm2041, %v2039, %v1966
    %v2045 = vsel %vm2041, %v2040, %v1968
    %vm2046 = vcmask 588800
    %v2047 = vsel %vm2046, %v2042, %v1978
    %v2048 = vsel %vm2046, %v2043, %v1980
    %v2049 = vsel %vm2046, %v2044, %v1982
    %v2050 = vsel %vm2046, %v2045, %v1984
    %vm2051 = vcmask 752640
    %v2052 = vsel %vm2051, %v2047, %v1990
    %v2053 = vsel %vm2051, %v2048, %v1992
    %v2054 = vsel %vm2051, %v2049, %v1994
    %v2055 = vsel %vm2051, %v2050, %v1996
    %v2056 = vand.u32 2147483647, %v2027
    %v2057 = vand.u32 2147483647, %v2052
    %v2058 = vand.u32 2147483647, %v2028
    %v2059 = vand.u32 2147483647, %v2053
    %v2060 = vand.u32 2147483647, %v2029
    %v2061 = vand.u32 2147483647, %v2054
    %v2062 = vand.u32 2147483647, %v2030
    %v2063 = vand.u32 2147483647, %v2055
    %v2064 = vadd.f32 %v2056, 1.0
    %v2065 = vadd.f32 %v2057, 1.0
    %v2066 = vadd.f32 %v2058, 1.0
    %v2067 = vadd.f32 %v2059, 1.0
    %v2068 = vadd.f32 %v2060, 1.0
    %v2069 = vadd.f32 %v2061, 1.0
    %v2070 = vadd.f32 %v2062, 1.0
    %v2071 = vadd.f32 %v2063, 1.0
    %v2072 = vrcp.pop %v2064
    %v2073 = vmul.f32 %v2027, %v2072
    %v2074 = vrcp.pop %v2065
    %v2075 = vmul.f32 %v2052, %v2074
    %v2076 = vrcp.pop %v2066
    %v2077 = vmul.f32 %v2028, %v2076
    %v2078 = vrcp.pop %v2067
    %v2079 = vmul.f32 %v2053, %v2078
    %v2080 = vrcp.pop %v2068
    %v2081 = vmul.f32 %v2029, %v2080
    %v2082 = vrcp.pop %v2069
    %v2083 = vmul.f32 %v2054, %v2082
    %v2084 = vrcp.pop %v2070
    %v2085 = vmul.f32 %v2030, %v2084
    %v2086 = vrcp.pop %v2071
    %v2087 = vmul.f32 %v2055, %v2086
    %v2088 = vpack.c.bf16 %v2077, %v2073
    %v2089 = vpack.c.bf16 %v2079, %v2075
    %v2090 = vpack.c.bf16 %v2085, %v2081
    %v2091 = vpack.c.bf16 %v2087, %v2083
    %v2096 = vunpack.c.l.b16 %v2088
    %v2097 = vunpack.c.l.b16 %v2089
    %v2098 = vunpack.c.l.b16 %v2090
    %v2099 = vunpack.c.l.b16 %v2091
    %v2100 = vld [vmem:[%s3] sm:$0xff]
    %v2101 = vld [vmem:[%s3 + $0x8] sm:$0xff]
    %v2102 = vld [vmem:[%s3 + $0x10] sm:$0xff]
    %v2103 = vld [vmem:[%s3 + $0x18] sm:$0xff]
    %v2104 = vld [vmem:[%s3 + $0x20] sm:$0xff]
    %v2105 = vld [vmem:[%s3 + $0x28] sm:$0xff]
    %v2106 = vld [vmem:[%s3 + $0x30] sm:$0xff]
    %v2107 = vld [vmem:[%s3 + $0x38] sm:$0xff]
    %v2108 = vld [vmem:[%s3 + $0x40] sm:$0xff]
    %v2109 = vld [vmem:[%s3 + $0x48] sm:$0xff]
    %v2110 = vld [vmem:[%s3 + $0x50] sm:$0xff]
    %v2111 = vld [vmem:[%s3 + $0x58] sm:$0xff]
    %v2112 = vld [vmem:[%s3 + $0x60] sm:$0xff]
    %v2113 = vld [vmem:[%s3 + $0x68] sm:$0xff]
    %v2114 = vld [vmem:[%s3 + $0x70] sm:$0xff]
    %v2115 = vld [vmem:[%s3 + $0x78] sm:$0xff]
    %v2116 = vld [vmem:[%s3 + $0x80] sm:$0xff]
    %v2117 = vld [vmem:[%s3 + $0x88] sm:$0xff]
    %v2118 = vld [vmem:[%s3 + $0x90] sm:$0xff]
    %v2119 = vld [vmem:[%s3 + $0x98] sm:$0xff]
    %v2120 = vld [vmem:[%s3 + $0xa0] sm:$0xff]
    %v2121 = vld [vmem:[%s3 + $0xa8] sm:$0xff]
    %v2122 = vld [vmem:[%s3 + $0xb0] sm:$0xff]
    %v2123 = vld [vmem:[%s3 + $0xb8] sm:$0xff]
    %v2124 = vld [vmem:[%s3 + $0xc0] sm:$0xff]
    %v2125 = vld [vmem:[%s3 + $0xc8] sm:$0xff]
    %v2126 = vld [vmem:[%s3 + $0xd0] sm:$0xff]
    %v2127 = vld [vmem:[%s3 + $0xd8] sm:$0xff]
    %v2128 = vld [vmem:[%s3 + $0xe0] sm:$0xff]
    %v2129 = vld [vmem:[%s3 + $0xe8] sm:$0xff]
    %v2130 = vunpack.c.h.b16 %v2088
    %v2131 = vunpack.c.h.b16 %v2089
    %v2132 = vunpack.c.h.b16 %v2090
    %v2133 = vunpack.c.h.b16 %v2091
    %v2134 = vpack.c.b16 %v2097, %v2096
    %v2135 = vpack.c.b16 %v2131, %v2130
    %v2136 = vpack.c.b16 %v2099, %v2098
    %v2137 = vpack.c.b16 %v2133, %v2132
    %v2139 = vshrl.u32 %v2134, 16
    %v2141 = vrot.slane %v2139, 4
    %v2142 = vshll.u32 %v2134, 16
    %v2144 = vrot.slane %v2142, 5
    %v2145 = vor.u32 %v2141, %v2144
    %v2146 = vrot.slane %v2145, 4
    %v2148 = vshll.u32 %v2135, 16
    %v2150 = vrot.slane %v2148, 5
    %v2151 = vsel %vm76, %v2146, %v2150
    %v2153 = vshrl.u32 %v2136, 16
    %v2155 = vrot.slane %v2153, 4
    %v2156 = vshll.u32 %v2136, 16
    %v2158 = vrot.slane %v2156, 5
    %v2159 = vor.u32 %v2155, %v2158
    %v2160 = vrot.slane %v2159, 4
    %v2162 = vshll.u32 %v2137, 16
    %v2164 = vrot.slane %v2162, 5
    %v2165 = vsel %vm76, %v2160, %v2164
    %s2166 = scalar_lea.vmem %s3, 240
    %v2167 = vld [vmem:[%s2166] sm:$0xff]
    %v2168 = vld [vmem:[%s2166 + $0x8] sm:$0xff]
    %v2169 = vld [vmem:[%s2166 + $0x10] sm:$0xff]
    %v2170 = vld [vmem:[%s2166 + $0x18] sm:$0xff]
    %v2171 = vld [vmem:[%s2166 + $0x20] sm:$0xff]
    %v2172 = vld [vmem:[%s2166 + $0x28] sm:$0xff]
    %v2173 = vld [vmem:[%s2166 + $0x30] sm:$0xff]
    %v2174 = vld [vmem:[%s2166 + $0x38] sm:$0xff]
    %v2175 = vld [vmem:[%s2166 + $0x40] sm:$0xff]
    %v2176 = vld [vmem:[%s2166 + $0x48] sm:$0xff]
    %v2177 = vld [vmem:[%s2166 + $0x50] sm:$0xff]
    %v2178 = vld [vmem:[%s2166 + $0x58] sm:$0xff]
    %v2179 = vld [vmem:[%s2166 + $0x60] sm:$0xff]
    %v2180 = vld [vmem:[%s2166 + $0x68] sm:$0xff]
    %v2181 = vld [vmem:[%s2166 + $0x70] sm:$0xff]
    %v2182 = vld [vmem:[%s2166 + $0x78] sm:$0xff]
    %v2183 = vld [vmem:[%s2166 + $0x80] sm:$0xff]
    %v2184 = vld [vmem:[%s2166 + $0x88] sm:$0xff]
    %v2185 = vld [vmem:[%s2166 + $0x90] sm:$0xff]
    %v2186 = vld [vmem:[%s2166 + $0x98] sm:$0xff]
    %v2187 = vld [vmem:[%s2166 + $0xa0] sm:$0xff]
    %v2188 = vld [vmem:[%s2166 + $0xa8] sm:$0xff]
    %v2189 = vld [vmem:[%s2166 + $0xb0] sm:$0xff]
    %v2190 = vld [vmem:[%s2166 + $0xb8] sm:$0xff]
    %v2191 = vld [vmem:[%s2166 + $0xc0] sm:$0xff]
    %v2192 = vld [vmem:[%s2166 + $0xc8] sm:$0xff]
    %v2193 = vld [vmem:[%s2166 + $0xd0] sm:$0xff]
    %v2194 = vld [vmem:[%s2166 + $0xd8] sm:$0xff]
    %v2195 = vld [vmem:[%s2166 + $0xe0] sm:$0xff]
    %v2196 = vld [vmem:[%s2166 + $0xe8] sm:$0xff]
    %v2197 = vunpack.c.l.b16 %v2151
    %v2198 = vunpack.c.h.b16 %v2151
    %v2199 = vunpack.c.l.b16 %v2165
    %v2200 = vunpack.c.h.b16 %v2165
    %v2201 = vpack.c.b16 %v2199, %v2197
    %v2202 = vpack.c.b16 %v2200, %v2198
    %v2234 = vunpack.c.l.b16 %v2167
    %v2235 = vunpack.c.h.b16 %v2167
    %v2236 = vunpack.c.l.b16 %v2168
    %v2237 = vunpack.c.h.b16 %v2168
    %v2238 = vunpack.c.l.b16 %v2169
    %v2239 = vunpack.c.h.b16 %v2169
    %v2240 = vunpack.c.l.b16 %v2170
    %v2241 = vunpack.c.h.b16 %v2170
    %v2242 = vunpack.c.l.b16 %v2171
    %v2243 = vunpack.c.h.b16 %v2171
    %v2244 = vunpack.c.l.b16 %v2172
    %v2245 = vunpack.c.h.b16 %v2172
    %v2246 = vunpack.c.l.b16 %v2173
    %v2247 = vunpack.c.h.b16 %v2173
    %v2248 = vunpack.c.l.b16 %v2174
    %v2249 = vunpack.c.h.b16 %v2174
    %v2250 = vunpack.c.l.b16 %v2175
    %v2251 = vunpack.c.h.b16 %v2175
    %v2252 = vunpack.c.l.b16 %v2176
    %v2253 = vunpack.c.h.b16 %v2176
    %v2254 = vunpack.c.l.b16 %v2177
    %v2255 = vunpack.c.h.b16 %v2177
    %v2256 = vunpack.c.l.b16 %v2178
    %v2257 = vunpack.c.h.b16 %v2178
    %v2258 = vunpack.c.l.b16 %v2179
    %v2259 = vunpack.c.h.b16 %v2179
    %v2260 = vunpack.c.l.b16 %v2180
    %v2261 = vunpack.c.h.b16 %v2180
    %v2262 = vunpack.c.l.b16 %v2181
    %v2263 = vunpack.c.h.b16 %v2181
    %v2264 = vunpack.c.l.b16 %v2182
    %v2265 = vunpack.c.h.b16 %v2182
    %v2266 = vunpack.c.l.b16 %v2183
    %v2267 = vunpack.c.h.b16 %v2183
    %v2268 = vunpack.c.l.b16 %v2184
    %v2269 = vunpack.c.h.b16 %v2184
    %v2270 = vunpack.c.l.b16 %v2185
    %v2271 = vunpack.c.h.b16 %v2185
    %v2272 = vunpack.c.l.b16 %v2186
    %v2273 = vunpack.c.h.b16 %v2186
    %v2274 = vunpack.c.l.b16 %v2187
    %v2275 = vunpack.c.h.b16 %v2187
    %v2276 = vunpack.c.l.b16 %v2188
    %v2277 = vunpack.c.h.b16 %v2188
    %v2278 = vunpack.c.l.b16 %v2189
    %v2279 = vunpack.c.h.b16 %v2189
    %v2280 = vunpack.c.l.b16 %v2190
    %v2281 = vunpack.c.h.b16 %v2190
    %v2282 = vunpack.c.l.b16 %v2191
    %v2283 = vunpack.c.h.b16 %v2191
    %v2284 = vunpack.c.l.b16 %v2192
    %v2285 = vunpack.c.h.b16 %v2192
    %v2286 = vunpack.c.l.b16 %v2193
    %v2287 = vunpack.c.h.b16 %v2193
    %v2288 = vunpack.c.l.b16 %v2194
    %v2289 = vunpack.c.h.b16 %v2194
    %v2290 = vunpack.c.l.b16 %v2195
    %v2291 = vunpack.c.h.b16 %v2195
    %v2292 = vunpack.c.l.b16 %v2196
    %v2293 = vunpack.c.h.b16 %v2196
    %v2294 = vpack.c.b16 %v2236, %v2234
    %v2295 = vpack.c.b16 %v2237, %v2235
    %v2296 = vpack.c.b16 %v2240, %v2238
    %v2297 = vpack.c.b16 %v2241, %v2239
    %v2298 = vpack.c.b16 %v2244, %v2242
    %v2299 = vpack.c.b16 %v2245, %v2243
    %v2300 = vpack.c.b16 %v2248, %v2246
    %v2301 = vpack.c.b16 %v2249, %v2247
    %v2302 = vpack.c.b16 %v2252, %v2250
    %v2303 = vpack.c.b16 %v2253, %v2251
    %v2304 = vpack.c.b16 %v2256, %v2254
    %v2305 = vpack.c.b16 %v2257, %v2255
    %v2306 = vpack.c.b16 %v2260, %v2258
    %v2307 = vpack.c.b16 %v2261, %v2259
    %v2308 = vpack.c.b16 %v2264, %v2262
    %v2309 = vpack.c.b16 %v2265, %v2263
    %v2310 = vpack.c.b16 %v2268, %v2266
    %v2311 = vpack.c.b16 %v2269, %v2267
    %v2312 = vpack.c.b16 %v2272, %v2270
    %v2313 = vpack.c.b16 %v2273, %v2271
    %v2314 = vpack.c.b16 %v2276, %v2274
    %v2315 = vpack.c.b16 %v2277, %v2275
    %v2316 = vpack.c.b16 %v2280, %v2278
    %v2317 = vpack.c.b16 %v2281, %v2279
    %v2318 = vpack.c.b16 %v2284, %v2282
    %v2319 = vpack.c.b16 %v2285, %v2283
    %v2320 = vpack.c.b16 %v2288, %v2286
    %v2321 = vpack.c.b16 %v2289, %v2287
    %v2322 = vpack.c.b16 %v2292, %v2290
    %v2323 = vpack.c.b16 %v2293, %v2291
    %vm2354 = vcmask 916480
    %v2356 = vsel %vm2354, %v2202, 0
    %2358 = vmatprep.subr.bf16.mxu0 %v2309
    %2359 = vmatpush1.bf16.msra.mxu0 %v2308
    %2360 = vmatprep.subr.bf16.mxu0 %v2307
    %2361 = vmatpush1.bf16.msra.mxu0 %v2306
    %2362 = vmatprep.subr.bf16.mxu0 %v2305
    %2363 = vmatpush1.bf16.msra.mxu0 %v2304
    %2364 = vmatprep.subr.bf16.mxu0 %v2303
    %2365 = vmatpush1.bf16.msra.mxu0 %v2302
    %2366 = vmatprep.subr.bf16.mxu0 %v2301
    %2367 = vmatpush1.bf16.msra.mxu0 %v2300
    %2368 = vmatprep.subr.bf16.mxu0 %v2299
    %2369 = vmatpush1.bf16.msra.mxu0 %v2298
    %2370 = vmatprep.subr.bf16.mxu0 %v2297
    %2371 = vmatpush1.bf16.msra.mxu0 %v2296
    %2372 = vmatprep.subr.bf16.mxu0 %v2295
    %2373 = vmatpush1.bf16.msra.mxu0 %v2294
    %2374 = vmatprep.subr.bf16.mxu0 0
    %2375 = vmatpush2.bf16.msra.mxu0 0
    %2376 = vmatprep.subr.bf16.mxu0 %v2323
    %2377 = vmatpush2.bf16.msra.mxu0 %v2322
    %2378 = vmatprep.subr.bf16.mxu0 %v2321
    %2379 = vmatpush2.bf16.msra.mxu0 %v2320
    %2380 = vmatprep.subr.bf16.mxu0 %v2319
    %2381 = vmatpush2.bf16.msra.mxu0 %v2318
    %2382 = vmatprep.subr.bf16.mxu0 %v2317
    %2383 = vmatpush2.bf16.msra.mxu0 %v2316
    %2384 = vmatprep.subr.bf16.mxu0 %v2315
    %2385 = vmatpush2.bf16.msra.mxu0 %v2314
    %2386 = vmatprep.subr.bf16.mxu0 %v2313
    %2387 = vmatpush2.bf16.msra.mxu0 %v2312
    %2388 = vmatprep.subr.bf16.mxu0 %v2311
    %2389 = vmatpush2.bf16.msra.mxu0 %v2310
    %2390 = vmatprep.mubr.bf16.mxu0 %v2356
    %2391 = vmatmul.mubr.bf16.gmra.mxu0 %v2201
    %v2392 = vpop.f32.mrf.mxu0
    %v2393 = vadd.f32 0.0, %v2392
    %v2394 = vpop.f32.mrf.mxu0
    %v2395 = vadd.f32 0.0, %v2394
    %v2396 = vpop.f32.mrf.mxu0
    %v2397 = vadd.f32 0.0, %v2396
    %v2398 = vpop.f32.mrf.mxu0
    %v2399 = vadd.f32 0.0, %v2398
    %2400 = vdwg.mxu0
    %v2401 = vpack.c.b16 %v2098, %v2096
    %v2402 = vpack.c.b16 %v2099, %v2097
    %v2434 = vunpack.c.l.b16 %v2100
    %v2435 = vunpack.c.h.b16 %v2100
    %v2436 = vunpack.c.l.b16 %v2101
    %v2437 = vunpack.c.h.b16 %v2101
    %v2438 = vunpack.c.l.b16 %v2102
    %v2439 = vunpack.c.h.b16 %v2102
    %v2440 = vunpack.c.l.b16 %v2103
    %v2441 = vunpack.c.h.b16 %v2103
    %v2442 = vunpack.c.l.b16 %v2104
    %v2443 = vunpack.c.h.b16 %v2104
    %v2444 = vunpack.c.l.b16 %v2105
    %v2445 = vunpack.c.h.b16 %v2105
    %v2446 = vunpack.c.l.b16 %v2106
    %v2447 = vunpack.c.h.b16 %v2106
    %v2448 = vunpack.c.l.b16 %v2107
    %v2449 = vunpack.c.h.b16 %v2107
    %v2450 = vunpack.c.l.b16 %v2108
    %v2451 = vunpack.c.h.b16 %v2108
    %v2452 = vunpack.c.l.b16 %v2109
    %v2453 = vunpack.c.h.b16 %v2109
    %v2454 = vunpack.c.l.b16 %v2110
    %v2455 = vunpack.c.h.b16 %v2110
    %v2456 = vunpack.c.l.b16 %v2111
    %v2457 = vunpack.c.h.b16 %v2111
    %v2458 = vunpack.c.l.b16 %v2112
    %v2459 = vunpack.c.h.b16 %v2112
    %v2460 = vunpack.c.l.b16 %v2113
    %v2461 = vunpack.c.h.b16 %v2113
    %v2462 = vunpack.c.l.b16 %v2114
    %v2463 = vunpack.c.h.b16 %v2114
    %v2464 = vunpack.c.l.b16 %v2115
    %v2465 = vunpack.c.h.b16 %v2115
    %v2466 = vunpack.c.l.b16 %v2116
    %v2467 = vunpack.c.h.b16 %v2116
    %v2468 = vunpack.c.l.b16 %v2117
    %v2469 = vunpack.c.h.b16 %v2117
    %v2470 = vunpack.c.l.b16 %v2118
    %v2471 = vunpack.c.h.b16 %v2118
    %v2472 = vunpack.c.l.b16 %v2119
    %v2473 = vunpack.c.h.b16 %v2119
    %v2474 = vunpack.c.l.b16 %v2120
    %v2475 = vunpack.c.h.b16 %v2120
    %v2476 = vunpack.c.l.b16 %v2121
    %v2477 = vunpack.c.h.b16 %v2121
    %v2478 = vunpack.c.l.b16 %v2122
    %v2479 = vunpack.c.h.b16 %v2122
    %v2480 = vunpack.c.l.b16 %v2123
    %v2481 = vunpack.c.h.b16 %v2123
    %v2482 = vunpack.c.l.b16 %v2124
    %v2483 = vunpack.c.h.b16 %v2124
    %v2484 = vunpack.c.l.b16 %v2125
    %v2485 = vunpack.c.h.b16 %v2125
    %v2486 = vunpack.c.l.b16 %v2126
    %v2487 = vunpack.c.h.b16 %v2126
    %v2488 = vunpack.c.l.b16 %v2127
    %v2489 = vunpack.c.h.b16 %v2127
    %v2490 = vunpack.c.l.b16 %v2128
    %v2491 = vunpack.c.h.b16 %v2128
    %v2492 = vunpack.c.l.b16 %v2129
    %v2493 = vunpack.c.h.b16 %v2129
    %v2494 = vpack.c.b16 %v2436, %v2434
    %v2495 = vpack.c.b16 %v2437, %v2435
    %v2496 = vpack.c.b16 %v2440, %v2438
    %v2497 = vpack.c.b16 %v2441, %v2439
    %v2498 = vpack.c.b16 %v2444, %v2442
    %v2499 = vpack.c.b16 %v2445, %v2443
    %v2500 = vpack.c.b16 %v2448, %v2446
    %v2501 = vpack.c.b16 %v2449, %v2447
    %v2502 = vpack.c.b16 %v2452, %v2450
    %v2503 = vpack.c.b16 %v2453, %v2451
    %v2504 = vpack.c.b16 %v2456, %v2454
    %v2505 = vpack.c.b16 %v2457, %v2455
    %v2506 = vpack.c.b16 %v2460, %v2458
    %v2507 = vpack.c.b16 %v2461, %v2459
    %v2508 = vpack.c.b16 %v2464, %v2462
    %v2509 = vpack.c.b16 %v2465, %v2463
    %v2510 = vpack.c.b16 %v2468, %v2466
    %v2511 = vpack.c.b16 %v2469, %v2467
    %v2512 = vpack.c.b16 %v2472, %v2470
    %v2513 = vpack.c.b16 %v2473, %v2471
    %v2514 = vpack.c.b16 %v2476, %v2474
    %v2515 = vpack.c.b16 %v2477, %v2475
    %v2516 = vpack.c.b16 %v2480, %v2478
    %v2517 = vpack.c.b16 %v2481, %v2479
    %v2518 = vpack.c.b16 %v2484, %v2482
    %v2519 = vpack.c.b16 %v2485, %v2483
    %v2520 = vpack.c.b16 %v2488, %v2486
    %v2521 = vpack.c.b16 %v2489, %v2487
    %v2522 = vpack.c.b16 %v2492, %v2490
    %v2523 = vpack.c.b16 %v2493, %v2491
    %v2555 = vsel %vm2354, %v2402, 0
    %2557 = vmatprep.subr.bf16.mxu0 %v2509
    %2558 = vmatpush1.bf16.msra.mxu0 %v2508
    %2559 = vmatprep.subr.bf16.mxu0 %v2507
    %2560 = vmatpush1.bf16.msra.mxu0 %v2506
    %2561 = vmatprep.subr.bf16.mxu0 %v2505
    %2562 = vmatpush1.bf16.msra.mxu0 %v2504
    %2563 = vmatprep.subr.bf16.mxu0 %v2503
    %2564 = vmatpush1.bf16.msra.mxu0 %v2502
    %2565 = vmatprep.subr.bf16.mxu0 %v2501
    %2566 = vmatpush1.bf16.msra.mxu0 %v2500
    %2567 = vmatprep.subr.bf16.mxu0 %v2499
    %2568 = vmatpush1.bf16.msra.mxu0 %v2498
    %2569 = vmatprep.subr.bf16.mxu0 %v2497
    %2570 = vmatpush1.bf16.msra.mxu0 %v2496
    %2571 = vmatprep.subr.bf16.mxu0 %v2495
    %2572 = vmatpush1.bf16.msra.mxu0 %v2494
    %2573 = vmatprep.subr.bf16.mxu0 0
    %2574 = vmatpush2.bf16.msra.mxu0 0
    %2575 = vmatprep.subr.bf16.mxu0 %v2523
    %2576 = vmatpush2.bf16.msra.mxu0 %v2522
    %2577 = vmatprep.subr.bf16.mxu0 %v2521
    %2578 = vmatpush2.bf16.msra.mxu0 %v2520
    %2579 = vmatprep.subr.bf16.mxu0 %v2519
    %2580 = vmatpush2.bf16.msra.mxu0 %v2518
    %2581 = vmatprep.subr.bf16.mxu0 %v2517
    %2582 = vmatpush2.bf16.msra.mxu0 %v2516
    %2583 = vmatprep.subr.bf16.mxu0 %v2515
    %2584 = vmatpush2.bf16.msra.mxu0 %v2514
    %2585 = vmatprep.subr.bf16.mxu0 %v2513
    %2586 = vmatpush2.bf16.msra.mxu0 %v2512
    %2587 = vmatprep.subr.bf16.mxu0 %v2511
    %2588 = vmatpush2.bf16.msra.mxu0 %v2510
    %2589 = vmatprep.mubr.bf16.mxu0 %v2555
    %2590 = vmatmul.mubr.bf16.gmra.mxu0 %v2401
    %v2591 = vpop.f32.mrf.mxu0
    %v2592 = vadd.f32 %v2393, %v2591
    %v2593 = vpop.f32.mrf.mxu0
    %v2594 = vadd.f32 %v2395, %v2593
    %v2595 = vpop.f32.mrf.mxu0
    %v2596 = vadd.f32 %v2397, %v2595
    %v2597 = vpop.f32.mrf.mxu0
    %v2598 = vadd.f32 %v2399, %v2597
    %2599 = vdwg.mxu0
    %v2600 = vrot.slane %v2134, 5
    %v2601 = vrot.slane %v2600, 4
    %v2602 = vrot.slane %v2135, 5
    %v2603 = vsel %vm536, %v2601, %v2602
    %v2604 = vrot.slane %v2136, 5
    %v2605 = vrot.slane %v2604, 4
    %v2606 = vrot.slane %v2137, 5
    %v2607 = vsel %vm536, %v2605, %v2606
    %s2608 = scalar_lea.vmem %s3, 480
    %v2609 = vld [vmem:[%s2608] sm:$0xff]
    %v2610 = vld [vmem:[%s2608 + $0x8] sm:$0xff]
    %v2611 = vld [vmem:[%s2608 + $0x10] sm:$0xff]
    %v2612 = vld [vmem:[%s2608 + $0x18] sm:$0xff]
    %v2613 = vld [vmem:[%s2608 + $0x20] sm:$0xff]
    %v2614 = vld [vmem:[%s2608 + $0x28] sm:$0xff]
    %v2615 = vld [vmem:[%s2608 + $0x30] sm:$0xff]
    %v2616 = vld [vmem:[%s2608 + $0x38] sm:$0xff]
    %v2617 = vld [vmem:[%s2608 + $0x40] sm:$0xff]
    %v2618 = vld [vmem:[%s2608 + $0x48] sm:$0xff]
    %v2619 = vld [vmem:[%s2608 + $0x50] sm:$0xff]
    %v2620 = vld [vmem:[%s2608 + $0x58] sm:$0xff]
    %v2621 = vld [vmem:[%s2608 + $0x60] sm:$0xff]
    %v2622 = vld [vmem:[%s2608 + $0x68] sm:$0xff]
    %v2623 = vld [vmem:[%s2608 + $0x70] sm:$0xff]
    %v2624 = vld [vmem:[%s2608 + $0x78] sm:$0xff]
    %v2625 = vld [vmem:[%s2608 + $0x80] sm:$0xff]
    %v2626 = vld [vmem:[%s2608 + $0x88] sm:$0xff]
    %v2627 = vld [vmem:[%s2608 + $0x90] sm:$0xff]
    %v2628 = vld [vmem:[%s2608 + $0x98] sm:$0xff]
    %v2629 = vld [vmem:[%s2608 + $0xa0] sm:$0xff]
    %v2630 = vld [vmem:[%s2608 + $0xa8] sm:$0xff]
    %v2631 = vld [vmem:[%s2608 + $0xb0] sm:$0xff]
    %v2632 = vld [vmem:[%s2608 + $0xb8] sm:$0xff]
    %v2633 = vld [vmem:[%s2608 + $0xc0] sm:$0xff]
    %v2634 = vld [vmem:[%s2608 + $0xc8] sm:$0xff]
    %v2635 = vld [vmem:[%s2608 + $0xd0] sm:$0xff]
    %v2636 = vld [vmem:[%s2608 + $0xd8] sm:$0xff]
    %v2637 = vld [vmem:[%s2608 + $0xe0] sm:$0xff]
    %v2638 = vld [vmem:[%s2608 + $0xe8] sm:$0xff]
    %v2639 = vunpack.c.l.b16 %v2603
    %v2640 = vunpack.c.h.b16 %v2603
    %v2641 = vunpack.c.l.b16 %v2607
    %v2642 = vunpack.c.h.b16 %v2607
    %v2643 = vpack.c.b16 %v2641, %v2639
    %v2644 = vpack.c.b16 %v2642, %v2640
    %v2676 = vunpack.c.l.b16 %v2609
    %v2677 = vunpack.c.h.b16 %v2609
    %v2678 = vunpack.c.l.b16 %v2610
    %v2679 = vunpack.c.h.b16 %v2610
    %v2680 = vunpack.c.l.b16 %v2611
    %v2681 = vunpack.c.h.b16 %v2611
    %v2682 = vunpack.c.l.b16 %v2612
    %v2683 = vunpack.c.h.b16 %v2612
    %v2684 = vunpack.c.l.b16 %v2613
    %v2685 = vunpack.c.h.b16 %v2613
    %v2686 = vunpack.c.l.b16 %v2614
    %v2687 = vunpack.c.h.b16 %v2614
    %v2688 = vunpack.c.l.b16 %v2615
    %v2689 = vunpack.c.h.b16 %v2615
    %v2690 = vunpack.c.l.b16 %v2616
    %v2691 = vunpack.c.h.b16 %v2616
    %v2692 = vunpack.c.l.b16 %v2617
    %v2693 = vunpack.c.h.b16 %v2617
    %v2694 = vunpack.c.l.b16 %v2618
    %v2695 = vunpack.c.h.b16 %v2618
    %v2696 = vunpack.c.l.b16 %v2619
    %v2697 = vunpack.c.h.b16 %v2619
    %v2698 = vunpack.c.l.b16 %v2620
    %v2699 = vunpack.c.h.b16 %v2620
    %v2700 = vunpack.c.l.b16 %v2621
    %v2701 = vunpack.c.h.b16 %v2621
    %v2702 = vunpack.c.l.b16 %v2622
    %v2703 = vunpack.c.h.b16 %v2622
    %v2704 = vunpack.c.l.b16 %v2623
    %v2705 = vunpack.c.h.b16 %v2623
    %v2706 = vunpack.c.l.b16 %v2624
    %v2707 = vunpack.c.h.b16 %v2624
    %v2708 = vunpack.c.l.b16 %v2625
    %v2709 = vunpack.c.h.b16 %v2625
    %v2710 = vunpack.c.l.b16 %v2626
    %v2711 = vunpack.c.h.b16 %v2626
    %v2712 = vunpack.c.l.b16 %v2627
    %v2713 = vunpack.c.h.b16 %v2627
    %v2714 = vunpack.c.l.b16 %v2628
    %v2715 = vunpack.c.h.b16 %v2628
    %v2716 = vunpack.c.l.b16 %v2629
    %v2717 = vunpack.c.h.b16 %v2629
    %v2718 = vunpack.c.l.b16 %v2630
    %v2719 = vunpack.c.h.b16 %v2630
    %v2720 = vunpack.c.l.b16 %v2631
    %v2721 = vunpack.c.h.b16 %v2631
    %v2722 = vunpack.c.l.b16 %v2632
    %v2723 = vunpack.c.h.b16 %v2632
    %v2724 = vunpack.c.l.b16 %v2633
    %v2725 = vunpack.c.h.b16 %v2633
    %v2726 = vunpack.c.l.b16 %v2634
    %v2727 = vunpack.c.h.b16 %v2634
    %v2728 = vunpack.c.l.b16 %v2635
    %v2729 = vunpack.c.h.b16 %v2635
    %v2730 = vunpack.c.l.b16 %v2636
    %v2731 = vunpack.c.h.b16 %v2636
    %v2732 = vunpack.c.l.b16 %v2637
    %v2733 = vunpack.c.h.b16 %v2637
    %v2734 = vunpack.c.l.b16 %v2638
    %v2735 = vunpack.c.h.b16 %v2638
    %v2736 = vpack.c.b16 %v2678, %v2676
    %v2737 = vpack.c.b16 %v2679, %v2677
    %v2738 = vpack.c.b16 %v2682, %v2680
    %v2739 = vpack.c.b16 %v2683, %v2681
    %v2740 = vpack.c.b16 %v2686, %v2684
    %v2741 = vpack.c.b16 %v2687, %v2685
    %v2742 = vpack.c.b16 %v2690, %v2688
    %v2743 = vpack.c.b16 %v2691, %v2689
    %v2744 = vpack.c.b16 %v2694, %v2692
    %v2745 = vpack.c.b16 %v2695, %v2693
    %v2746 = vpack.c.b16 %v2698, %v2696
    %v2747 = vpack.c.b16 %v2699, %v2697
    %v2748 = vpack.c.b16 %v2702, %v2700
    %v2749 = vpack.c.b16 %v2703, %v2701
    %v2750 = vpack.c.b16 %v2706, %v2704
    %v2751 = vpack.c.b16 %v2707, %v2705
    %v2752 = vpack.c.b16 %v2710, %v2708
    %v2753 = vpack.c.b16 %v2711, %v2709
    %v2754 = vpack.c.b16 %v2714, %v2712
    %v2755 = vpack.c.b16 %v2715, %v2713
    %v2756 = vpack.c.b16 %v2718, %v2716
    %v2757 = vpack.c.b16 %v2719, %v2717
    %v2758 = vpack.c.b16 %v2722, %v2720
    %v2759 = vpack.c.b16 %v2723, %v2721
    %v2760 = vpack.c.b16 %v2726, %v2724
    %v2761 = vpack.c.b16 %v2727, %v2725
    %v2762 = vpack.c.b16 %v2730, %v2728
    %v2763 = vpack.c.b16 %v2731, %v2729
    %v2764 = vpack.c.b16 %v2734, %v2732
    %v2765 = vpack.c.b16 %v2735, %v2733
    %v2797 = vsel %vm2354, %v2644, 0
    %2799 = vmatprep.subr.bf16.mxu0 %v2751
    %2800 = vmatpush1.bf16.msra.mxu0 %v2750
    %2801 = vmatprep.subr.bf16.mxu0 %v2749
    %2802 = vmatpush1.bf16.msra.mxu0 %v2748
    %2803 = vmatprep.subr.bf16.mxu0 %v2747
    %2804 = vmatpush1.bf16.msra.mxu0 %v2746
    %2805 = vmatprep.subr.bf16.mxu0 %v2745
    %2806 = vmatpush1.bf16.msra.mxu0 %v2744
    %2807 = vmatprep.subr.bf16.mxu0 %v2743
    %2808 = vmatpush1.bf16.msra.mxu0 %v2742
    %2809 = vmatprep.subr.bf16.mxu0 %v2741
    %2810 = vmatpush1.bf16.msra.mxu0 %v2740
    %2811 = vmatprep.subr.bf16.mxu0 %v2739
    %2812 = vmatpush1.bf16.msra.mxu0 %v2738
    %2813 = vmatprep.subr.bf16.mxu0 %v2737
    %2814 = vmatpush1.bf16.msra.mxu0 %v2736
    %2815 = vmatprep.subr.bf16.mxu0 0
    %2816 = vmatpush2.bf16.msra.mxu0 0
    %2817 = vmatprep.subr.bf16.mxu0 %v2765
    %2818 = vmatpush2.bf16.msra.mxu0 %v2764
    %2819 = vmatprep.subr.bf16.mxu0 %v2763
    %2820 = vmatpush2.bf16.msra.mxu0 %v2762
    %2821 = vmatprep.subr.bf16.mxu0 %v2761
    %2822 = vmatpush2.bf16.msra.mxu0 %v2760
    %2823 = vmatprep.subr.bf16.mxu0 %v2759
    %2824 = vmatpush2.bf16.msra.mxu0 %v2758
    %2825 = vmatprep.subr.bf16.mxu0 %v2757
    %2826 = vmatpush2.bf16.msra.mxu0 %v2756
    %2827 = vmatprep.subr.bf16.mxu0 %v2755
    %2828 = vmatpush2.bf16.msra.mxu0 %v2754
    %2829 = vmatprep.subr.bf16.mxu0 %v2753
    %2830 = vmatpush2.bf16.msra.mxu0 %v2752
    %2831 = vmatprep.mubr.bf16.mxu0 %v2797
    %2832 = vmatmul.mubr.bf16.gmra.mxu0 %v2643
    %v2833 = vpop.f32.mrf.mxu0
    %v2834 = vadd.f32 0.0, %v2833
    %v2835 = vpop.f32.mrf.mxu0
    %v2836 = vadd.f32 0.0, %v2835
    %v2837 = vpop.f32.mrf.mxu0
    %v2838 = vadd.f32 0.0, %v2837
    %v2839 = vpop.f32.mrf.mxu0
    %v2840 = vadd.f32 0.0, %v2839
    %2841 = vdwg.mxu0
    %v2842 = vadd.f32 %v2592, %v2834
    %v2843 = vadd.f32 %v2594, %v2836
    %v2844 = vadd.f32 %v2596, %v2838
    %v2845 = vadd.f32 %v2598, %v2840
    %v2846 = vrot.slane %v2139, 5
    %v2847 = vrot.slane %v2142, 6
    %v2848 = vor.u32 %v2846, %v2847
    %v2849 = vrot.slane %v2848, 4
    %v2850 = vshrl.u32 %v2135, 16
    %v2852 = vrot.slane %v2850, 5
    %v2853 = vrot.slane %v2148, 6
    %v2854 = vor.u32 %v2852, %v2853
    %v2855 = vsel %vm784, %v2849, %v2854
    %v2856 = vrot.slane %v2153, 5
    %v2857 = vrot.slane %v2156, 6
    %v2858 = vor.u32 %v2856, %v2857
    %v2859 = vrot.slane %v2858, 4
    %v2860 = vshrl.u32 %v2137, 16
    %v2862 = vrot.slane %v2860, 5
    %v2863 = vrot.slane %v2162, 6
    %v2864 = vor.u32 %v2862, %v2863
    %v2865 = vsel %vm784, %v2859, %v2864
    %s2866 = scalar_lea.vmem %s3, 720
    %v2867 = vld [vmem:[%s2866] sm:$0xff]
    %v2868 = vld [vmem:[%s2866 + $0x8] sm:$0xff]
    %v2869 = vld [vmem:[%s2866 + $0x10] sm:$0xff]
    %v2870 = vld [vmem:[%s2866 + $0x18] sm:$0xff]
    %v2871 = vld [vmem:[%s2866 + $0x20] sm:$0xff]
    %v2872 = vld [vmem:[%s2866 + $0x28] sm:$0xff]
    %v2873 = vld [vmem:[%s2866 + $0x30] sm:$0xff]
    %v2874 = vld [vmem:[%s2866 + $0x38] sm:$0xff]
    %v2875 = vld [vmem:[%s2866 + $0x40] sm:$0xff]
    %v2876 = vld [vmem:[%s2866 + $0x48] sm:$0xff]
    %v2877 = vld [vmem:[%s2866 + $0x50] sm:$0xff]
    %v2878 = vld [vmem:[%s2866 + $0x58] sm:$0xff]
    %v2879 = vld [vmem:[%s2866 + $0x60] sm:$0xff]
    %v2880 = vld [vmem:[%s2866 + $0x68] sm:$0xff]
    %v2881 = vld [vmem:[%s2866 + $0x70] sm:$0xff]
    %v2882 = vld [vmem:[%s2866 + $0x78] sm:$0xff]
    %v2883 = vld [vmem:[%s2866 + $0x80] sm:$0xff]
    %v2884 = vld [vmem:[%s2866 + $0x88] sm:$0xff]
    %v2885 = vld [vmem:[%s2866 + $0x90] sm:$0xff]
    %v2886 = vld [vmem:[%s2866 + $0x98] sm:$0xff]
    %v2887 = vld [vmem:[%s2866 + $0xa0] sm:$0xff]
    %v2888 = vld [vmem:[%s2866 + $0xa8] sm:$0xff]
    %v2889 = vld [vmem:[%s2866 + $0xb0] sm:$0xff]
    %v2890 = vld [vmem:[%s2866 + $0xb8] sm:$0xff]
    %v2891 = vld [vmem:[%s2866 + $0xc0] sm:$0xff]
    %v2892 = vld [vmem:[%s2866 + $0xc8] sm:$0xff]
    %v2893 = vld [vmem:[%s2866 + $0xd0] sm:$0xff]
    %v2894 = vld [vmem:[%s2866 + $0xd8] sm:$0xff]
    %v2895 = vld [vmem:[%s2866 + $0xe0] sm:$0xff]
    %v2896 = vld [vmem:[%s2866 + $0xe8] sm:$0xff]
    %v2897 = vunpack.c.l.b16 %v2855
    %v2898 = vunpack.c.h.b16 %v2855
    %v2899 = vunpack.c.l.b16 %v2865
    %v2900 = vunpack.c.h.b16 %v2865
    %v2901 = vpack.c.b16 %v2899, %v2897
    %v2902 = vpack.c.b16 %v2900, %v2898
    %v2934 = vunpack.c.l.b16 %v2867
    %v2935 = vunpack.c.h.b16 %v2867
    %v2936 = vunpack.c.l.b16 %v2868
    %v2937 = vunpack.c.h.b16 %v2868
    %v2938 = vunpack.c.l.b16 %v2869
    %v2939 = vunpack.c.h.b16 %v2869
    %v2940 = vunpack.c.l.b16 %v2870
    %v2941 = vunpack.c.h.b16 %v2870
    %v2942 = vunpack.c.l.b16 %v2871
    %v2943 = vunpack.c.h.b16 %v2871
    %v2944 = vunpack.c.l.b16 %v2872
    %v2945 = vunpack.c.h.b16 %v2872
    %v2946 = vunpack.c.l.b16 %v2873
    %v2947 = vunpack.c.h.b16 %v2873
    %v2948 = vunpack.c.l.b16 %v2874
    %v2949 = vunpack.c.h.b16 %v2874
    %v2950 = vunpack.c.l.b16 %v2875
    %v2951 = vunpack.c.h.b16 %v2875
    %v2952 = vunpack.c.l.b16 %v2876
    %v2953 = vunpack.c.h.b16 %v2876
    %v2954 = vunpack.c.l.b16 %v2877
    %v2955 = vunpack.c.h.b16 %v2877
    %v2956 = vunpack.c.l.b16 %v2878
    %v2957 = vunpack.c.h.b16 %v2878
    %v2958 = vunpack.c.l.b16 %v2879
    %v2959 = vunpack.c.h.b16 %v2879
    %v2960 = vunpack.c.l.b16 %v2880
    %v2961 = vunpack.c.h.b16 %v2880
    %v2962 = vunpack.c.l.b16 %v2881
    %v2963 = vunpack.c.h.b16 %v2881
    %v2964 = vunpack.c.l.b16 %v2882
    %v2965 = vunpack.c.h.b16 %v2882
    %v2966 = vunpack.c.l.b16 %v2883
    %v2967 = vunpack.c.h.b16 %v2883
    %v2968 = vunpack.c.l.b16 %v2884
    %v2969 = vunpack.c.h.b16 %v2884
    %v2970 = vunpack.c.l.b16 %v2885
    %v2971 = vunpack.c.h.b16 %v2885
    %v2972 = vunpack.c.l.b16 %v2886
    %v2973 = vunpack.c.h.b16 %v2886
    %v2974 = vunpack.c.l.b16 %v2887
    %v2975 = vunpack.c.h.b16 %v2887
    %v2976 = vunpack.c.l.b16 %v2888
    %v2977 = vunpack.c.h.b16 %v2888
    %v2978 = vunpack.c.l.b16 %v2889
    %v2979 = vunpack.c.h.b16 %v2889
    %v2980 = vunpack.c.l.b16 %v2890
    %v2981 = vunpack.c.h.b16 %v2890
    %v2982 = vunpack.c.l.b16 %v2891
    %v2983 = vunpack.c.h.b16 %v2891
    %v2984 = vunpack.c.l.b16 %v2892
    %v2985 = vunpack.c.h.b16 %v2892
    %v2986 = vunpack.c.l.b16 %v2893
    %v2987 = vunpack.c.h.b16 %v2893
    %v2988 = vunpack.c.l.b16 %v2894
    %v2989 = vunpack.c.h.b16 %v2894
    %v2990 = vunpack.c.l.b16 %v2895
    %v2991 = vunpack.c.h.b16 %v2895
    %v2992 = vunpack.c.l.b16 %v2896
    %v2993 = vunpack.c.h.b16 %v2896
    %v2994 = vpack.c.b16 %v2936, %v2934
    %v2995 = vpack.c.b16 %v2937, %v2935
    %v2996 = vpack.c.b16 %v2940, %v2938
    %v2997 = vpack.c.b16 %v2941, %v2939
    %v2998 = vpack.c.b16 %v2944, %v2942
    %v2999 = vpack.c.b16 %v2945, %v2943
    %v3000 = vpack.c.b16 %v2948, %v2946
    %v3001 = vpack.c.b16 %v2949, %v2947
    %v3002 = vpack.c.b16 %v2952, %v2950
    %v3003 = vpack.c.b16 %v2953, %v2951
    %v3004 = vpack.c.b16 %v2956, %v2954
    %v3005 = vpack.c.b16 %v2957, %v2955
    %v3006 = vpack.c.b16 %v2960, %v2958
    %v3007 = vpack.c.b16 %v2961, %v2959
    %v3008 = vpack.c.b16 %v2964, %v2962
    %v3009 = vpack.c.b16 %v2965, %v2963
    %v3010 = vpack.c.b16 %v2968, %v2966
    %v3011 = vpack.c.b16 %v2969, %v2967
    %v3012 = vpack.c.b16 %v2972, %v2970
    %v3013 = vpack.c.b16 %v2973, %v2971
    %v3014 = vpack.c.b16 %v2976, %v2974
    %v3015 = vpack.c.b16 %v2977, %v2975
    %v3016 = vpack.c.b16 %v2980, %v2978
    %v3017 = vpack.c.b16 %v2981, %v2979
    %v3018 = vpack.c.b16 %v2984, %v2982
    %v3019 = vpack.c.b16 %v2985, %v2983
    %v3020 = vpack.c.b16 %v2988, %v2986
    %v3021 = vpack.c.b16 %v2989, %v2987
    %v3022 = vpack.c.b16 %v2992, %v2990
    %v3023 = vpack.c.b16 %v2993, %v2991
    %v3055 = vsel %vm2354, %v2902, 0
    %3057 = vmatprep.subr.bf16.mxu0 %v3009
    %3058 = vmatpush1.bf16.msra.mxu0 %v3008
    %3059 = vmatprep.subr.bf16.mxu0 %v3007
    %3060 = vmatpush1.bf16.msra.mxu0 %v3006
    %3061 = vmatprep.subr.bf16.mxu0 %v3005
    %3062 = vmatpush1.bf16.msra.mxu0 %v3004
    %3063 = vmatprep.subr.bf16.mxu0 %v3003
    %3064 = vmatpush1.bf16.msra.mxu0 %v3002
    %3065 = vmatprep.subr.bf16.mxu0 %v3001
    %3066 = vmatpush1.bf16.msra.mxu0 %v3000
    %3067 = vmatprep.subr.bf16.mxu0 %v2999
    %3068 = vmatpush1.bf16.msra.mxu0 %v2998
    %3069 = vmatprep.subr.bf16.mxu0 %v2997
    %3070 = vmatpush1.bf16.msra.mxu0 %v2996
    %3071 = vmatprep.subr.bf16.mxu0 %v2995
    %3072 = vmatpush1.bf16.msra.mxu0 %v2994
    %3073 = vmatprep.subr.bf16.mxu0 0
    %3074 = vmatpush2.bf16.msra.mxu0 0
    %3075 = vmatprep.subr.bf16.mxu0 %v3023
    %3076 = vmatpush2.bf16.msra.mxu0 %v3022
    %3077 = vmatprep.subr.bf16.mxu0 %v3021
    %3078 = vmatpush2.bf16.msra.mxu0 %v3020
    %3079 = vmatprep.subr.bf16.mxu0 %v3019
    %3080 = vmatpush2.bf16.msra.mxu0 %v3018
    %3081 = vmatprep.subr.bf16.mxu0 %v3017
    %3082 = vmatpush2.bf16.msra.mxu0 %v3016
    %3083 = vmatprep.subr.bf16.mxu0 %v3015
    %3084 = vmatpush2.bf16.msra.mxu0 %v3014
    %3085 = vmatprep.subr.bf16.mxu0 %v3013
    %3086 = vmatpush2.bf16.msra.mxu0 %v3012
    %3087 = vmatprep.subr.bf16.mxu0 %v3011
    %3088 = vmatpush2.bf16.msra.mxu0 %v3010
    %3089 = vmatprep.mubr.bf16.mxu0 %v3055
    %3090 = vmatmul.mubr.bf16.gmra.mxu0 %v2901
    %v3091 = vpop.f32.mrf.mxu0
    %v3092 = vadd.f32 0.0, %v3091
    %v3093 = vpop.f32.mrf.mxu0
    %v3094 = vadd.f32 0.0, %v3093
    %v3095 = vpop.f32.mrf.mxu0
    %v3096 = vadd.f32 0.0, %v3095
    %v3097 = vpop.f32.mrf.mxu0
    %v3098 = vadd.f32 0.0, %v3097
    %3099 = vdwg.mxu0
    %v3100 = vadd.f32 %v2842, %v3092
    %v3101 = vadd.f32 %v2843, %v3094
    %v3102 = vadd.f32 %v2844, %v3096
    %v3103 = vadd.f32 %v2845, %v3098
    %v3104 = vrot.slane %v2134, 6
    %v3105 = vrot.slane %v3104, 4
    %v3106 = vrot.slane %v2135, 6
    %v3107 = vsel %vm1052, %v3105, %v3106
    %v3108 = vrot.slane %v2136, 6
    %v3109 = vrot.slane %v3108, 4
    %v3110 = vrot.slane %v2137, 6
    %v3111 = vsel %vm1052, %v3109, %v3110
    %s3112 = scalar_lea.vmem %s3, 960
    %v3113 = vld [vmem:[%s3112] sm:$0xff]
    %v3114 = vld [vmem:[%s3112 + $0x8] sm:$0xff]
    %v3115 = vld [vmem:[%s3112 + $0x10] sm:$0xff]
    %v3116 = vld [vmem:[%s3112 + $0x18] sm:$0xff]
    %v3117 = vld [vmem:[%s3112 + $0x20] sm:$0xff]
    %v3118 = vld [vmem:[%s3112 + $0x28] sm:$0xff]
    %v3119 = vld [vmem:[%s3112 + $0x30] sm:$0xff]
    %v3120 = vld [vmem:[%s3112 + $0x38] sm:$0xff]
    %v3121 = vld [vmem:[%s3112 + $0x40] sm:$0xff]
    %v3122 = vld [vmem:[%s3112 + $0x48] sm:$0xff]
    %v3123 = vld [vmem:[%s3112 + $0x50] sm:$0xff]
    %v3124 = vld [vmem:[%s3112 + $0x58] sm:$0xff]
    %v3125 = vld [vmem:[%s3112 + $0x60] sm:$0xff]
    %v3126 = vld [vmem:[%s3112 + $0x68] sm:$0xff]
    %v3127 = vld [vmem:[%s3112 + $0x70] sm:$0xff]
    %v3128 = vld [vmem:[%s3112 + $0x78] sm:$0xff]
    %v3129 = vld [vmem:[%s3112 + $0x80] sm:$0xff]
    %v3130 = vld [vmem:[%s3112 + $0x88] sm:$0xff]
    %v3131 = vld [vmem:[%s3112 + $0x90] sm:$0xff]
    %v3132 = vld [vmem:[%s3112 + $0x98] sm:$0xff]
    %v3133 = vld [vmem:[%s3112 + $0xa0] sm:$0xff]
    %v3134 = vld [vmem:[%s3112 + $0xa8] sm:$0xff]
    %v3135 = vld [vmem:[%s3112 + $0xb0] sm:$0xff]
    %v3136 = vld [vmem:[%s3112 + $0xb8] sm:$0xff]
    %v3137 = vld [vmem:[%s3112 + $0xc0] sm:$0xff]
    %v3138 = vld [vmem:[%s3112 + $0xc8] sm:$0xff]
    %v3139 = vld [vmem:[%s3112 + $0xd0] sm:$0xff]
    %v3140 = vld [vmem:[%s3112 + $0xd8] sm:$0xff]
    %v3141 = vld [vmem:[%s3112 + $0xe0] sm:$0xff]
    %v3142 = vld [vmem:[%s3112 + $0xe8] sm:$0xff]
    %v3143 = vunpack.c.l.b16 %v3107
    %v3144 = vunpack.c.h.b16 %v3107
    %v3145 = vunpack.c.l.b16 %v3111
    %v3146 = vunpack.c.h.b16 %v3111
    %v3147 = vpack.c.b16 %v3145, %v3143
    %v3148 = vpack.c.b16 %v3146, %v3144
    %v3180 = vunpack.c.l.b16 %v3113
    %v3181 = vunpack.c.h.b16 %v3113
    %v3182 = vunpack.c.l.b16 %v3114
    %v3183 = vunpack.c.h.b16 %v3114
    %v3184 = vunpack.c.l.b16 %v3115
    %v3185 = vunpack.c.h.b16 %v3115
    %v3186 = vunpack.c.l.b16 %v3116
    %v3187 = vunpack.c.h.b16 %v3116
    %v3188 = vunpack.c.l.b16 %v3117
    %v3189 = vunpack.c.h.b16 %v3117
    %v3190 = vunpack.c.l.b16 %v3118
    %v3191 = vunpack.c.h.b16 %v3118
    %v3192 = vunpack.c.l.b16 %v3119
    %v3193 = vunpack.c.h.b16 %v3119
    %v3194 = vunpack.c.l.b16 %v3120
    %v3195 = vunpack.c.h.b16 %v3120
    %v3196 = vunpack.c.l.b16 %v3121
    %v3197 = vunpack.c.h.b16 %v3121
    %v3198 = vunpack.c.l.b16 %v3122
    %v3199 = vunpack.c.h.b16 %v3122
    %v3200 = vunpack.c.l.b16 %v3123
    %v3201 = vunpack.c.h.b16 %v3123
    %v3202 = vunpack.c.l.b16 %v3124
    %v3203 = vunpack.c.h.b16 %v3124
    %v3204 = vunpack.c.l.b16 %v3125
    %v3205 = vunpack.c.h.b16 %v3125
    %v3206 = vunpack.c.l.b16 %v3126
    %v3207 = vunpack.c.h.b16 %v3126
    %v3208 = vunpack.c.l.b16 %v3127
    %v3209 = vunpack.c.h.b16 %v3127
    %v3210 = vunpack.c.l.b16 %v3128
    %v3211 = vunpack.c.h.b16 %v3128
    %v3212 = vunpack.c.l.b16 %v3129
    %v3213 = vunpack.c.h.b16 %v3129
    %v3214 = vunpack.c.l.b16 %v3130
    %v3215 = vunpack.c.h.b16 %v3130
    %v3216 = vunpack.c.l.b16 %v3131
    %v3217 = vunpack.c.h.b16 %v3131
    %v3218 = vunpack.c.l.b16 %v3132
    %v3219 = vunpack.c.h.b16 %v3132
    %v3220 = vunpack.c.l.b16 %v3133
    %v3221 = vunpack.c.h.b16 %v3133
    %v3222 = vunpack.c.l.b16 %v3134
    %v3223 = vunpack.c.h.b16 %v3134
    %v3224 = vunpack.c.l.b16 %v3135
    %v3225 = vunpack.c.h.b16 %v3135
    %v3226 = vunpack.c.l.b16 %v3136
    %v3227 = vunpack.c.h.b16 %v3136
    %v3228 = vunpack.c.l.b16 %v3137
    %v3229 = vunpack.c.h.b16 %v3137
    %v3230 = vunpack.c.l.b16 %v3138
    %v3231 = vunpack.c.h.b16 %v3138
    %v3232 = vunpack.c.l.b16 %v3139
    %v3233 = vunpack.c.h.b16 %v3139
    %v3234 = vunpack.c.l.b16 %v3140
    %v3235 = vunpack.c.h.b16 %v3140
    %v3236 = vunpack.c.l.b16 %v3141
    %v3237 = vunpack.c.h.b16 %v3141
    %v3238 = vunpack.c.l.b16 %v3142
    %v3239 = vunpack.c.h.b16 %v3142
    %v3240 = vpack.c.b16 %v3182, %v3180
    %v3241 = vpack.c.b16 %v3183, %v3181
    %v3242 = vpack.c.b16 %v3186, %v3184
    %v3243 = vpack.c.b16 %v3187, %v3185
    %v3244 = vpack.c.b16 %v3190, %v3188
    %v3245 = vpack.c.b16 %v3191, %v3189
    %v3246 = vpack.c.b16 %v3194, %v3192
    %v3247 = vpack.c.b16 %v3195, %v3193
    %v3248 = vpack.c.b16 %v3198, %v3196
    %v3249 = vpack.c.b16 %v3199, %v3197
    %v3250 = vpack.c.b16 %v3202, %v3200
    %v3251 = vpack.c.b16 %v3203, %v3201
    %v3252 = vpack.c.b16 %v3206, %v3204
    %v3253 = vpack.c.b16 %v3207, %v3205
    %v3254 = vpack.c.b16 %v3210, %v3208
    %v3255 = vpack.c.b16 %v3211, %v3209
    %v3256 = vpack.c.b16 %v3214, %v3212
    %v3257 = vpack.c.b16 %v3215, %v3213
    %v3258 = vpack.c.b16 %v3218, %v3216
    %v3259 = vpack.c.b16 %v3219, %v3217
    %v3260 = vpack.c.b16 %v3222, %v3220
    %v3261 = vpack.c.b16 %v3223, %v3221
    %v3262 = vpack.c.b16 %v3226, %v3224
    %v3263 = vpack.c.b16 %v3227, %v3225
    %v3264 = vpack.c.b16 %v3230, %v3228
    %v3265 = vpack.c.b16 %v3231, %v3229
    %v3266 = vpack.c.b16 %v3234, %v3232
    %v3267 = vpack.c.b16 %v3235, %v3233
    %v3268 = vpack.c.b16 %v3238, %v3236
    %v3269 = vpack.c.b16 %v3239, %v3237
    %v3301 = vsel %vm2354, %v3148, 0
    %3303 = vmatprep.subr.bf16.mxu0 %v3255
    %3304 = vmatpush1.bf16.msra.mxu0 %v3254
    %3305 = vmatprep.subr.bf16.mxu0 %v3253
    %3306 = vmatpush1.bf16.msra.mxu0 %v3252
    %3307 = vmatprep.subr.bf16.mxu0 %v3251
    %3308 = vmatpush1.bf16.msra.mxu0 %v3250
    %3309 = vmatprep.subr.bf16.mxu0 %v3249
    %3310 = vmatpush1.bf16.msra.mxu0 %v3248
    %3311 = vmatprep.subr.bf16.mxu0 %v3247
    %3312 = vmatpush1.bf16.msra.mxu0 %v3246
    %3313 = vmatprep.subr.bf16.mxu0 %v3245
    %3314 = vmatpush1.bf16.msra.mxu0 %v3244
    %3315 = vmatprep.subr.bf16.mxu0 %v3243
    %3316 = vmatpush1.bf16.msra.mxu0 %v3242
    %3317 = vmatprep.subr.bf16.mxu0 %v3241
    %3318 = vmatpush1.bf16.msra.mxu0 %v3240
    %3319 = vmatprep.subr.bf16.mxu0 0
    %3320 = vmatpush2.bf16.msra.mxu0 0
    %3321 = vmatprep.subr.bf16.mxu0 %v3269
    %3322 = vmatpush2.bf16.msra.mxu0 %v3268
    %3323 = vmatprep.subr.bf16.mxu0 %v3267
    %3324 = vmatpush2.bf16.msra.mxu0 %v3266
    %3325 = vmatprep.subr.bf16.mxu0 %v3265
    %3326 = vmatpush2.bf16.msra.mxu0 %v3264
    %3327 = vmatprep.subr.bf16.mxu0 %v3263
    %3328 = vmatpush2.bf16.msra.mxu0 %v3262
    %3329 = vmatprep.subr.bf16.mxu0 %v3261
    %3330 = vmatpush2.bf16.msra.mxu0 %v3260
    %3331 = vmatprep.subr.bf16.mxu0 %v3259
    %3332 = vmatpush2.bf16.msra.mxu0 %v3258
    %3333 = vmatprep.subr.bf16.mxu0 %v3257
    %3334 = vmatpush2.bf16.msra.mxu0 %v3256
    %3335 = vmatprep.mubr.bf16.mxu0 %v3301
    %3336 = vmatmul.mubr.bf16.gmra.mxu0 %v3147
    %v3337 = vpop.f32.mrf.mxu0
    %v3338 = vadd.f32 0.0, %v3337
    %v3339 = vpop.f32.mrf.mxu0
    %v3340 = vadd.f32 0.0, %v3339
    %v3341 = vpop.f32.mrf.mxu0
    %v3342 = vadd.f32 0.0, %v3341
    %v3343 = vpop.f32.mrf.mxu0
    %v3344 = vadd.f32 0.0, %v3343
    %3345 = vdwg.mxu0
    %v3346 = vadd.f32 %v3100, %v3338
    %v3347 = vadd.f32 %v3101, %v3340
    %v3348 = vadd.f32 %v3102, %v3342
    %v3349 = vadd.f32 %v3103, %v3344
    %v3350 = vld [vmem:[%s4] sm:$0x3]
    %v3352 = vlaneseq
    %v3353 = vshrl.u32 %v3352, 7
    %v3354 = vsub.s32 0, %v3353
    %v3355 = vrot.slane %v3350, %v3354
    %v3356 = vlaneseq
    %v3357 = vshrl.u32 %v3356, 7
    %v3358 = vsub.s32 1, %v3357
    %v3359 = vrot.slane %v3350, %v3358
    %v3362 = vadd.f32 %v3346, %v3355
    %v3363 = vadd.f32 %v3347, %v3359
    %v3364 = vadd.f32 %v3348, %v3355
    %v3365 = vadd.f32 %v3349, %v3359
    %v3370 = vrot.slane %v3362, 1
    %v3371 = vrot.slane %v3363, 1
    %v3372 = vrot.slane %v3364, 1
    %v3373 = vrot.slane %v3365, 1
    %v3378 = vmax.f32 %v3362, %v3370
    %v3379 = vmax.f32 %v3363, %v3371
    %v3380 = vmax.f32 %v3364, %v3372
    %v3381 = vmax.f32 %v3365, %v3373
    %v3386 = vrot.slane %v3378, 1
    %v3387 = vrot.slane %v3379, 1
    %v3388 = vrot.slane %v3380, 1
    %v3389 = vrot.slane %v3381, 1
    %v3394 = vrot.slane %v3378, 2
    %v3395 = vrot.slane %v3379, 2
    %v3396 = vrot.slane %v3380, 2
    %v3397 = vrot.slane %v3381, 2
    %v3402 = vrot.slane %v3378, 3
    %v3403 = vrot.slane %v3379, 3
    %v3404 = vrot.slane %v3380, 3
    %v3405 = vrot.slane %v3381, 3
    %v3410 = vsel %vm1624, %v3378, %v3386
    %v3411 = vsel %vm1624, %v3379, %v3387
    %v3412 = vsel %vm1624, %v3380, %v3388
    %v3413 = vsel %vm1624, %v3381, %v3389
    %v3414 = vsel %vm1633, %v3410, %v3394
    %v3415 = vsel %vm1633, %v3411, %v3395
    %v3416 = vsel %vm1633, %v3412, %v3396
    %v3417 = vsel %vm1633, %v3413, %v3397
    %v3418 = vsel %vm1642, %v3414, %v3402
    %v3419 = vsel %vm1642, %v3415, %v3403
    %v3420 = vsel %vm1642, %v3416, %v3404
    %v3421 = vsel %vm1642, %v3417, %v3405
    %3424 = vrot.lane.b32.xlu0 %v3418, 96
    %v3425 = vpop.permute.xlu0 %3424
    %3426 = vrot.lane.b32.xlu0 %v3420, 96
    %v3427 = vpop.permute.xlu0 %3426
    %v3430 = vmax.f32 %v3418, %v3425
    %v3431 = vmax.f32 %v3420, %v3427
    %3434 = vrot.lane.b32.xlu0 %v3419, 96
    %v3435 = vpop.permute.xlu0 %3434
    %3436 = vrot.lane.b32.xlu0 %v3421, 96
    %v3437 = vpop.permute.xlu0 %3436
    %v3440 = vmax.f32 %v3419, %v3435
    %v3441 = vmax.f32 %v3421, %v3437
    %3444 = vrot.lane.b32.xlu0 %v3430, 96
    %v3445 = vpop.permute.xlu0 %3444
    %3446 = vrot.lane.b32.xlu0 %v3431, 96
    %v3447 = vpop.permute.xlu0 %3446
    %3452 = vrot.lane.b32.xlu0 %v3440, 64
    %v3453 = vpop.permute.xlu0 %3452
    %3454 = vrot.lane.b32.xlu0 %v3441, 64
    %v3455 = vpop.permute.xlu0 %3454
    %3458 = vrot.lane.b32.xlu0 %v3440, 32
    %v3459 = vpop.permute.xlu0 %3458
    %3460 = vrot.lane.b32.xlu0 %v3441, 32
    %v3461 = vpop.permute.xlu0 %3460
    %v3464 = vsel %vm2036, %v3430, %v3445
    %v3465 = vsel %vm2036, %v3431, %v3447
    %vm3466 = vcmask 523264
    %v3467 = vsel %vm3466, %v3464, %v3453
    %v3468 = vsel %vm3466, %v3465, %v3455
    %vm3469 = vcmask 785408
    %v3470 = vsel %vm3469, %v3467, %v3459
    %v3471 = vsel %vm3469, %v3468, %v3461
    %v3472 = vand.u32 2147483647, %v3470
    %v3473 = vand.u32 2147483647, %v3471
    %v3474 = vadd.f32 %v3472, 1.0
    %v3475 = vadd.f32 %v3473, 1.0
    %v3476 = vrcp.pop %v3474
    %v3477 = vmul.f32 %v3470, %v3476
    %v3478 = vrcp.pop %v3475
    %v3479 = vmul.f32 %v3471, %v3478
    %v3480 = vpack.c.bf16 %v3477, %v3477
    %v3481 = vpack.c.bf16 %v3479, %v3479
    %v3482 = vld [vmem:[%s6] sm:$0x1]
    %v3484 = vlaneseq
    %v3485 = vshrl.u32 %v3484, 7
    %v3486 = vsub.s32 0, %v3485
    %v3487 = vrot.slane %v3482, %v3486
    %v3489 = vadd.f32 %v3487, 0.0
    %v3490 = vld [vmem:[%s5] sm:$0xf]
    %v3491 = vld [vmem:[%s5 + $0x4] sm:$0xf]
    %v3492 = vld [vmem:[%s5 + $0x8] sm:$0xf]
    %v3493 = vld [vmem:[%s5 + $0xc] sm:$0xf]
    %v3494 = vld [vmem:[%s5 + $0x10] sm:$0xf]
    %v3495 = vld [vmem:[%s5 + $0x14] sm:$0xf]
    %v3496 = vld [vmem:[%s5 + $0x18] sm:$0xf]
    %v3497 = vld [vmem:[%s5 + $0x1c] sm:$0xf]
    %v3498 = vld [vmem:[%s5 + $0x20] sm:$0xf]
    %v3499 = vld [vmem:[%s5 + $0x24] sm:$0xf]
    %v3500 = vld [vmem:[%s5 + $0x28] sm:$0xf]
    %v3501 = vld [vmem:[%s5 + $0x2c] sm:$0xf]
    %v3502 = vld [vmem:[%s5 + $0x30] sm:$0xf]
    %v3503 = vld [vmem:[%s5 + $0x34] sm:$0xf]
    %v3504 = vld [vmem:[%s5 + $0x38] sm:$0xf]
    %v3505 = vld [vmem:[%s5 + $0x3c] sm:$0xf]
    %v3508 = vunpack.c.l.b16 %v3480
    %v3509 = vunpack.c.l.b16 %v3481
    %v3510 = vrot.slane %v3509, 7
    %vm3511 = vcmask 1041409
    %v3512 = vsel %vm3511, %v3510, %v3508
    %v3513 = vpack.c.b16 %v3512, %v3512
    %v3531 = vunpack.c.l.b16 %v3490
    %v3532 = vunpack.c.l.b16 %v3491
    %v3533 = vunpack.c.l.b16 %v3492
    %v3534 = vunpack.c.l.b16 %v3493
    %v3535 = vunpack.c.l.b16 %v3494
    %v3536 = vunpack.c.l.b16 %v3495
    %v3537 = vunpack.c.l.b16 %v3496
    %v3538 = vunpack.c.l.b16 %v3497
    %v3539 = vunpack.c.l.b16 %v3498
    %v3540 = vunpack.c.l.b16 %v3499
    %v3541 = vunpack.c.l.b16 %v3500
    %v3542 = vunpack.c.l.b16 %v3501
    %v3543 = vunpack.c.l.b16 %v3502
    %v3544 = vunpack.c.l.b16 %v3503
    %v3545 = vunpack.c.l.b16 %v3504
    %v3546 = vunpack.c.l.b16 %v3505
    %v3547 = vpack.c.b16 %v3532, %v3531
    %v3548 = vpack.c.b16 %v3534, %v3533
    %v3549 = vpack.c.b16 %v3536, %v3535
    %v3550 = vpack.c.b16 %v3538, %v3537
    %v3551 = vpack.c.b16 %v3540, %v3539
    %v3552 = vpack.c.b16 %v3542, %v3541
    %v3553 = vpack.c.b16 %v3544, %v3543
    %v3554 = vpack.c.b16 %v3546, %v3545
    %3563 = vmatprep.subr.bf16.mxu0 0
    %3564 = vmatpush1.bf16.msra.mxu0 %v3554
    %3565 = vmatprep.subr.bf16.mxu0 0
    %3566 = vmatpush1.bf16.msra.mxu0 %v3553
    %3567 = vmatprep.subr.bf16.mxu0 0
    %3568 = vmatpush1.bf16.msra.mxu0 %v3552
    %3569 = vmatprep.subr.bf16.mxu0 0
    %3570 = vmatpush1.bf16.msra.mxu0 %v3551
    %3571 = vmatprep.subr.bf16.mxu0 0
    %3572 = vmatpush1.bf16.msra.mxu0 %v3550
    %3573 = vmatprep.subr.bf16.mxu0 0
    %3574 = vmatpush1.bf16.msra.mxu0 %v3549
    %3575 = vmatprep.subr.bf16.mxu0 0
    %3576 = vmatpush1.bf16.msra.mxu0 %v3548
    %3577 = vmatprep.subr.bf16.mxu0 0
    %3578 = vmatpush1.bf16.msra.mxu0 %v3547
    %3579 = vmatprep.subr.bf16.mxu0 0
    %3580 = vmatpush2.bf16.msra.mxu0 0
    %3581 = vmatprep.subr.bf16.mxu0 0
    %3582 = vmatpush2.bf16.msra.mxu0 0
    %3583 = vmatprep.subr.bf16.mxu0 0
    %3584 = vmatpush2.bf16.msra.mxu0 0
    %3585 = vmatprep.subr.bf16.mxu0 0
    %3586 = vmatpush2.bf16.msra.mxu0 0
    %3587 = vmatprep.subr.bf16.mxu0 0
    %3588 = vmatpush2.bf16.msra.mxu0 0
    %3589 = vmatprep.subr.bf16.mxu0 0
    %3590 = vmatpush2.bf16.msra.mxu0 0
    %3591 = vmatprep.subr.bf16.mxu0 0
    %3592 = vmatpush2.bf16.msra.mxu0 0
    %3593 = vmatprep.subr.bf16.mxu0 0
    %3594 = vmatpush2.bf16.msra.mxu0 0
    %3595 = vmatprep.mubr.bf16.mxu0 0
    %3596 = vmatmul.mubr.bf16.gmra.mxu0 %v3513
    %v3597 = vpop.f32.mrf.mxu0
    %v3598 = vadd.f32 0.0, %v3597
    %v3599 = vpop.f32.mrf.mxu0
    %v3600 = vpop.f32.mrf.mxu0
    %v3601 = vpop.f32.mrf.mxu0
    %3602 = vdwg.mxu0
    %v3603 = vadd.f32 %v3489, %v3598
    %s3604 = scalar_lea.vmem %s5, 64
    %v3605 = vld [vmem:[%s3604] sm:$0xf]
    %v3606 = vld [vmem:[%s3604 + $0x4] sm:$0xf]
    %v3607 = vld [vmem:[%s3604 + $0x8] sm:$0xf]
    %v3608 = vld [vmem:[%s3604 + $0xc] sm:$0xf]
    %v3609 = vld [vmem:[%s3604 + $0x10] sm:$0xf]
    %v3610 = vld [vmem:[%s3604 + $0x14] sm:$0xf]
    %v3611 = vld [vmem:[%s3604 + $0x18] sm:$0xf]
    %v3612 = vld [vmem:[%s3604 + $0x1c] sm:$0xf]
    %v3613 = vld [vmem:[%s3604 + $0x20] sm:$0xf]
    %v3614 = vld [vmem:[%s3604 + $0x24] sm:$0xf]
    %v3615 = vld [vmem:[%s3604 + $0x28] sm:$0xf]
    %v3616 = vld [vmem:[%s3604 + $0x2c] sm:$0xf]
    %v3617 = vld [vmem:[%s3604 + $0x30] sm:$0xf]
    %v3618 = vld [vmem:[%s3604 + $0x34] sm:$0xf]
    %v3619 = vld [vmem:[%s3604 + $0x38] sm:$0xf]
    %v3620 = vld [vmem:[%s3604 + $0x3c] sm:$0xf]
    %v3621 = vrot.slane %v3508, 1
    %v3622 = vsel %vm3511, %v3509, %v3621
    %v3623 = vpack.c.b16 %v3622, %v3622
    %v3641 = vunpack.c.l.b16 %v3605
    %v3642 = vunpack.c.l.b16 %v3606
    %v3643 = vunpack.c.l.b16 %v3607
    %v3644 = vunpack.c.l.b16 %v3608
    %v3645 = vunpack.c.l.b16 %v3609
    %v3646 = vunpack.c.l.b16 %v3610
    %v3647 = vunpack.c.l.b16 %v3611
    %v3648 = vunpack.c.l.b16 %v3612
    %v3649 = vunpack.c.l.b16 %v3613
    %v3650 = vunpack.c.l.b16 %v3614
    %v3651 = vunpack.c.l.b16 %v3615
    %v3652 = vunpack.c.l.b16 %v3616
    %v3653 = vunpack.c.l.b16 %v3617
    %v3654 = vunpack.c.l.b16 %v3618
    %v3655 = vunpack.c.l.b16 %v3619
    %v3656 = vunpack.c.l.b16 %v3620
    %v3657 = vpack.c.b16 %v3642, %v3641
    %v3658 = vpack.c.b16 %v3644, %v3643
    %v3659 = vpack.c.b16 %v3646, %v3645
    %v3660 = vpack.c.b16 %v3648, %v3647
    %v3661 = vpack.c.b16 %v3650, %v3649
    %v3662 = vpack.c.b16 %v3652, %v3651
    %v3663 = vpack.c.b16 %v3654, %v3653
    %v3664 = vpack.c.b16 %v3656, %v3655
    %3673 = vmatprep.subr.bf16.mxu0 0
    %3674 = vmatpush1.bf16.msra.mxu0 %v3664
    %3675 = vmatprep.subr.bf16.mxu0 0
    %3676 = vmatpush1.bf16.msra.mxu0 %v3663
    %3677 = vmatprep.subr.bf16.mxu0 0
    %3678 = vmatpush1.bf16.msra.mxu0 %v3662
    %3679 = vmatprep.subr.bf16.mxu0 0
    %3680 = vmatpush1.bf16.msra.mxu0 %v3661
    %3681 = vmatprep.subr.bf16.mxu0 0
    %3682 = vmatpush1.bf16.msra.mxu0 %v3660
    %3683 = vmatprep.subr.bf16.mxu0 0
    %3684 = vmatpush1.bf16.msra.mxu0 %v3659
    %3685 = vmatprep.subr.bf16.mxu0 0
    %3686 = vmatpush1.bf16.msra.mxu0 %v3658
    %3687 = vmatprep.subr.bf16.mxu0 0
    %3688 = vmatpush1.bf16.msra.mxu0 %v3657
    %3689 = vmatprep.subr.bf16.mxu0 0
    %3690 = vmatpush2.bf16.msra.mxu0 0
    %3691 = vmatprep.subr.bf16.mxu0 0
    %3692 = vmatpush2.bf16.msra.mxu0 0
    %3693 = vmatprep.subr.bf16.mxu0 0
    %3694 = vmatpush2.bf16.msra.mxu0 0
    %3695 = vmatprep.subr.bf16.mxu0 0
    %3696 = vmatpush2.bf16.msra.mxu0 0
    %3697 = vmatprep.subr.bf16.mxu0 0
    %3698 = vmatpush2.bf16.msra.mxu0 0
    %3699 = vmatprep.subr.bf16.mxu0 0
    %3700 = vmatpush2.bf16.msra.mxu0 0
    %3701 = vmatprep.subr.bf16.mxu0 0
    %3702 = vmatpush2.bf16.msra.mxu0 0
    %3703 = vmatprep.subr.bf16.mxu0 0
    %3704 = vmatpush2.bf16.msra.mxu0 0
    %3705 = vmatprep.mubr.bf16.mxu0 0
    %3706 = vmatmul.mubr.bf16.gmra.mxu0 %v3623
    %v3707 = vpop.f32.mrf.mxu0
    %v3708 = vadd.f32 0.0, %v3707
    %v3709 = vpop.f32.mrf.mxu0
    %v3710 = vpop.f32.mrf.mxu0
    %v3711 = vpop.f32.mrf.mxu0
    %3712 = vdwg.mxu0
    %v3713 = vadd.f32 %v3603, %v3708
    %s3714 = scalar_lea.vmem %s5, 128
    %v3715 = vld [vmem:[%s3714] sm:$0xf]
    %v3716 = vld [vmem:[%s3714 + $0x4] sm:$0xf]
    %v3717 = vld [vmem:[%s3714 + $0x8] sm:$0xf]
    %v3718 = vld [vmem:[%s3714 + $0xc] sm:$0xf]
    %v3719 = vld [vmem:[%s3714 + $0x10] sm:$0xf]
    %v3720 = vld [vmem:[%s3714 + $0x14] sm:$0xf]
    %v3721 = vld [vmem:[%s3714 + $0x18] sm:$0xf]
    %v3722 = vld [vmem:[%s3714 + $0x1c] sm:$0xf]
    %v3723 = vld [vmem:[%s3714 + $0x20] sm:$0xf]
    %v3724 = vld [vmem:[%s3714 + $0x24] sm:$0xf]
    %v3725 = vld [vmem:[%s3714 + $0x28] sm:$0xf]
    %v3726 = vld [vmem:[%s3714 + $0x2c] sm:$0xf]
    %v3727 = vld [vmem:[%s3714 + $0x30] sm:$0xf]
    %v3728 = vld [vmem:[%s3714 + $0x34] sm:$0xf]
    %v3729 = vld [vmem:[%s3714 + $0x38] sm:$0xf]
    %v3730 = vld [vmem:[%s3714 + $0x3c] sm:$0xf]
    %v3731 = vrot.slane %v3508, 2
    %v3732 = vrot.slane %v3509, 1
    %v3733 = vsel %vm3511, %v3732, %v3731
    %v3734 = vpack.c.b16 %v3733, %v3733
    %v3752 = vunpack.c.l.b16 %v3715
    %v3753 = vunpack.c.l.b16 %v3716
    %v3754 = vunpack.c.l.b16 %v3717
    %v3755 = vunpack.c.l.b16 %v3718
    %v3756 = vunpack.c.l.b16 %v3719
    %v3757 = vunpack.c.l.b16 %v3720
    %v3758 = vunpack.c.l.b16 %v3721
    %v3759 = vunpack.c.l.b16 %v3722
    %v3760 = vunpack.c.l.b16 %v3723
    %v3761 = vunpack.c.l.b16 %v3724
    %v3762 = vunpack.c.l.b16 %v3725
    %v3763 = vunpack.c.l.b16 %v3726
    %v3764 = vunpack.c.l.b16 %v3727
    %v3765 = vunpack.c.l.b16 %v3728
    %v3766 = vunpack.c.l.b16 %v3729
    %v3767 = vunpack.c.l.b16 %v3730
    %v3768 = vpack.c.b16 %v3753, %v3752
    %v3769 = vpack.c.b16 %v3755, %v3754
    %v3770 = vpack.c.b16 %v3757, %v3756
    %v3771 = vpack.c.b16 %v3759, %v3758
    %v3772 = vpack.c.b16 %v3761, %v3760
    %v3773 = vpack.c.b16 %v3763, %v3762
    %v3774 = vpack.c.b16 %v3765, %v3764
    %v3775 = vpack.c.b16 %v3767, %v3766
    %3784 = vmatprep.subr.bf16.mxu0 0
    %3785 = vmatpush1.bf16.msra.mxu0 %v3775
    %3786 = vmatprep.subr.bf16.mxu0 0
    %3787 = vmatpush1.bf16.msra.mxu0 %v3774
    %3788 = vmatprep.subr.bf16.mxu0 0
    %3789 = vmatpush1.bf16.msra.mxu0 %v3773
    %3790 = vmatprep.subr.bf16.mxu0 0
    %3791 = vmatpush1.bf16.msra.mxu0 %v3772
    %3792 = vmatprep.subr.bf16.mxu0 0
    %3793 = vmatpush1.bf16.msra.mxu0 %v3771
    %3794 = vmatprep.subr.bf16.mxu0 0
    %3795 = vmatpush1.bf16.msra.mxu0 %v3770
    %3796 = vmatprep.subr.bf16.mxu0 0
    %3797 = vmatpush1.bf16.msra.mxu0 %v3769
    %3798 = vmatprep.subr.bf16.mxu0 0
    %3799 = vmatpush1.bf16.msra.mxu0 %v3768
    %3800 = vmatprep.subr.bf16.mxu0 0
    %3801 = vmatpush2.bf16.msra.mxu0 0
    %3802 = vmatprep.subr.bf16.mxu0 0
    %3803 = vmatpush2.bf16.msra.mxu0 0
    %3804 = vmatprep.subr.bf16.mxu0 0
    %3805 = vmatpush2.bf16.msra.mxu0 0
    %3806 = vmatprep.subr.bf16.mxu0 0
    %3807 = vmatpush2.bf16.msra.mxu0 0
    %3808 = vmatprep.subr.bf16.mxu0 0
    %3809 = vmatpush2.bf16.msra.mxu0 0
    %3810 = vmatprep.subr.bf16.mxu0 0
    %3811 = vmatpush2.bf16.msra.mxu0 0
    %3812 = vmatprep.subr.bf16.mxu0 0
    %3813 = vmatpush2.bf16.msra.mxu0 0
    %3814 = vmatprep.subr.bf16.mxu0 0
    %3815 = vmatpush2.bf16.msra.mxu0 0
    %3816 = vmatprep.mubr.bf16.mxu0 0
    %3817 = vmatmul.mubr.bf16.gmra.mxu0 %v3734
    %v3818 = vpop.f32.mrf.mxu0
    %v3819 = vadd.f32 0.0, %v3818
    %v3820 = vpop.f32.mrf.mxu0
    %v3821 = vpop.f32.mrf.mxu0
    %v3822 = vpop.f32.mrf.mxu0
    %3823 = vdwg.mxu0
    %v3824 = vadd.f32 %v3713, %v3819
    %s3825 = scalar_lea.vmem %s5, 192
    %v3826 = vld [vmem:[%s3825] sm:$0xf]
    %v3827 = vld [vmem:[%s3825 + $0x4] sm:$0xf]
    %v3828 = vld [vmem:[%s3825 + $0x8] sm:$0xf]
    %v3829 = vld [vmem:[%s3825 + $0xc] sm:$0xf]
    %v3830 = vld [vmem:[%s3825 + $0x10] sm:$0xf]
    %v3831 = vld [vmem:[%s3825 + $0x14] sm:$0xf]
    %v3832 = vld [vmem:[%s3825 + $0x18] sm:$0xf]
    %v3833 = vld [vmem:[%s3825 + $0x1c] sm:$0xf]
    %v3834 = vld [vmem:[%s3825 + $0x20] sm:$0xf]
    %v3835 = vld [vmem:[%s3825 + $0x24] sm:$0xf]
    %v3836 = vld [vmem:[%s3825 + $0x28] sm:$0xf]
    %v3837 = vld [vmem:[%s3825 + $0x2c] sm:$0xf]
    %v3838 = vld [vmem:[%s3825 + $0x30] sm:$0xf]
    %v3839 = vld [vmem:[%s3825 + $0x34] sm:$0xf]
    %v3840 = vld [vmem:[%s3825 + $0x38] sm:$0xf]
    %v3841 = vld [vmem:[%s3825 + $0x3c] sm:$0xf]
    %v3842 = vrot.slane %v3508, 3
    %v3843 = vrot.slane %v3509, 2
    %v3844 = vsel %vm3511, %v3843, %v3842
    %v3845 = vpack.c.b16 %v3844, %v3844
    %v3863 = vunpack.c.l.b16 %v3826
    %v3864 = vunpack.c.l.b16 %v3827
    %v3865 = vunpack.c.l.b16 %v3828
    %v3866 = vunpack.c.l.b16 %v3829
    %v3867 = vunpack.c.l.b16 %v3830
    %v3868 = vunpack.c.l.b16 %v3831
    %v3869 = vunpack.c.l.b16 %v3832
    %v3870 = vunpack.c.l.b16 %v3833
    %v3871 = vunpack.c.l.b16 %v3834
    %v3872 = vunpack.c.l.b16 %v3835
    %v3873 = vunpack.c.l.b16 %v3836
    %v3874 = vunpack.c.l.b16 %v3837
    %v3875 = vunpack.c.l.b16 %v3838
    %v3876 = vunpack.c.l.b16 %v3839
    %v3877 = vunpack.c.l.b16 %v3840
    %v3878 = vunpack.c.l.b16 %v3841
    %v3879 = vpack.c.b16 %v3864, %v3863
    %v3880 = vpack.c.b16 %v3866, %v3865
    %v3881 = vpack.c.b16 %v3868, %v3867
    %v3882 = vpack.c.b16 %v3870, %v3869
    %v3883 = vpack.c.b16 %v3872, %v3871
    %v3884 = vpack.c.b16 %v3874, %v3873
    %v3885 = vpack.c.b16 %v3876, %v3875
    %v3886 = vpack.c.b16 %v3878, %v3877
    %3895 = vmatprep.subr.bf16.mxu0 0
    %3896 = vmatpush1.bf16.msra.mxu0 %v3886
    %3897 = vmatprep.subr.bf16.mxu0 0
    %3898 = vmatpush1.bf16.msra.mxu0 %v3885
    %3899 = vmatprep.subr.bf16.mxu0 0
    %3900 = vmatpush1.bf16.msra.mxu0 %v3884
    %3901 = vmatprep.subr.bf16.mxu0 0
    %3902 = vmatpush1.bf16.msra.mxu0 %v3883
    %3903 = vmatprep.subr.bf16.mxu0 0
    %3904 = vmatpush1.bf16.msra.mxu0 %v3882
    %3905 = vmatprep.subr.bf16.mxu0 0
    %3906 = vmatpush1.bf16.msra.mxu0 %v3881
    %3907 = vmatprep.subr.bf16.mxu0 0
    %3908 = vmatpush1.bf16.msra.mxu0 %v3880
    %3909 = vmatprep.subr.bf16.mxu0 0
    %3910 = vmatpush1.bf16.msra.mxu0 %v3879
    %3911 = vmatprep.subr.bf16.mxu0 0
    %3912 = vmatpush2.bf16.msra.mxu0 0
    %3913 = vmatprep.subr.bf16.mxu0 0
    %3914 = vmatpush2.bf16.msra.mxu0 0
    %3915 = vmatprep.subr.bf16.mxu0 0
    %3916 = vmatpush2.bf16.msra.mxu0 0
    %3917 = vmatprep.subr.bf16.mxu0 0
    %3918 = vmatpush2.bf16.msra.mxu0 0
    %3919 = vmatprep.subr.bf16.mxu0 0
    %3920 = vmatpush2.bf16.msra.mxu0 0
    %3921 = vmatprep.subr.bf16.mxu0 0
    %3922 = vmatpush2.bf16.msra.mxu0 0
    %3923 = vmatprep.subr.bf16.mxu0 0
    %3924 = vmatpush2.bf16.msra.mxu0 0
    %3925 = vmatprep.subr.bf16.mxu0 0
    %3926 = vmatpush2.bf16.msra.mxu0 0
    %3927 = vmatprep.mubr.bf16.mxu0 0
    %3928 = vmatmul.mubr.bf16.gmra.mxu0 %v3845
    %v3929 = vpop.f32.mrf.mxu0
    %v3930 = vadd.f32 0.0, %v3929
    %v3931 = vpop.f32.mrf.mxu0
    %v3932 = vpop.f32.mrf.mxu0
    %v3933 = vpop.f32.mrf.mxu0
    %3934 = vdwg.mxu0
    %v3935 = vadd.f32 %v3824, %v3930
    %v3936 = vand.u32 2147483647, %v3935
    %v3937 = vadd.f32 %v3936, 1.0
    %v3938 = vrcp.pop %v3937
    %v3939 = vmul.f32 %v3935, %v3938
    %v3940 = vld [vmem:[%s7] sm:$0xff]
    %v3941 = vld [vmem:[%s7 + $0x8] sm:$0xff]
    %v3942 = vld [vmem:[%s7 + $0x10] sm:$0xff]
    %v3943 = vld [vmem:[%s7 + $0x18] sm:$0xff]
    %v3944 = vld [vmem:[%s8] sm:$0x1]
    %v3946 = vlaneseq
    %v3947 = vshrl.u32 %v3946, 7
    %v3948 = vsub.s32 0, %v3947
    %v3949 = vrot.slane %v3944, %v3948
    %v3952 = vsel %vm2036, %v3939, 0
    %3954 = vmatprep.subr.mxu0 0.0
    %3955 = vmatpush1.msra.mxu0 0.0
    %3956 = vmatprep.subr.mxu0 0.0
    %3957 = vmatpush1.msra.mxu0 0.0
    %3958 = vmatprep.subr.mxu0 0.0
    %3959 = vmatpush1.msra.mxu0 0.0
    %3960 = vmatprep.subr.mxu0 0.0
    %3961 = vmatpush1.msra.mxu0 0.0
    %3962 = vmatprep.subr.mxu0 0.0
    %3963 = vmatpush1.msra.mxu0 0.0
    %3964 = vmatprep.subr.mxu0 0.0
    %3965 = vmatpush1.msra.mxu0 0.0
    %3966 = vmatprep.subr.mxu0 0.0
    %3967 = vmatpush1.msra.mxu0 0.0
    %3968 = vmatprep.subr.mxu0 0.0
    %3969 = vmatpush1.msra.mxu0 0.0
    %3970 = vmatprep.subr.mxu0 0.0
    %3971 = vmatpush1.msra.mxu0 0.0
    %3972 = vmatprep.subr.mxu0 0.0
    %3973 = vmatpush1.msra.mxu0 0.0
    %3974 = vmatprep.subr.mxu0 0.0
    %3975 = vmatpush1.msra.mxu0 0.0
    %3976 = vmatprep.subr.mxu0 0.0
    %3977 = vmatpush1.msra.mxu0 0.0
    %3978 = vmatprep.subr.mxu0 0.0
    %3979 = vmatpush1.msra.mxu0 %v3943
    %3980 = vmatprep.subr.mxu0 0.0
    %3981 = vmatpush1.msra.mxu0 %v3942
    %3982 = vmatprep.subr.mxu0 0.0
    %3983 = vmatpush1.msra.mxu0 %v3941
    %3984 = vmatprep.subr.mxu0 0.0
    %3985 = vmatpush1.msra.mxu0 %v3940
    %3986 = vmatprep.subr.mxu0 0.0
    %3987 = vmatpush2.msra.mxu0 0.0
    %3988 = vmatprep.subr.mxu0 0.0
    %3989 = vmatpush2.msra.mxu0 0.0
    %3990 = vmatprep.subr.mxu0 0.0
    %3991 = vmatpush2.msra.mxu0 0.0
    %3992 = vmatprep.subr.mxu0 0.0
    %3993 = vmatpush2.msra.mxu0 0.0
    %3994 = vmatprep.subr.mxu0 0.0
    %3995 = vmatpush2.msra.mxu0 0.0
    %3996 = vmatprep.subr.mxu0 0.0
    %3997 = vmatpush2.msra.mxu0 0.0
    %3998 = vmatprep.subr.mxu0 0.0
    %3999 = vmatpush2.msra.mxu0 0.0
    %4000 = vmatprep.subr.mxu0 0.0
    %4001 = vmatpush2.msra.mxu0 0.0
    %4002 = vmatprep.subr.mxu0 0.0
    %4003 = vmatpush2.msra.mxu0 0.0
    %4004 = vmatprep.subr.mxu0 0.0
    %4005 = vmatpush2.msra.mxu0 0.0
    %4006 = vmatprep.subr.mxu0 0.0
    %4007 = vmatpush2.msra.mxu0 0.0
    %4008 = vmatprep.subr.mxu0 0.0
    %4009 = vmatpush2.msra.mxu0 0.0
    %4010 = vmatprep.subr.mxu0 0.0
    %4011 = vmatpush2.msra.mxu0 0.0
    %4012 = vmatprep.subr.mxu0 0.0
    %4013 = vmatpush2.msra.mxu0 0.0
    %4014 = vmatprep.subr.mxu0 0.0
    %4015 = vmatpush2.msra.mxu0 0.0
    %4016 = vmatprep.subr.mxu0 0.0
    %4017 = vmatpush2.msra.mxu0 0.0
    %4018 = vmatprep.mubr.f32.mxu0 0.0
    %4019 = vmatmul.mubr.f32.gmra.mxu0 %v3952
    %v4020 = vpop.f32.mrf.mxu0
    %v4021 = vadd.f32 %v3949, %v4020
    %v4022 = vpop.f32.mrf.mxu0
    %4023 = vdwg.mxu0
    %vm4024 = vcmask 74752
    %v4025 = vsel %vm4024, %v4021, -inf
    %4026 = vmax.xlane.f32.xlu0 %v4025
    %v4027 = vpop.xlane.xlu0 %4026
    %v4028 = vsub.f32 %v4021, %v4027
    %v4029 = vmul.f32 %v4028, 1.442695
    %v4030 = vpow.pop %v4029
    %v4031 = vsel %vm4024, %v4030, 0.0
    %4032 = vadd.xlane.f32.xlu0 %v4031
    %v4033 = vpop.xlane.xlu0 %4032
    %v4034 = vlog2.pop %v4033
    %v4035 = vmul.f32 %v4034, 0.6931472
    %v4036 = vadd.f32 %v4027, %v4035
    %v4037 = vsub.f32 %v4021, %v4036
    %4038 = vst.msk [vmem:[#allocation2] sm:$0x3] %vm4024, %v4037
    // Predicated region
    $region38: #{net_forward.1} parent=1 // pred_check
      _
    $region39: #{net_forward.1} parent=1 // pred_check_branch
      %4040 = sbr.rel (0) target = $region41
    $region40: #{net_forward.1} parent=1 // pred_region
      %s4042 = ssub.s32 32, 32
      %4043 = vsyncadd [#allocation3], %s4042
      %s4045 = sshll.u32 [#allocation2], 4
      %s4046 = int_to_ptr.vmem [resolvable:$true] %s4045
      %4048 = dma.vmem_to_hbm [thread:$0]  %s4046, 32, %s9, [#allocation3]
    $region41: #{net_forward.1} parent=1 // pred_fallthru
      _
    // Predicated region
    $region42: #{net_forward.1} parent=1 // pred_check
      _
    $region43: #{net_forward.1} parent=1 // pred_check_branch
      %4050 = sbr.rel (0) target = $region45
    $region44: #{net_forward.1} parent=1 // pred_region
      %4051 = dma.done [#allocation3], 32
    $region45: #{net_forward.1} parent=1 // pred_fallthru
      _
    %4052 = vsyncpa [#allocation3], 1

</llo_original>
